<compile_context>
chip_gen: v6e
topology: v6e:2x2x1
jax: 0.10.0
libtpu: 0.0.40
codegen_flags: <defaults>
</compile_context>

<pallas_src>
import jax
import jax.numpy as jnp
import numpy as np
from jax.experimental import pallas as pl
from jax.experimental.pallas import tpu as pltpu


def lstm_predictor_kernel(proj0_ref, wblk_ref, b1_ref, wfc_ref, bfc_ref, out_ref):
    """Wavefront 2-layer LSTM recurrence + Linear head.

    proj0_ref : (T*B, 4H) f32  layer-0 input projection (x @ wih0^T + b_ih0 + b_hh0),
                               time-major: rows [t*B, (t+1)*B) = timestep t
    wblk_ref  : (2H, 8H)  cd   block recurrent weight [[whh0, wih1], [0, whh1]]
    b1_ref    : (1, 4H)   f32  layer-1 combined bias (b_ih1 + b_hh1)
    wfc_ref   : (H, 128)  cd   fc weight zero-padded to 128 lanes (col 0 real)
    bfc_ref   : (1, 128)  f32  fc bias, zero-padded
    out_ref   : (B, 128)  f32  lane-dense output; column 0 holds the prediction
    """
    B = out_ref.shape[0]
    TB, H4 = proj0_ref.shape
    T = TB // B
    H = H4 // 4

    # Loop-invariant loads, hoisted out of the recurrence.
    wblk = wblk_ref[...]                                   # (2H, 8H)
    w1cat = wblk[:, H4:]                                   # (2H, 4H) = [wih1; whh1]
    b1 = jnp.broadcast_to(b1_ref[...], (B, H4))            # broadcast once
    proj0 = proj0_ref[...]                                 # (T*B, 4H) f32
    cd = wblk.dtype

    def gates(pre):
        # PyTorch gate order [i, f, g, o]; sliced activations (half the EUP work).
        sif = jax.nn.sigmoid(pre[:, 0:2 * H])              # i, f together
        g = jnp.tanh(pre[:, 2 * H:3 * H])
        o = jax.nn.sigmoid(pre[:, 3 * H:4 * H])
        return sif[:, 0:H], sif[:, H:2 * H], g, o

    def cell(pre, c_prev):
        i, f, g, o = gates(pre)
        c_new = f * c_prev + i * g
        h_new = o * jnp.tanh(c_new)
        return h_new, c_new

    # f32 c-state; h is kept f32 with a compute-dtype shadow for the dots.
    c0 = jnp.zeros((B, H), jnp.float32)
    c1 = jnp.zeros((B, H), jnp.float32)
    h1_cd = jnp.zeros((B, H), cd)

    # ---- prologue (t = 0): layer-0 step only, zero recurrent contribution ----
    h0, c0 = cell(proj0[0:B, :], c0)
    h0_cd = h0.astype(cd)

    # ---- wavefront iterations t = 1 .. T-1 ----------------------------------
    # At iteration t: layer-0 step t (uses h0[t-1]) and layer-1 step t-1
    # (uses h0[t-1], h1[t-2]) share ONE recurrent matmul.
    for t in range(1, T):
        hcat = jnp.concatenate([h0_cd, h1_cd], axis=1)     # (B, 2H), vreg-level concat
        big = jnp.dot(hcat, wblk, preferred_element_type=jnp.float32)  # (B, 8H)

        pre0 = proj0[t * B:(t + 1) * B, :] + big[:, 0:H4]  # layer-0 step t
        pre1 = big[:, H4:] + b1                            # layer-1 step t-1

        h0, c0 = cell(pre0, c0)
        h1, c1 = cell(pre1, c1)
        h0_cd = h0.astype(cd)
        h1_cd = h1.astype(cd)

    # ---- epilogue: final layer-1 step (timestep T-1) -------------------------
    hcat = jnp.concatenate([h0_cd, h1_cd], axis=1)
    rec1 = jnp.dot(hcat, w1cat, preferred_element_type=jnp.float32)
    h1, c1 = cell(rec1 + b1, c1)
    h1_cd = h1.astype(cd)

    # fc head on the final layer-1 hidden; dropout (eval) is identity.
    out_ref[...] = (jnp.dot(h1_cd, wfc_ref[...], preferred_element_type=jnp.float32)
                    + bfc_ref[...])


def lstm_price_predictor(x, params, *, compute_dtype=jnp.bfloat16):
    """x: (B, T, input_size) float32, batch-first like the PyTorch module.

    compute_dtype controls the matmul-operand dtype (weights + h shadow);
    accumulation, gates and the c/h state stay f32. bf16 is the default
    (single-pass MXU on v5e/v6e/v7x); pass jnp.float32 for bit-accurate checks.
    """
    B, T, I = x.shape
    H = params["whh0"].shape[1]          # whh0 is (4H, H)
    H4 = 4 * H
    cd = compute_dtype

    # Pad batch to a multiple of 8 so every (B, .) tile fills whole sublanes.
    B_pad = ((B + 7) // 8) * 8
    if B_pad != B:
        x = jnp.pad(x, ((0, B_pad - B), (0, 0), (0, 0)))

    # Layer-0 input projection in the wrapper (degenerate K=I contraction is a
    # poor MXU fit); time-major flatten so the kernel takes static row blocks.
    x_tm = jnp.transpose(x, (1, 0, 2)).reshape(T * B_pad, I).astype(jnp.float32)
    wih0 = params["wih0"].T.astype(jnp.float32)                       # (I, 4H)
    b0 = (params["bih0"] + params["bhh0"]).reshape(1, H4).astype(jnp.float32)
    proj0 = jnp.dot(x_tm, wih0, precision=jax.lax.Precision.HIGHEST) + b0  # (T*B, 4H)

    # Block recurrent weight [[whh0, wih1], [0, whh1]] -> one matmul per step.
    whh0_t = params["whh0"].T                                          # (H, 4H)
    wih1_t = params["wih1"].T                                          # (H, 4H)
    whh1_t = params["whh1"].T                                          # (H, 4H)
    wblk = jnp.concatenate(
        [jnp.concatenate([whh0_t, wih1_t], axis=1),
         jnp.concatenate([jnp.zeros_like(whh1_t), whh1_t], axis=1)],
        axis=0).astype(cd)                                             # (2H, 8H)

    b1 = (params["bih1"] + params["bhh1"]).reshape(1, H4).astype(jnp.float32)

    # fc head padded to a full 128-lane output tile (column 0 is real).
    wfc_pad = jnp.pad(params["wfc"].T, ((0, 0), (0, 127))).astype(cd)  # (H, 128)
    bfc_pad = jnp.pad(params["bfc"].reshape(1, 1),
                      ((0, 0), (0, 127))).astype(jnp.float32)          # (1, 128)

    vmem = pl.BlockSpec(memory_space=pltpu.MemorySpace.VMEM)
    out_pad = pl.pallas_call(
        lstm_predictor_kernel,
        out_shape=jax.ShapeDtypeStruct((B_pad, 128), jnp.float32),
        in_specs=[vmem] * 5,
        out_specs=vmem,
    )(proj0, wblk, b1, wfc_pad, bfc_pad)

    return out_pad[:B, 0:1]


def reference_forward(x, params):
    """Pure-JAX reference matching PyTorch nn.LSTM + Linear (eval mode)."""
    B, T, I = x.shape
    H = params["whh0"].shape[1]

    def run_layer(seq, wih, whh, bih, bhh):
        h = jnp.zeros((B, H), jnp.float32)
        c = jnp.zeros((B, H), jnp.float32)
        outs = []
        for t in range(T):
            g = seq[:, t, :] @ wih.T + h @ whh.T + bih + bhh
            i_g = jax.nn.sigmoid(g[:, 0 * H:1 * H])
            f_g = jax.nn.sigmoid(g[:, 1 * H:2 * H])
            g_g = jnp.tanh(g[:, 2 * H:3 * H])
            o_g = jax.nn.sigmoid(g[:, 3 * H:4 * H])
            c = f_g * c + i_g * g_g
            h = o_g * jnp.tanh(c)
            outs.append(h)
        return jnp.stack(outs, axis=1)

    l0 = run_layer(x, params["wih0"], params["whh0"], params["bih0"], params["bhh0"])
    l1 = run_layer(l0, params["wih1"], params["whh1"], params["bih1"], params["bhh1"])
    last = l1[:, -1, :]
    return last @ params["wfc"].T + params["bfc"]


def init_params(key, input_size, hidden_size):
    """Deterministic init mirroring PyTorch default U(-1/sqrt(H), 1/sqrt(H))."""
    H = hidden_size
    k = 1.0 / np.sqrt(H)
    keys = jax.random.split(key, 10)
    u = lambda kk, shape: jax.random.uniform(kk, shape, jnp.float32, -k, k)
    return {
        "wih0": u(keys[0], (4 * H, input_size)),
        "whh0": u(keys[1], (4 * H, H)),
        "bih0": u(keys[2], (4 * H,)),
        "bhh0": u(keys[3], (4 * H,)),
        "wih1": u(keys[4], (4 * H, H)),
        "whh1": u(keys[5], (4 * H, H)),
        "bih1": u(keys[6], (4 * H,)),
        "bhh1": u(keys[7], (4 * H,)),
        "wfc":  u(keys[8], (1, H)),
        "bfc":  u(keys[9], (1,)),
    }


if __name__ == "__main__":
    # hidden_size=128 is the module default; it also makes every gate slice a
    # full lane-aligned vreg inside the kernel.
    B, T, INPUT, HIDDEN = 2, 8, 4, 128

    key = jax.random.PRNGKey(0)
    kx, kp = jax.random.split(key)
    x = jax.random.normal(kx, (B, T, INPUT), jnp.float32)
    params = init_params(kp, INPUT, HIDDEN)

    ref = jax.block_until_ready(reference_forward(x, params))

    # f32-operand run: checked tightly against the pure-JAX reference.
    out_f32 = jax.block_until_ready(
        lstm_price_predictor(x, params, compute_dtype=jnp.float32))
    assert out_f32.shape == (B, 1), out_f32.shape
    np.testing.assert_allclose(np.asarray(out_f32), np.asarray(ref),
                               rtol=1e-3, atol=1e-4)

    # Default bf16-operand run (the v6e/v7x recommendation): f32 accumulation
    # and f32 gate/state math keep accuracy; loose tolerance vs. f32 reference.
    out_bf16 = jax.block_until_ready(lstm_price_predictor(x, params))
    assert out_bf16.shape == (B, 1), out_bf16.shape
    np.testing.assert_allclose(np.asarray(out_bf16), np.asarray(ref),
                               rtol=5e-2, atol=5e-2)

    print("KERNEL_OK")
</pallas_src>

<mosaic_0001>
module attributes {stable_mosaic.version = 11 : i64} {
  func.func @lstm_predictor_kernel(%arg0: memref<64x512xf32, #tpu.memory_space<vmem>>, %arg1: memref<256x1024xf32, #tpu.memory_space<vmem>>, %arg2: memref<1x512xf32, #tpu.memory_space<vmem>>, %arg3: memref<128x128xf32, #tpu.memory_space<vmem>>, %arg4: memref<1x128xf32, #tpu.memory_space<vmem>>, %arg5: memref<8x128xf32, #tpu.memory_space<vmem>>) attributes {dimension_semantics = [], scalar_prefetch = 0 : i64, scratch_operands = 0 : i64, tpu.core_type = #tpu.core_type<tc>} {
    %c0 = arith.constant 0 : index
    %c0_0 = arith.constant 0 : index
    %0 = vector.load %arg1[%c0, %c0_0] : memref<256x1024xf32, #tpu.memory_space<vmem>>, vector<256x1024xf32>
    %1 = vector.extract_strided_slice %0 {offsets = [0, 512], sizes = [256, 512], strides = [1, 1]} : vector<256x1024xf32> to vector<256x512xf32>
    %c0_1 = arith.constant 0 : index
    %c0_2 = arith.constant 0 : index
    %2 = vector.load %arg2[%c0_1, %c0_2] : memref<1x512xf32, #tpu.memory_space<vmem>>, vector<1x512xf32>
    %3 = vector.shape_cast %2 : vector<1x512xf32> to vector<1x512xf32>
    %4 = vector.broadcast %3 : vector<1x512xf32> to vector<8x512xf32>
    %c0_3 = arith.constant 0 : index
    %c0_4 = arith.constant 0 : index
    %5 = vector.load %arg0[%c0_3, %c0_4] : memref<64x512xf32, #tpu.memory_space<vmem>>, vector<64x512xf32>
    %cst = arith.constant 0.000000e+00 : f32
    %6 = vector.broadcast %cst : f32 to vector<8x128xf32>
    %cst_5 = arith.constant 0.000000e+00 : f32
    %7 = vector.broadcast %cst_5 : f32 to vector<8x128xf32>
    %cst_6 = arith.constant 0.000000e+00 : f32
    %8 = vector.broadcast %cst_6 : f32 to vector<8x128xf32>
    %9 = vector.extract_strided_slice %5 {offsets = [0, 0], sizes = [8, 512], strides = [1, 1]} : vector<64x512xf32> to vector<8x512xf32>
    %10 = vector.extract_strided_slice %9 {offsets = [0, 0], sizes = [8, 256], strides = [1, 1]} : vector<8x512xf32> to vector<8x256xf32>
    %11 = arith.negf %10 : vector<8x256xf32>
    %12 = math.exp %11 : vector<8x256xf32>
    %cst_7 = arith.constant 1.000000e+00 : f32
    %13 = vector.broadcast %cst_7 : f32 to vector<8x256xf32>
    %14 = arith.addf %13, %12 : vector<8x256xf32>
    %15 = arith.divf %13, %14 : vector<8x256xf32>
    %16 = vector.extract_strided_slice %9 {offsets = [0, 256], sizes = [8, 128], strides = [1, 1]} : vector<8x512xf32> to vector<8x128xf32>
    %17 = math.tanh %16 : vector<8x128xf32>
    %18 = vector.extract_strided_slice %9 {offsets = [0, 384], sizes = [8, 128], strides = [1, 1]} : vector<8x512xf32> to vector<8x128xf32>
    %19 = arith.negf %18 : vector<8x128xf32>
    %20 = math.exp %19 : vector<8x128xf32>
    %cst_8 = arith.constant 1.000000e+00 : f32
    %21 = vector.broadcast %cst_8 : f32 to vector<8x128xf32>
    %22 = arith.addf %21, %20 : vector<8x128xf32>
    %23 = arith.divf %21, %22 : vector<8x128xf32>
    %24 = vector.extract_strided_slice %15 {offsets = [0, 0], sizes = [8, 128], strides = [1, 1]} : vector<8x256xf32> to vector<8x128xf32>
    %25 = vector.extract_strided_slice %15 {offsets = [0, 128], sizes = [8, 128], strides = [1, 1]} : vector<8x256xf32> to vector<8x128xf32>
    %26 = arith.mulf %25, %6 : vector<8x128xf32>
    %27 = arith.mulf %24, %17 : vector<8x128xf32>
    %28 = arith.addf %26, %27 : vector<8x128xf32>
    %29 = math.tanh %28 : vector<8x128xf32>
    %30 = arith.mulf %23, %29 : vector<8x128xf32>
    %31 = tpu.concatenate %30, %8 in 1 : vector<8x128xf32>, vector<8x128xf32> -> vector<8x256xf32>
    %cst_9 = arith.constant dense<0.000000e+00> : vector<8x1024xf32>
    %32 = tpu.matmul %31, %0, %cst_9 {dimension_numbers = #tpu.dot_dimension_numbers<[1], [0], [0], [1], [0, 0, 1, 1], [], []>} : vector<8x256xf32>, vector<256x1024xf32>, vector<8x1024xf32> -> vector<8x1024xf32>
    %33 = vector.extract_strided_slice %5 {offsets = [8, 0], sizes = [8, 512], strides = [1, 1]} : vector<64x512xf32> to vector<8x512xf32>
    %34 = vector.extract_strided_slice %32 {offsets = [0, 0], sizes = [8, 512], strides = [1, 1]} : vector<8x1024xf32> to vector<8x512xf32>
    %35 = arith.addf %33, %34 : vector<8x512xf32>
    %36 = vector.extract_strided_slice %32 {offsets = [0, 512], sizes = [8, 512], strides = [1, 1]} : vector<8x1024xf32> to vector<8x512xf32>
    %37 = arith.addf %36, %4 : vector<8x512xf32>
    %38 = vector.extract_strided_slice %35 {offsets = [0, 0], sizes = [8, 256], strides = [1, 1]} : vector<8x512xf32> to vector<8x256xf32>
    %39 = arith.negf %38 : vector<8x256xf32>
    %40 = math.exp %39 : vector<8x256xf32>
    %cst_10 = arith.constant 1.000000e+00 : f32
    %41 = vector.broadcast %cst_10 : f32 to vector<8x256xf32>
    %42 = arith.addf %41, %40 : vector<8x256xf32>
    %43 = arith.divf %41, %42 : vector<8x256xf32>
    %44 = vector.extract_strided_slice %35 {offsets = [0, 256], sizes = [8, 128], strides = [1, 1]} : vector<8x512xf32> to vector<8x128xf32>
    %45 = math.tanh %44 : vector<8x128xf32>
    %46 = vector.extract_strided_slice %35 {offsets = [0, 384], sizes = [8, 128], strides = [1, 1]} : vector<8x512xf32> to vector<8x128xf32>
    %47 = arith.negf %46 : vector<8x128xf32>
    %48 = math.exp %47 : vector<8x128xf32>
    %cst_11 = arith.constant 1.000000e+00 : f32
    %49 = vector.broadcast %cst_11 : f32 to vector<8x128xf32>
    %50 = arith.addf %49, %48 : vector<8x128xf32>
    %51 = arith.divf %49, %50 : vector<8x128xf32>
    %52 = vector.extract_strided_slice %43 {offsets = [0, 0], sizes = [8, 128], strides = [1, 1]} : vector<8x256xf32> to vector<8x128xf32>
    %53 = vector.extract_strided_slice %43 {offsets = [0, 128], sizes = [8, 128], strides = [1, 1]} : vector<8x256xf32> to vector<8x128xf32>
    %54 = arith.mulf %53, %28 : vector<8x128xf32>
    %55 = arith.mulf %52, %45 : vector<8x128xf32>
    %56 = arith.addf %54, %55 : vector<8x128xf32>
    %57 = math.tanh %56 : vector<8x128xf32>
    %58 = arith.mulf %51, %57 : vector<8x128xf32>
    %59 = vector.extract_strided_slice %37 {offsets = [0, 0], sizes = [8, 256], strides = [1, 1]} : vector<8x512xf32> to vector<8x256xf32>
    %60 = arith.negf %59 : vector<8x256xf32>
    %61 = math.exp %60 : vector<8x256xf32>
    %cst_12 = arith.constant 1.000000e+00 : f32
    %62 = vector.broadcast %cst_12 : f32 to vector<8x256xf32>
    %63 = arith.addf %62, %61 : vector<8x256xf32>
    %64 = arith.divf %62, %63 : vector<8x256xf32>
    %65 = vector.extract_strided_slice %37 {offsets = [0, 256], sizes = [8, 128], strides = [1, 1]} : vector<8x512xf32> to vector<8x128xf32>
    %66 = math.tanh %65 : vector<8x128xf32>
    %67 = vector.extract_strided_slice %37 {offsets = [0, 384], sizes = [8, 128], strides = [1, 1]} : vector<8x512xf32> to vector<8x128xf32>
    %68 = arith.negf %67 : vector<8x128xf32>
    %69 = math.exp %68 : vector<8x128xf32>
    %cst_13 = arith.constant 1.000000e+00 : f32
    %70 = vector.broadcast %cst_13 : f32 to vector<8x128xf32>
    %71 = arith.addf %70, %69 : vector<8x128xf32>
    %72 = arith.divf %70, %71 : vector<8x128xf32>
    %73 = vector.extract_strided_slice %64 {offsets = [0, 0], sizes = [8, 128], strides = [1, 1]} : vector<8x256xf32> to vector<8x128xf32>
    %74 = vector.extract_strided_slice %64 {offsets = [0, 128], sizes = [8, 128], strides = [1, 1]} : vector<8x256xf32> to vector<8x128xf32>
    %75 = arith.mulf %74, %7 : vector<8x128xf32>
    %76 = arith.mulf %73, %66 : vector<8x128xf32>
    %77 = arith.addf %75, %76 : vector<8x128xf32>
    %78 = math.tanh %77 : vector<8x128xf32>
    %79 = arith.mulf %72, %78 : vector<8x128xf32>
    %80 = tpu.concatenate %58, %79 in 1 : vector<8x128xf32>, vector<8x128xf32> -> vector<8x256xf32>
    %cst_14 = arith.constant dense<0.000000e+00> : vector<8x1024xf32>
    %81 = tpu.matmul %80, %0, %cst_14 {dimension_numbers = #tpu.dot_dimension_numbers<[1], [0], [0], [1], [0, 0, 1, 1], [], []>} : vector<8x256xf32>, vector<256x1024xf32>, vector<8x1024xf32> -> vector<8x1024xf32>
    %82 = vector.extract_strided_slice %5 {offsets = [16, 0], sizes = [8, 512], strides = [1, 1]} : vector<64x512xf32> to vector<8x512xf32>
    %83 = vector.extract_strided_slice %81 {offsets = [0, 0], sizes = [8, 512], strides = [1, 1]} : vector<8x1024xf32> to vector<8x512xf32>
    %84 = arith.addf %82, %83 : vector<8x512xf32>
    %85 = vector.extract_strided_slice %81 {offsets = [0, 512], sizes = [8, 512], strides = [1, 1]} : vector<8x1024xf32> to vector<8x512xf32>
    %86 = arith.addf %85, %4 : vector<8x512xf32>
    %87 = vector.extract_strided_slice %84 {offsets = [0, 0], sizes = [8, 256], strides = [1, 1]} : vector<8x512xf32> to vector<8x256xf32>
    %88 = arith.negf %87 : vector<8x256xf32>
    %89 = math.exp %88 : vector<8x256xf32>
    %cst_15 = arith.constant 1.000000e+00 : f32
    %90 = vector.broadcast %cst_15 : f32 to vector<8x256xf32>
    %91 = arith.addf %90, %89 : vector<8x256xf32>
    %92 = arith.divf %90, %91 : vector<8x256xf32>
    %93 = vector.extract_strided_slice %84 {offsets = [0, 256], sizes = [8, 128], strides = [1, 1]} : vector<8x512xf32> to vector<8x128xf32>
    %94 = math.tanh %93 : vector<8x128xf32>
    %95 = vector.extract_strided_slice %84 {offsets = [0, 384], sizes = [8, 128], strides = [1, 1]} : vector<8x512xf32> to vector<8x128xf32>
    %96 = arith.negf %95 : vector<8x128xf32>
    %97 = math.exp %96 : vector<8x128xf32>
    %cst_16 = arith.constant 1.000000e+00 : f32
    %98 = vector.broadcast %cst_16 : f32 to vector<8x128xf32>
    %99 = arith.addf %98, %97 : vector<8x128xf32>
    %100 = arith.divf %98, %99 : vector<8x128xf32>
    %101 = vector.extract_strided_slice %92 {offsets = [0, 0], sizes = [8, 128], strides = [1, 1]} : vector<8x256xf32> to vector<8x128xf32>
    %102 = vector.extract_strided_slice %92 {offsets = [0, 128], sizes = [8, 128], strides = [1, 1]} : vector<8x256xf32> to vector<8x128xf32>
    %103 = arith.mulf %102, %56 : vector<8x128xf32>
    %104 = arith.mulf %101, %94 : vector<8x128xf32>
    %105 = arith.addf %103, %104 : vector<8x128xf32>
    %106 = math.tanh %105 : vector<8x128xf32>
    %107 = arith.mulf %100, %106 : vector<8x128xf32>
    %108 = vector.extract_strided_slice %86 {offsets = [0, 0], sizes = [8, 256], strides = [1, 1]} : vector<8x512xf32> to vector<8x256xf32>
    %109 = arith.negf %108 : vector<8x256xf32>
    %110 = math.exp %109 : vector<8x256xf32>
    %cst_17 = arith.constant 1.000000e+00 : f32
    %111 = vector.broadcast %cst_17 : f32 to vector<8x256xf32>
    %112 = arith.addf %111, %110 : vector<8x256xf32>
    %113 = arith.divf %111, %112 : vector<8x256xf32>
    %114 = vector.extract_strided_slice %86 {offsets = [0, 256], sizes = [8, 128], strides = [1, 1]} : vector<8x512xf32> to vector<8x128xf32>
    %115 = math.tanh %114 : vector<8x128xf32>
    %116 = vector.extract_strided_slice %86 {offsets = [0, 384], sizes = [8, 128], strides = [1, 1]} : vector<8x512xf32> to vector<8x128xf32>
    %117 = arith.negf %116 : vector<8x128xf32>
    %118 = math.exp %117 : vector<8x128xf32>
    %cst_18 = arith.constant 1.000000e+00 : f32
    %119 = vector.broadcast %cst_18 : f32 to vector<8x128xf32>
    %120 = arith.addf %119, %118 : vector<8x128xf32>
    %121 = arith.divf %119, %120 : vector<8x128xf32>
    %122 = vector.extract_strided_slice %113 {offsets = [0, 0], sizes = [8, 128], strides = [1, 1]} : vector<8x256xf32> to vector<8x128xf32>
    %123 = vector.extract_strided_slice %113 {offsets = [0, 128], sizes = [8, 128], strides = [1, 1]} : vector<8x256xf32> to vector<8x128xf32>
    %124 = arith.mulf %123, %77 : vector<8x128xf32>
    %125 = arith.mulf %122, %115 : vector<8x128xf32>
    %126 = arith.addf %124, %125 : vector<8x128xf32>
    %127 = math.tanh %126 : vector<8x128xf32>
    %128 = arith.mulf %121, %127 : vector<8x128xf32>
    %129 = tpu.concatenate %107, %128 in 1 : vector<8x128xf32>, vector<8x128xf32> -> vector<8x256xf32>
    %cst_19 = arith.constant dense<0.000000e+00> : vector<8x1024xf32>
    %130 = tpu.matmul %129, %0, %cst_19 {dimension_numbers = #tpu.dot_dimension_numbers<[1], [0], [0], [1], [0, 0, 1, 1], [], []>} : vector<8x256xf32>, vector<256x1024xf32>, vector<8x1024xf32> -> vector<8x1024xf32>
    %131 = vector.extract_strided_slice %5 {offsets = [24, 0], sizes = [8, 512], strides = [1, 1]} : vector<64x512xf32> to vector<8x512xf32>
    %132 = vector.extract_strided_slice %130 {offsets = [0, 0], sizes = [8, 512], strides = [1, 1]} : vector<8x1024xf32> to vector<8x512xf32>
    %133 = arith.addf %131, %132 : vector<8x512xf32>
    %134 = vector.extract_strided_slice %130 {offsets = [0, 512], sizes = [8, 512], strides = [1, 1]} : vector<8x1024xf32> to vector<8x512xf32>
    %135 = arith.addf %134, %4 : vector<8x512xf32>
    %136 = vector.extract_strided_slice %133 {offsets = [0, 0], sizes = [8, 256], strides = [1, 1]} : vector<8x512xf32> to vector<8x256xf32>
    %137 = arith.negf %136 : vector<8x256xf32>
    %138 = math.exp %137 : vector<8x256xf32>
    %cst_20 = arith.constant 1.000000e+00 : f32
    %139 = vector.broadcast %cst_20 : f32 to vector<8x256xf32>
    %140 = arith.addf %139, %138 : vector<8x256xf32>
    %141 = arith.divf %139, %140 : vector<8x256xf32>
    %142 = vector.extract_strided_slice %133 {offsets = [0, 256], sizes = [8, 128], strides = [1, 1]} : vector<8x512xf32> to vector<8x128xf32>
    %143 = math.tanh %142 : vector<8x128xf32>
    %144 = vector.extract_strided_slice %133 {offsets = [0, 384], sizes = [8, 128], strides = [1, 1]} : vector<8x512xf32> to vector<8x128xf32>
    %145 = arith.negf %144 : vector<8x128xf32>
    %146 = math.exp %145 : vector<8x128xf32>
    %cst_21 = arith.constant 1.000000e+00 : f32
    %147 = vector.broadcast %cst_21 : f32 to vector<8x128xf32>
    %148 = arith.addf %147, %146 : vector<8x128xf32>
    %149 = arith.divf %147, %148 : vector<8x128xf32>
    %150 = vector.extract_strided_slice %141 {offsets = [0, 0], sizes = [8, 128], strides = [1, 1]} : vector<8x256xf32> to vector<8x128xf32>
    %151 = vector.extract_strided_slice %141 {offsets = [0, 128], sizes = [8, 128], strides = [1, 1]} : vector<8x256xf32> to vector<8x128xf32>
    %152 = arith.mulf %151, %105 : vector<8x128xf32>
    %153 = arith.mulf %150, %143 : vector<8x128xf32>
    %154 = arith.addf %152, %153 : vector<8x128xf32>
    %155 = math.tanh %154 : vector<8x128xf32>
    %156 = arith.mulf %149, %155 : vector<8x128xf32>
    %157 = vector.extract_strided_slice %135 {offsets = [0, 0], sizes = [8, 256], strides = [1, 1]} : vector<8x512xf32> to vector<8x256xf32>
    %158 = arith.negf %157 : vector<8x256xf32>
    %159 = math.exp %158 : vector<8x256xf32>
    %cst_22 = arith.constant 1.000000e+00 : f32
    %160 = vector.broadcast %cst_22 : f32 to vector<8x256xf32>
    %161 = arith.addf %160, %159 : vector<8x256xf32>
    %162 = arith.divf %160, %161 : vector<8x256xf32>
    %163 = vector.extract_strided_slice %135 {offsets = [0, 256], sizes = [8, 128], strides = [1, 1]} : vector<8x512xf32> to vector<8x128xf32>
    %164 = math.tanh %163 : vector<8x128xf32>
    %165 = vector.extract_strided_slice %135 {offsets = [0, 384], sizes = [8, 128], strides = [1, 1]} : vector<8x512xf32> to vector<8x128xf32>
    %166 = arith.negf %165 : vector<8x128xf32>
    %167 = math.exp %166 : vector<8x128xf32>
    %cst_23 = arith.constant 1.000000e+00 : f32
    %168 = vector.broadcast %cst_23 : f32 to vector<8x128xf32>
    %169 = arith.addf %168, %167 : vector<8x128xf32>
    %170 = arith.divf %168, %169 : vector<8x128xf32>
    %171 = vector.extract_strided_slice %162 {offsets = [0, 0], sizes = [8, 128], strides = [1, 1]} : vector<8x256xf32> to vector<8x128xf32>
    %172 = vector.extract_strided_slice %162 {offsets = [0, 128], sizes = [8, 128], strides = [1, 1]} : vector<8x256xf32> to vector<8x128xf32>
    %173 = arith.mulf %172, %126 : vector<8x128xf32>
    %174 = arith.mulf %171, %164 : vector<8x128xf32>
    %175 = arith.addf %173, %174 : vector<8x128xf32>
    %176 = math.tanh %175 : vector<8x128xf32>
    %177 = arith.mulf %170, %176 : vector<8x128xf32>
    %178 = tpu.concatenate %156, %177 in 1 : vector<8x128xf32>, vector<8x128xf32> -> vector<8x256xf32>
    %cst_24 = arith.constant dense<0.000000e+00> : vector<8x1024xf32>
    %179 = tpu.matmul %178, %0, %cst_24 {dimension_numbers = #tpu.dot_dimension_numbers<[1], [0], [0], [1], [0, 0, 1, 1], [], []>} : vector<8x256xf32>, vector<256x1024xf32>, vector<8x1024xf32> -> vector<8x1024xf32>
    %180 = vector.extract_strided_slice %5 {offsets = [32, 0], sizes = [8, 512], strides = [1, 1]} : vector<64x512xf32> to vector<8x512xf32>
    %181 = vector.extract_strided_slice %179 {offsets = [0, 0], sizes = [8, 512], strides = [1, 1]} : vector<8x1024xf32> to vector<8x512xf32>
    %182 = arith.addf %180, %181 : vector<8x512xf32>
    %183 = vector.extract_strided_slice %179 {offsets = [0, 512], sizes = [8, 512], strides = [1, 1]} : vector<8x1024xf32> to vector<8x512xf32>
    %184 = arith.addf %183, %4 : vector<8x512xf32>
    %185 = vector.extract_strided_slice %182 {offsets = [0, 0], sizes = [8, 256], strides = [1, 1]} : vector<8x512xf32> to vector<8x256xf32>
    %186 = arith.negf %185 : vector<8x256xf32>
    %187 = math.exp %186 : vector<8x256xf32>
    %cst_25 = arith.constant 1.000000e+00 : f32
    %188 = vector.broadcast %cst_25 : f32 to vector<8x256xf32>
    %189 = arith.addf %188, %187 : vector<8x256xf32>
    %190 = arith.divf %188, %189 : vector<8x256xf32>
    %191 = vector.extract_strided_slice %182 {offsets = [0, 256], sizes = [8, 128], strides = [1, 1]} : vector<8x512xf32> to vector<8x128xf32>
    %192 = math.tanh %191 : vector<8x128xf32>
    %193 = vector.extract_strided_slice %182 {offsets = [0, 384], sizes = [8, 128], strides = [1, 1]} : vector<8x512xf32> to vector<8x128xf32>
    %194 = arith.negf %193 : vector<8x128xf32>
    %195 = math.exp %194 : vector<8x128xf32>
    %cst_26 = arith.constant 1.000000e+00 : f32
    %196 = vector.broadcast %cst_26 : f32 to vector<8x128xf32>
    %197 = arith.addf %196, %195 : vector<8x128xf32>
    %198 = arith.divf %196, %197 : vector<8x128xf32>
    %199 = vector.extract_strided_slice %190 {offsets = [0, 0], sizes = [8, 128], strides = [1, 1]} : vector<8x256xf32> to vector<8x128xf32>
    %200 = vector.extract_strided_slice %190 {offsets = [0, 128], sizes = [8, 128], strides = [1, 1]} : vector<8x256xf32> to vector<8x128xf32>
    %201 = arith.mulf %200, %154 : vector<8x128xf32>
    %202 = arith.mulf %199, %192 : vector<8x128xf32>
    %203 = arith.addf %201, %202 : vector<8x128xf32>
    %204 = math.tanh %203 : vector<8x128xf32>
    %205 = arith.mulf %198, %204 : vector<8x128xf32>
    %206 = vector.extract_strided_slice %184 {offsets = [0, 0], sizes = [8, 256], strides = [1, 1]} : vector<8x512xf32> to vector<8x256xf32>
    %207 = arith.negf %206 : vector<8x256xf32>
    %208 = math.exp %207 : vector<8x256xf32>
    %cst_27 = arith.constant 1.000000e+00 : f32
    %209 = vector.broadcast %cst_27 : f32 to vector<8x256xf32>
    %210 = arith.addf %209, %208 : vector<8x256xf32>
    %211 = arith.divf %209, %210 : vector<8x256xf32>
    %212 = vector.extract_strided_slice %184 {offsets = [0, 256], sizes = [8, 128], strides = [1, 1]} : vector<8x512xf32> to vector<8x128xf32>
    %213 = math.tanh %212 : vector<8x128xf32>
    %214 = vector.extract_strided_slice %184 {offsets = [0, 384], sizes = [8, 128], strides = [1, 1]} : vector<8x512xf32> to vector<8x128xf32>
    %215 = arith.negf %214 : vector<8x128xf32>
    %216 = math.exp %215 : vector<8x128xf32>
    %cst_28 = arith.constant 1.000000e+00 : f32
    %217 = vector.broadcast %cst_28 : f32 to vector<8x128xf32>
    %218 = arith.addf %217, %216 : vector<8x128xf32>
    %219 = arith.divf %217, %218 : vector<8x128xf32>
    %220 = vector.extract_strided_slice %211 {offsets = [0, 0], sizes = [8, 128], strides = [1, 1]} : vector<8x256xf32> to vector<8x128xf32>
    %221 = vector.extract_strided_slice %211 {offsets = [0, 128], sizes = [8, 128], strides = [1, 1]} : vector<8x256xf32> to vector<8x128xf32>
    %222 = arith.mulf %221, %175 : vector<8x128xf32>
    %223 = arith.mulf %220, %213 : vector<8x128xf32>
    %224 = arith.addf %222, %223 : vector<8x128xf32>
    %225 = math.tanh %224 : vector<8x128xf32>
    %226 = arith.mulf %219, %225 : vector<8x128xf32>
    %227 = tpu.concatenate %205, %226 in 1 : vector<8x128xf32>, vector<8x128xf32> -> vector<8x256xf32>
    %cst_29 = arith.constant dense<0.000000e+00> : vector<8x1024xf32>
    %228 = tpu.matmul %227, %0, %cst_29 {dimension_numbers = #tpu.dot_dimension_numbers<[1], [0], [0], [1], [0, 0, 1, 1], [], []>} : vector<8x256xf32>, vector<256x1024xf32>, vector<8x1024xf32> -> vector<8x1024xf32>
    %229 = vector.extract_strided_slice %5 {offsets = [40, 0], sizes = [8, 512], strides = [1, 1]} : vector<64x512xf32> to vector<8x512xf32>
    %230 = vector.extract_strided_slice %228 {offsets = [0, 0], sizes = [8, 512], strides = [1, 1]} : vector<8x1024xf32> to vector<8x512xf32>
    %231 = arith.addf %229, %230 : vector<8x512xf32>
    %232 = vector.extract_strided_slice %228 {offsets = [0, 512], sizes = [8, 512], strides = [1, 1]} : vector<8x1024xf32> to vector<8x512xf32>
    %233 = arith.addf %232, %4 : vector<8x512xf32>
    %234 = vector.extract_strided_slice %231 {offsets = [0, 0], sizes = [8, 256], strides = [1, 1]} : vector<8x512xf32> to vector<8x256xf32>
    %235 = arith.negf %234 : vector<8x256xf32>
    %236 = math.exp %235 : vector<8x256xf32>
    %cst_30 = arith.constant 1.000000e+00 : f32
    %237 = vector.broadcast %cst_30 : f32 to vector<8x256xf32>
    %238 = arith.addf %237, %236 : vector<8x256xf32>
    %239 = arith.divf %237, %238 : vector<8x256xf32>
    %240 = vector.extract_strided_slice %231 {offsets = [0, 256], sizes = [8, 128], strides = [1, 1]} : vector<8x512xf32> to vector<8x128xf32>
    %241 = math.tanh %240 : vector<8x128xf32>
    %242 = vector.extract_strided_slice %231 {offsets = [0, 384], sizes = [8, 128], strides = [1, 1]} : vector<8x512xf32> to vector<8x128xf32>
    %243 = arith.negf %242 : vector<8x128xf32>
    %244 = math.exp %243 : vector<8x128xf32>
    %cst_31 = arith.constant 1.000000e+00 : f32
    %245 = vector.broadcast %cst_31 : f32 to vector<8x128xf32>
    %246 = arith.addf %245, %244 : vector<8x128xf32>
    %247 = arith.divf %245, %246 : vector<8x128xf32>
    %248 = vector.extract_strided_slice %239 {offsets = [0, 0], sizes = [8, 128], strides = [1, 1]} : vector<8x256xf32> to vector<8x128xf32>
    %249 = vector.extract_strided_slice %239 {offsets = [0, 128], sizes = [8, 128], strides = [1, 1]} : vector<8x256xf32> to vector<8x128xf32>
    %250 = arith.mulf %249, %203 : vector<8x128xf32>
    %251 = arith.mulf %248, %241 : vector<8x128xf32>
    %252 = arith.addf %250, %251 : vector<8x128xf32>
    %253 = math.tanh %252 : vector<8x128xf32>
    %254 = arith.mulf %247, %253 : vector<8x128xf32>
    %255 = vector.extract_strided_slice %233 {offsets = [0, 0], sizes = [8, 256], strides = [1, 1]} : vector<8x512xf32> to vector<8x256xf32>
    %256 = arith.negf %255 : vector<8x256xf32>
    %257 = math.exp %256 : vector<8x256xf32>
    %cst_32 = arith.constant 1.000000e+00 : f32
    %258 = vector.broadcast %cst_32 : f32 to vector<8x256xf32>
    %259 = arith.addf %258, %257 : vector<8x256xf32>
    %260 = arith.divf %258, %259 : vector<8x256xf32>
    %261 = vector.extract_strided_slice %233 {offsets = [0, 256], sizes = [8, 128], strides = [1, 1]} : vector<8x512xf32> to vector<8x128xf32>
    %262 = math.tanh %261 : vector<8x128xf32>
    %263 = vector.extract_strided_slice %233 {offsets = [0, 384], sizes = [8, 128], strides = [1, 1]} : vector<8x512xf32> to vector<8x128xf32>
    %264 = arith.negf %263 : vector<8x128xf32>
    %265 = math.exp %264 : vector<8x128xf32>
    %cst_33 = arith.constant 1.000000e+00 : f32
    %266 = vector.broadcast %cst_33 : f32 to vector<8x128xf32>
    %267 = arith.addf %266, %265 : vector<8x128xf32>
    %268 = arith.divf %266, %267 : vector<8x128xf32>
    %269 = vector.extract_strided_slice %260 {offsets = [0, 0], sizes = [8, 128], strides = [1, 1]} : vector<8x256xf32> to vector<8x128xf32>
    %270 = vector.extract_strided_slice %260 {offsets = [0, 128], sizes = [8, 128], strides = [1, 1]} : vector<8x256xf32> to vector<8x128xf32>
    %271 = arith.mulf %270, %224 : vector<8x128xf32>
    %272 = arith.mulf %269, %262 : vector<8x128xf32>
    %273 = arith.addf %271, %272 : vector<8x128xf32>
    %274 = math.tanh %273 : vector<8x128xf32>
    %275 = arith.mulf %268, %274 : vector<8x128xf32>
    %276 = tpu.concatenate %254, %275 in 1 : vector<8x128xf32>, vector<8x128xf32> -> vector<8x256xf32>
    %cst_34 = arith.constant dense<0.000000e+00> : vector<8x1024xf32>
    %277 = tpu.matmul %276, %0, %cst_34 {dimension_numbers = #tpu.dot_dimension_numbers<[1], [0], [0], [1], [0, 0, 1, 1], [], []>} : vector<8x256xf32>, vector<256x1024xf32>, vector<8x1024xf32> -> vector<8x1024xf32>
    %278 = vector.extract_strided_slice %5 {offsets = [48, 0], sizes = [8, 512], strides = [1, 1]} : vector<64x512xf32> to vector<8x512xf32>
    %279 = vector.extract_strided_slice %277 {offsets = [0, 0], sizes = [8, 512], strides = [1, 1]} : vector<8x1024xf32> to vector<8x512xf32>
    %280 = arith.addf %278, %279 : vector<8x512xf32>
    %281 = vector.extract_strided_slice %277 {offsets = [0, 512], sizes = [8, 512], strides = [1, 1]} : vector<8x1024xf32> to vector<8x512xf32>
    %282 = arith.addf %281, %4 : vector<8x512xf32>
    %283 = vector.extract_strided_slice %280 {offsets = [0, 0], sizes = [8, 256], strides = [1, 1]} : vector<8x512xf32> to vector<8x256xf32>
    %284 = arith.negf %283 : vector<8x256xf32>
    %285 = math.exp %284 : vector<8x256xf32>
    %cst_35 = arith.constant 1.000000e+00 : f32
    %286 = vector.broadcast %cst_35 : f32 to vector<8x256xf32>
    %287 = arith.addf %286, %285 : vector<8x256xf32>
    %288 = arith.divf %286, %287 : vector<8x256xf32>
    %289 = vector.extract_strided_slice %280 {offsets = [0, 256], sizes = [8, 128], strides = [1, 1]} : vector<8x512xf32> to vector<8x128xf32>
    %290 = math.tanh %289 : vector<8x128xf32>
    %291 = vector.extract_strided_slice %280 {offsets = [0, 384], sizes = [8, 128], strides = [1, 1]} : vector<8x512xf32> to vector<8x128xf32>
    %292 = arith.negf %291 : vector<8x128xf32>
    %293 = math.exp %292 : vector<8x128xf32>
    %cst_36 = arith.constant 1.000000e+00 : f32
    %294 = vector.broadcast %cst_36 : f32 to vector<8x128xf32>
    %295 = arith.addf %294, %293 : vector<8x128xf32>
    %296 = arith.divf %294, %295 : vector<8x128xf32>
    %297 = vector.extract_strided_slice %288 {offsets = [0, 0], sizes = [8, 128], strides = [1, 1]} : vector<8x256xf32> to vector<8x128xf32>
    %298 = vector.extract_strided_slice %288 {offsets = [0, 128], sizes = [8, 128], strides = [1, 1]} : vector<8x256xf32> to vector<8x128xf32>
    %299 = arith.mulf %298, %252 : vector<8x128xf32>
    %300 = arith.mulf %297, %290 : vector<8x128xf32>
    %301 = arith.addf %299, %300 : vector<8x128xf32>
    %302 = math.tanh %301 : vector<8x128xf32>
    %303 = arith.mulf %296, %302 : vector<8x128xf32>
    %304 = vector.extract_strided_slice %282 {offsets = [0, 0], sizes = [8, 256], strides = [1, 1]} : vector<8x512xf32> to vector<8x256xf32>
    %305 = arith.negf %304 : vector<8x256xf32>
    %306 = math.exp %305 : vector<8x256xf32>
    %cst_37 = arith.constant 1.000000e+00 : f32
    %307 = vector.broadcast %cst_37 : f32 to vector<8x256xf32>
    %308 = arith.addf %307, %306 : vector<8x256xf32>
    %309 = arith.divf %307, %308 : vector<8x256xf32>
    %310 = vector.extract_strided_slice %282 {offsets = [0, 256], sizes = [8, 128], strides = [1, 1]} : vector<8x512xf32> to vector<8x128xf32>
    %311 = math.tanh %310 : vector<8x128xf32>
    %312 = vector.extract_strided_slice %282 {offsets = [0, 384], sizes = [8, 128], strides = [1, 1]} : vector<8x512xf32> to vector<8x128xf32>
    %313 = arith.negf %312 : vector<8x128xf32>
    %314 = math.exp %313 : vector<8x128xf32>
    %cst_38 = arith.constant 1.000000e+00 : f32
    %315 = vector.broadcast %cst_38 : f32 to vector<8x128xf32>
    %316 = arith.addf %315, %314 : vector<8x128xf32>
    %317 = arith.divf %315, %316 : vector<8x128xf32>
    %318 = vector.extract_strided_slice %309 {offsets = [0, 0], sizes = [8, 128], strides = [1, 1]} : vector<8x256xf32> to vector<8x128xf32>
    %319 = vector.extract_strided_slice %309 {offsets = [0, 128], sizes = [8, 128], strides = [1, 1]} : vector<8x256xf32> to vector<8x128xf32>
    %320 = arith.mulf %319, %273 : vector<8x128xf32>
    %321 = arith.mulf %318, %311 : vector<8x128xf32>
    %322 = arith.addf %320, %321 : vector<8x128xf32>
    %323 = math.tanh %322 : vector<8x128xf32>
    %324 = arith.mulf %317, %323 : vector<8x128xf32>
    %325 = tpu.concatenate %303, %324 in 1 : vector<8x128xf32>, vector<8x128xf32> -> vector<8x256xf32>
    %cst_39 = arith.constant dense<0.000000e+00> : vector<8x1024xf32>
    %326 = tpu.matmul %325, %0, %cst_39 {dimension_numbers = #tpu.dot_dimension_numbers<[1], [0], [0], [1], [0, 0, 1, 1], [], []>} : vector<8x256xf32>, vector<256x1024xf32>, vector<8x1024xf32> -> vector<8x1024xf32>
    %327 = vector.extract_strided_slice %5 {offsets = [56, 0], sizes = [8, 512], strides = [1, 1]} : vector<64x512xf32> to vector<8x512xf32>
    %328 = vector.extract_strided_slice %326 {offsets = [0, 0], sizes = [8, 512], strides = [1, 1]} : vector<8x1024xf32> to vector<8x512xf32>
    %329 = arith.addf %327, %328 : vector<8x512xf32>
    %330 = vector.extract_strided_slice %326 {offsets = [0, 512], sizes = [8, 512], strides = [1, 1]} : vector<8x1024xf32> to vector<8x512xf32>
    %331 = arith.addf %330, %4 : vector<8x512xf32>
    %332 = vector.extract_strided_slice %329 {offsets = [0, 0], sizes = [8, 256], strides = [1, 1]} : vector<8x512xf32> to vector<8x256xf32>
    %333 = arith.negf %332 : vector<8x256xf32>
    %334 = math.exp %333 : vector<8x256xf32>
    %cst_40 = arith.constant 1.000000e+00 : f32
    %335 = vector.broadcast %cst_40 : f32 to vector<8x256xf32>
    %336 = arith.addf %335, %334 : vector<8x256xf32>
    %337 = arith.divf %335, %336 : vector<8x256xf32>
    %338 = vector.extract_strided_slice %329 {offsets = [0, 256], sizes = [8, 128], strides = [1, 1]} : vector<8x512xf32> to vector<8x128xf32>
    %339 = math.tanh %338 : vector<8x128xf32>
    %340 = vector.extract_strided_slice %329 {offsets = [0, 384], sizes = [8, 128], strides = [1, 1]} : vector<8x512xf32> to vector<8x128xf32>
    %341 = arith.negf %340 : vector<8x128xf32>
    %342 = math.exp %341 : vector<8x128xf32>
    %cst_41 = arith.constant 1.000000e+00 : f32
    %343 = vector.broadcast %cst_41 : f32 to vector<8x128xf32>
    %344 = arith.addf %343, %342 : vector<8x128xf32>
    %345 = arith.divf %343, %344 : vector<8x128xf32>
    %346 = vector.extract_strided_slice %337 {offsets = [0, 0], sizes = [8, 128], strides = [1, 1]} : vector<8x256xf32> to vector<8x128xf32>
    %347 = vector.extract_strided_slice %337 {offsets = [0, 128], sizes = [8, 128], strides = [1, 1]} : vector<8x256xf32> to vector<8x128xf32>
    %348 = arith.mulf %347, %301 : vector<8x128xf32>
    %349 = arith.mulf %346, %339 : vector<8x128xf32>
    %350 = arith.addf %348, %349 : vector<8x128xf32>
    %351 = math.tanh %350 : vector<8x128xf32>
    %352 = arith.mulf %345, %351 : vector<8x128xf32>
    %353 = vector.extract_strided_slice %331 {offsets = [0, 0], sizes = [8, 256], strides = [1, 1]} : vector<8x512xf32> to vector<8x256xf32>
    %354 = arith.negf %353 : vector<8x256xf32>
    %355 = math.exp %354 : vector<8x256xf32>
    %cst_42 = arith.constant 1.000000e+00 : f32
    %356 = vector.broadcast %cst_42 : f32 to vector<8x256xf32>
    %357 = arith.addf %356, %355 : vector<8x256xf32>
    %358 = arith.divf %356, %357 : vector<8x256xf32>
    %359 = vector.extract_strided_slice %331 {offsets = [0, 256], sizes = [8, 128], strides = [1, 1]} : vector<8x512xf32> to vector<8x128xf32>
    %360 = math.tanh %359 : vector<8x128xf32>
    %361 = vector.extract_strided_slice %331 {offsets = [0, 384], sizes = [8, 128], strides = [1, 1]} : vector<8x512xf32> to vector<8x128xf32>
    %362 = arith.negf %361 : vector<8x128xf32>
    %363 = math.exp %362 : vector<8x128xf32>
    %cst_43 = arith.constant 1.000000e+00 : f32
    %364 = vector.broadcast %cst_43 : f32 to vector<8x128xf32>
    %365 = arith.addf %364, %363 : vector<8x128xf32>
    %366 = arith.divf %364, %365 : vector<8x128xf32>
    %367 = vector.extract_strided_slice %358 {offsets = [0, 0], sizes = [8, 128], strides = [1, 1]} : vector<8x256xf32> to vector<8x128xf32>
    %368 = vector.extract_strided_slice %358 {offsets = [0, 128], sizes = [8, 128], strides = [1, 1]} : vector<8x256xf32> to vector<8x128xf32>
    %369 = arith.mulf %368, %322 : vector<8x128xf32>
    %370 = arith.mulf %367, %360 : vector<8x128xf32>
    %371 = arith.addf %369, %370 : vector<8x128xf32>
    %372 = math.tanh %371 : vector<8x128xf32>
    %373 = arith.mulf %366, %372 : vector<8x128xf32>
    %374 = tpu.concatenate %352, %373 in 1 : vector<8x128xf32>, vector<8x128xf32> -> vector<8x256xf32>
    %cst_44 = arith.constant dense<0.000000e+00> : vector<8x512xf32>
    %375 = tpu.matmul %374, %1, %cst_44 {dimension_numbers = #tpu.dot_dimension_numbers<[1], [0], [0], [1], [0, 0, 1, 1], [], []>} : vector<8x256xf32>, vector<256x512xf32>, vector<8x512xf32> -> vector<8x512xf32>
    %376 = arith.addf %375, %4 : vector<8x512xf32>
    %377 = vector.extract_strided_slice %376 {offsets = [0, 0], sizes = [8, 256], strides = [1, 1]} : vector<8x512xf32> to vector<8x256xf32>
    %378 = arith.negf %377 : vector<8x256xf32>
    %379 = math.exp %378 : vector<8x256xf32>
    %cst_45 = arith.constant 1.000000e+00 : f32
    %380 = vector.broadcast %cst_45 : f32 to vector<8x256xf32>
    %381 = arith.addf %380, %379 : vector<8x256xf32>
    %382 = arith.divf %380, %381 : vector<8x256xf32>
    %383 = vector.extract_strided_slice %376 {offsets = [0, 256], sizes = [8, 128], strides = [1, 1]} : vector<8x512xf32> to vector<8x128xf32>
    %384 = math.tanh %383 : vector<8x128xf32>
    %385 = vector.extract_strided_slice %376 {offsets = [0, 384], sizes = [8, 128], strides = [1, 1]} : vector<8x512xf32> to vector<8x128xf32>
    %386 = arith.negf %385 : vector<8x128xf32>
    %387 = math.exp %386 : vector<8x128xf32>
    %cst_46 = arith.constant 1.000000e+00 : f32
    %388 = vector.broadcast %cst_46 : f32 to vector<8x128xf32>
    %389 = arith.addf %388, %387 : vector<8x128xf32>
    %390 = arith.divf %388, %389 : vector<8x128xf32>
    %391 = vector.extract_strided_slice %382 {offsets = [0, 0], sizes = [8, 128], strides = [1, 1]} : vector<8x256xf32> to vector<8x128xf32>
    %392 = vector.extract_strided_slice %382 {offsets = [0, 128], sizes = [8, 128], strides = [1, 1]} : vector<8x256xf32> to vector<8x128xf32>
    %393 = arith.mulf %392, %371 : vector<8x128xf32>
    %394 = arith.mulf %391, %384 : vector<8x128xf32>
    %395 = arith.addf %393, %394 : vector<8x128xf32>
    %396 = math.tanh %395 : vector<8x128xf32>
    %397 = arith.mulf %390, %396 : vector<8x128xf32>
    %c0_47 = arith.constant 0 : index
    %c0_48 = arith.constant 0 : index
    %398 = vector.load %arg3[%c0_47, %c0_48] : memref<128x128xf32, #tpu.memory_space<vmem>>, vector<128x128xf32>
    %cst_49 = arith.constant dense<0.000000e+00> : vector<8x128xf32>
    %399 = tpu.matmul %397, %398, %cst_49 {dimension_numbers = #tpu.dot_dimension_numbers<[1], [0], [0], [1], [0, 0, 1, 1], [], []>} : vector<8x128xf32>, vector<128x128xf32>, vector<8x128xf32> -> vector<8x128xf32>
    %c0_50 = arith.constant 0 : index
    %c0_51 = arith.constant 0 : index
    %400 = vector.load %arg4[%c0_50, %c0_51] : memref<1x128xf32, #tpu.memory_space<vmem>>, vector<1x128xf32>
    %401 = vector.broadcast %400 : vector<1x128xf32> to vector<8x128xf32>
    %402 = arith.addf %399, %401 : vector<8x128xf32>
    %c0_52 = arith.constant 0 : index
    %c0_53 = arith.constant 0 : index
    %403 = vector.load %arg5[%c0_52, %c0_53] : memref<8x128xf32, #tpu.memory_space<vmem>>, vector<8x128xf32>
    tpu.vector_store %arg5[%c0_52, %c0_53], %402 {strides = array<i32>} : memref<8x128xf32, #tpu.memory_space<vmem>>, vector<8x128xf32>,
    return
  }
}

</mosaic_0001>

<llo_original>
// kernel: tpu_custom_call.1
$region0: #{tpu_custom_call.1}
  #allocation0 [shape = 'u32[]', space=smem, size = 0x4, offset = 0x4, fixed_abs, tag = 'smem constant byte address 0x4 - core index']
  #allocation1 [shape = 'u32[144,128]{1,0:T(1,128)}', space=vmem, size = 0x12000, scoped, tag = 'internal scratch']
  %s0 = inlined_call_operand.hbm [shape: f32[64,512], index: 0, kind: input, shape index: {}]
  %s1 = inlined_call_operand.hbm [shape: f32[256,1024], index: 1, kind: input, shape index: {}]
  %s2 = inlined_call_operand.hbm [shape: f32[1,512], index: 2, kind: input, shape index: {}]
  %s3 = inlined_call_operand.hbm [shape: f32[128,128], index: 3, kind: input, shape index: {}]
  %s4 = inlined_call_operand.vmem [shape: f32[1,128], index: 4, kind: input, shape index: {}]
  %s5 = inlined_call_operand.hbm [shape: f32[8,128], index: 5, kind: output, shape index: {}]
  %s6 = sld [smem:[#allocation0]]
  $region46: #{tpu_custom_call.1} parent=0
    _
  %s8 = ssub.s32 1, %s6
  %s9 = scalar_select 0, %s8, %s6
  $region1: #{tpu_custom_call.1} parent=0
    #allocation2 [shape = 'u8[131072]{0}', space=vmem, size = 0x20000, scoped, tag = 'input window, operand 0, single buffered']
    #allocation3 [shape = 's32[1]{0}', space=sflag, size = 0x4, scoped, tag = 'scoped memory for tpu_custom_call.1']
    #allocation4 [shape = 's32[1]{0}', space=sflag, size = 0x4, scoped, tag = 'scoped memory for tpu_custom_call.1']
    #allocation5 [shape = 'u8[1048576]{0}', space=vmem, size = 0x100000, scoped, tag = 'input window, operand 1, single buffered']
    #allocation6 [shape = 's32[1]{0}', space=sflag, size = 0x4, scoped, tag = 'scoped memory for tpu_custom_call.1']
    #allocation7 [shape = 'u8[2048]{0}', space=vmem, size = 0x800, scoped, tag = 'input window, operand 2, single buffered']
    #allocation8 [shape = 'u8[65536]{0}', space=vmem, size = 0x10000, scoped, tag = 'input window, operand 3, single buffered']
    #allocation9 [shape = 's32[1]{0}', space=sflag, size = 0x4, scoped, tag = 'scoped memory for tpu_custom_call.1']
    #allocation10 [shape = 'u8[4096]{0}', space=vmem, size = 0x1000, scoped, tag = 'output window, operand 0, single buffered']
    %10 = vsyncpa [#allocation3], 0
    %11 = vsyncpa [#allocation6], 0
    %12 = vsyncpa [#allocation9], 0
    %13 = vsyncpa [#allocation4], 0
    // Predicated region
    $region2: #{tpu_custom_call.1} parent=1 // pred_check
      _
    $region3: #{tpu_custom_call.1} parent=1 // pred_check_branch
      %15 = sbr.rel (0) target = $region5
    $region4: #{tpu_custom_call.1} parent=1 // pred_region
      %s17 = ssub.s32 4096, 4096
      %18 = vsyncadd [#allocation3], %s17
      %s19 = sshll.u32 [#allocation2], 4
      %s20 = int_to_ptr.vmem [resolvable:$true] %s19
      %25 = dma.hbm_to_vmem [thread:$0]  %s0, 4096, %s20, [#allocation3], 512, 512, 32
    $region5: #{tpu_custom_call.1} parent=1 // pred_fallthru
      _
    // Predicated region
    $region6: #{tpu_custom_call.1} parent=1 // pred_check
      _
    $region7: #{tpu_custom_call.1} parent=1 // pred_check_branch
      %27 = sbr.rel (0) target = $region9
    $region8: #{tpu_custom_call.1} parent=1 // pred_region
      %s29 = ssub.s32 32768, 32768
      %30 = vsyncadd [#allocation6], %s29
      %s31 = sshll.u32 [#allocation5], 4
      %s32 = int_to_ptr.vmem [resolvable:$true] %s31
      %37 = dma.hbm_to_vmem [thread:$0]  %s1, 32768, %s32, [#allocation6], 1024, 1024, 64
    $region9: #{tpu_custom_call.1} parent=1 // pred_fallthru
      _
    // Predicated region
    $region10: #{tpu_custom_call.1} parent=1 // pred_check
      _
    $region11: #{tpu_custom_call.1} parent=1 // pred_check_branch
      %39 = sbr.rel (0) target = $region13
    $region12: #{tpu_custom_call.1} parent=1 // pred_region
      %s41 = ssub.s32 64, 64
      %42 = vsyncadd [#allocation6], %s41
      %s44 = sshll.u32 [#allocation7], 4
      %s45 = int_to_ptr.vmem [resolvable:$true] %s44
      %47 = dma.hbm_to_vmem [thread:$0]  %s2, 64, %s45, [#allocation6]
    $region13: #{tpu_custom_call.1} parent=1 // pred_fallthru
      _
    // Predicated region
    $region14: #{tpu_custom_call.1} parent=1 // pred_check
      _
    $region15: #{tpu_custom_call.1} parent=1 // pred_check_branch
      %49 = sbr.rel (0) target = $region17
    $region16: #{tpu_custom_call.1} parent=1 // pred_region
      %s51 = ssub.s32 2048, 2048
      %52 = vsyncadd [#allocation9], %s51
      %s53 = sshll.u32 [#allocation8], 4
      %s54 = int_to_ptr.vmem [resolvable:$true] %s53
      %59 = dma.hbm_to_vmem [thread:$0]  %s3, 2048, %s54, [#allocation9], 128, 128, 8
    $region17: #{tpu_custom_call.1} parent=1 // pred_fallthru
      _
    // Predicated region
    $region18: #{tpu_custom_call.1} parent=1 // pred_check
      _
    $region19: #{tpu_custom_call.1} parent=1 // pred_check_branch
      %61 = sbr.rel (0) target = $region21
    $region20: #{tpu_custom_call.1} parent=1 // pred_region
      _
    $region21: #{tpu_custom_call.1} parent=1 // pred_fallthru
      _
    // Predicated region
    $region22: #{tpu_custom_call.1} parent=1 // pred_check
      _
    $region23: #{tpu_custom_call.1} parent=1 // pred_check_branch
      %63 = sbr.rel (0) target = $region25
    $region24: #{tpu_custom_call.1} parent=1 // pred_region
      %64 = dma.done [#allocation3], 4096
    $region25: #{tpu_custom_call.1} parent=1 // pred_fallthru
      _
    // Predicated region
    $region26: #{tpu_custom_call.1} parent=1 // pred_check
      _
    $region27: #{tpu_custom_call.1} parent=1 // pred_check_branch
      %66 = sbr.rel (0) target = $region29
    $region28: #{tpu_custom_call.1} parent=1 // pred_region
      %67 = dma.done [#allocation6], 32768
    $region29: #{tpu_custom_call.1} parent=1 // pred_fallthru
      _
    // Predicated region
    $region30: #{tpu_custom_call.1} parent=1 // pred_check
      _
    $region31: #{tpu_custom_call.1} parent=1 // pred_check_branch
      %69 = sbr.rel (0) target = $region33
    $region32: #{tpu_custom_call.1} parent=1 // pred_region
      %70 = dma.done [#allocation6], 64
    $region33: #{tpu_custom_call.1} parent=1 // pred_fallthru
      _
    // Predicated region
    $region34: #{tpu_custom_call.1} parent=1 // pred_check
      _
    $region35: #{tpu_custom_call.1} parent=1 // pred_check_branch
      %72 = sbr.rel (0) target = $region37
    $region36: #{tpu_custom_call.1} parent=1 // pred_region
      %73 = dma.done [#allocation9], 2048
    $region37: #{tpu_custom_call.1} parent=1 // pred_fallthru
      _
    %v74 = vld [vmem:[#allocation5] sm:$0xff]
    %v75 = vld [vmem:[#allocation5 + $0x8] sm:$0xff]
    %v76 = vld [vmem:[#allocation5 + $0x10] sm:$0xff]
    %v77 = vld [vmem:[#allocation5 + $0x18] sm:$0xff]
    %v78 = vld [vmem:[#allocation5 + $0x20] sm:$0xff]
    %v79 = vld [vmem:[#allocation5 + $0x28] sm:$0xff]
    %v80 = vld [vmem:[#allocation5 + $0x30] sm:$0xff]
    %v81 = vld [vmem:[#allocation5 + $0x38] sm:$0xff]
    %v82 = vld [vmem:[#allocation5 + $0x40] sm:$0xff]
    %v83 = vld [vmem:[#allocation5 + $0x48] sm:$0xff]
    %v84 = vld [vmem:[#allocation5 + $0x50] sm:$0xff]
    %v85 = vld [vmem:[#allocation5 + $0x58] sm:$0xff]
    %v86 = vld [vmem:[#allocation5 + $0x60] sm:$0xff]
    %v87 = vld [vmem:[#allocation5 + $0x68] sm:$0xff]
    %v88 = vld [vmem:[#allocation5 + $0x70] sm:$0xff]
    %v89 = vld [vmem:[#allocation5 + $0x78] sm:$0xff]
    %v90 = vld [vmem:[#allocation5 + $0x80] sm:$0xff]
    %v91 = vld [vmem:[#allocation5 + $0x88] sm:$0xff]
    %v92 = vld [vmem:[#allocation5 + $0x90] sm:$0xff]
    %v93 = vld [vmem:[#allocation5 + $0x98] sm:$0xff]
    %v94 = vld [vmem:[#allocation5 + $0xa0] sm:$0xff]
    %v95 = vld [vmem:[#allocation5 + $0xa8] sm:$0xff]
    %v96 = vld [vmem:[#allocation5 + $0xb0] sm:$0xff]
    %v97 = vld [vmem:[#allocation5 + $0xb8] sm:$0xff]
    %v98 = vld [vmem:[#allocation5 + $0xc0] sm:$0xff]
    %v99 = vld [vmem:[#allocation5 + $0xc8] sm:$0xff]
    %v100 = vld [vmem:[#allocation5 + $0xd0] sm:$0xff]
    %v101 = vld [vmem:[#allocation5 + $0xd8] sm:$0xff]
    %v102 = vld [vmem:[#allocation5 + $0xe0] sm:$0xff]
    %v103 = vld [vmem:[#allocation5 + $0xe8] sm:$0xff]
    %v104 = vld [vmem:[#allocation5 + $0xf0] sm:$0xff]
    %v105 = vld [vmem:[#allocation5 + $0xf8] sm:$0xff]
    %v106 = vld [vmem:[#allocation5 + $0x100] sm:$0xff]
    %v107 = vld [vmem:[#allocation5 + $0x108] sm:$0xff]
    %v108 = vld [vmem:[#allocation5 + $0x110] sm:$0xff]
    %v109 = vld [vmem:[#allocation5 + $0x118] sm:$0xff]
    %v110 = vld [vmem:[#allocation5 + $0x120] sm:$0xff]
    %v111 = vld [vmem:[#allocation5 + $0x128] sm:$0xff]
    %v112 = vld [vmem:[#allocation5 + $0x130] sm:$0xff]
    %v113 = vld [vmem:[#allocation5 + $0x138] sm:$0xff]
    %v114 = vld [vmem:[#allocation5 + $0x140] sm:$0xff]
    %v115 = vld [vmem:[#allocation5 + $0x148] sm:$0xff]
    %v116 = vld [vmem:[#allocation5 + $0x150] sm:$0xff]
    %v117 = vld [vmem:[#allocation5 + $0x158] sm:$0xff]
    %v118 = vld [vmem:[#allocation5 + $0x160] sm:$0xff]
    %v119 = vld [vmem:[#allocation5 + $0x168] sm:$0xff]
    %v120 = vld [vmem:[#allocation5 + $0x170] sm:$0xff]
    %v121 = vld [vmem:[#allocation5 + $0x178] sm:$0xff]
    %v122 = vld [vmem:[#allocation5 + $0x180] sm:$0xff]
    %v123 = vld [vmem:[#allocation5 + $0x188] sm:$0xff]
    %v124 = vld [vmem:[#allocation5 + $0x190] sm:$0xff]
    %v125 = vld [vmem:[#allocation5 + $0x198] sm:$0xff]
    %v126 = vld [vmem:[#allocation5 + $0x1a0] sm:$0xff]
    %v127 = vld [vmem:[#allocation5 + $0x1a8] sm:$0xff]
    %v128 = vld [vmem:[#allocation5 + $0x1b0] sm:$0xff]
    %v129 = vld [vmem:[#allocation5 + $0x1b8] sm:$0xff]
    %v130 = vld [vmem:[#allocation5 + $0x1c0] sm:$0xff]
    %v131 = vld [vmem:[#allocation5 + $0x1c8] sm:$0xff]
    %v132 = vld [vmem:[#allocation5 + $0x1d0] sm:$0xff]
    %v133 = vld [vmem:[#allocation5 + $0x1d8] sm:$0xff]
    %v134 = vld [vmem:[#allocation5 + $0x1e0] sm:$0xff]
    %v135 = vld [vmem:[#allocation5 + $0x1e8] sm:$0xff]
    %v136 = vld [vmem:[#allocation5 + $0x1f0] sm:$0xff]
    %v137 = vld [vmem:[#allocation5 + $0x1f8] sm:$0xff]
    %v138 = vld [vmem:[#allocation5 + $0x200] sm:$0xff]
    %v139 = vld [vmem:[#allocation5 + $0x208] sm:$0xff]
    %v140 = vld [vmem:[#allocation5 + $0x210] sm:$0xff]
    %v141 = vld [vmem:[#allocation5 + $0x218] sm:$0xff]
    %v142 = vld [vmem:[#allocation5 + $0x220] sm:$0xff]
    %v143 = vld [vmem:[#allocation5 + $0x228] sm:$0xff]
    %v144 = vld [vmem:[#allocation5 + $0x230] sm:$0xff]
    %v145 = vld [vmem:[#allocation5 + $0x238] sm:$0xff]
    %v146 = vld [vmem:[#allocation5 + $0x240] sm:$0xff]
    %v147 = vld [vmem:[#allocation5 + $0x248] sm:$0xff]
    %v148 = vld [vmem:[#allocation5 + $0x250] sm:$0xff]
    %v149 = vld [vmem:[#allocation5 + $0x258] sm:$0xff]
    %v150 = vld [vmem:[#allocation5 + $0x260] sm:$0xff]
    %v151 = vld [vmem:[#allocation5 + $0x268] sm:$0xff]
    %v152 = vld [vmem:[#allocation5 + $0x270] sm:$0xff]
    %v153 = vld [vmem:[#allocation5 + $0x278] sm:$0xff]
    %v154 = vld [vmem:[#allocation5 + $0x280] sm:$0xff]
    %v155 = vld [vmem:[#allocation5 + $0x288] sm:$0xff]
    %v156 = vld [vmem:[#allocation5 + $0x290] sm:$0xff]
    %v157 = vld [vmem:[#allocation5 + $0x298] sm:$0xff]
    %v158 = vld [vmem:[#allocation5 + $0x2a0] sm:$0xff]
    %v159 = vld [vmem:[#allocation5 + $0x2a8] sm:$0xff]
    %v160 = vld [vmem:[#allocation5 + $0x2b0] sm:$0xff]
    %v161 = vld [vmem:[#allocation5 + $0x2b8] sm:$0xff]
    %v162 = vld [vmem:[#allocation5 + $0x2c0] sm:$0xff]
    %v163 = vld [vmem:[#allocation5 + $0x2c8] sm:$0xff]
    %v164 = vld [vmem:[#allocation5 + $0x2d0] sm:$0xff]
    %v165 = vld [vmem:[#allocation5 + $0x2d8] sm:$0xff]
    %v166 = vld [vmem:[#allocation5 + $0x2e0] sm:$0xff]
    %v167 = vld [vmem:[#allocation5 + $0x2e8] sm:$0xff]
    %v168 = vld [vmem:[#allocation5 + $0x2f0] sm:$0xff]
    %v169 = vld [vmem:[#allocation5 + $0x2f8] sm:$0xff]
    %v170 = vld [vmem:[#allocation5 + $0x300] sm:$0xff]
    %v171 = vld [vmem:[#allocation5 + $0x308] sm:$0xff]
    %v172 = vld [vmem:[#allocation5 + $0x310] sm:$0xff]
    %v173 = vld [vmem:[#allocation5 + $0x318] sm:$0xff]
    %v174 = vld [vmem:[#allocation5 + $0x320] sm:$0xff]
    %v175 = vld [vmem:[#allocation5 + $0x328] sm:$0xff]
    %v176 = vld [vmem:[#allocation5 + $0x330] sm:$0xff]
    %v177 = vld [vmem:[#allocation5 + $0x338] sm:$0xff]
    %v178 = vld [vmem:[#allocation5 + $0x340] sm:$0xff]
    %v179 = vld [vmem:[#allocation5 + $0x348] sm:$0xff]
    %v180 = vld [vmem:[#allocation5 + $0x350] sm:$0xff]
    %v181 = vld [vmem:[#allocation5 + $0x358] sm:$0xff]
    %v182 = vld [vmem:[#allocation5 + $0x360] sm:$0xff]
    %v183 = vld [vmem:[#allocation5 + $0x368] sm:$0xff]
    %v184 = vld [vmem:[#allocation5 + $0x370] sm:$0xff]
    %v185 = vld [vmem:[#allocation5 + $0x378] sm:$0xff]
    %v186 = vld [vmem:[#allocation5 + $0x380] sm:$0xff]
    %v187 = vld [vmem:[#allocation5 + $0x388] sm:$0xff]
    %v188 = vld [vmem:[#allocation5 + $0x390] sm:$0xff]
    %v189 = vld [vmem:[#allocation5 + $0x398] sm:$0xff]
    %v190 = vld [vmem:[#allocation5 + $0x3a0] sm:$0xff]
    %v191 = vld [vmem:[#allocation5 + $0x3a8] sm:$0xff]
    %v192 = vld [vmem:[#allocation5 + $0x3b0] sm:$0xff]
    %v193 = vld [vmem:[#allocation5 + $0x3b8] sm:$0xff]
    %v194 = vld [vmem:[#allocation5 + $0x3c0] sm:$0xff]
    %v195 = vld [vmem:[#allocation5 + $0x3c8] sm:$0xff]
    %v196 = vld [vmem:[#allocation5 + $0x3d0] sm:$0xff]
    %v197 = vld [vmem:[#allocation5 + $0x3d8] sm:$0xff]
    %v198 = vld [vmem:[#allocation5 + $0x3e0] sm:$0xff]
    %v199 = vld [vmem:[#allocation5 + $0x3e8] sm:$0xff]
    %v200 = vld [vmem:[#allocation5 + $0x3f0] sm:$0xff]
    %v201 = vld [vmem:[#allocation5 + $0x3f8] sm:$0xff]
    %v202 = vld [vmem:[#allocation5 + $0x400] sm:$0xff]
    %v203 = vld [vmem:[#allocation5 + $0x408] sm:$0xff]
    %v204 = vld [vmem:[#allocation5 + $0x410] sm:$0xff]
    %v205 = vld [vmem:[#allocation5 + $0x418] sm:$0xff]
    %v206 = vld [vmem:[#allocation5 + $0x420] sm:$0xff]
    %v207 = vld [vmem:[#allocation5 + $0x428] sm:$0xff]
    %v208 = vld [vmem:[#allocation5 + $0x430] sm:$0xff]
    %v209 = vld [vmem:[#allocation5 + $0x438] sm:$0xff]
    %v210 = vld [vmem:[#allocation5 + $0x440] sm:$0xff]
    %v211 = vld [vmem:[#allocation5 + $0x448] sm:$0xff]
    %v212 = vld [vmem:[#allocation5 + $0x450] sm:$0xff]
    %v213 = vld [vmem:[#allocation5 + $0x458] sm:$0xff]
    %v214 = vld [vmem:[#allocation5 + $0x460] sm:$0xff]
    %v215 = vld [vmem:[#allocation5 + $0x468] sm:$0xff]
    %v216 = vld [vmem:[#allocation5 + $0x470] sm:$0xff]
    %v217 = vld [vmem:[#allocation5 + $0x478] sm:$0xff]
    %v218 = vld [vmem:[#allocation5 + $0x480] sm:$0xff]
    %v219 = vld [vmem:[#allocation5 + $0x488] sm:$0xff]
    %v220 = vld [vmem:[#allocation5 + $0x490] sm:$0xff]
    %v221 = vld [vmem:[#allocation5 + $0x498] sm:$0xff]
    %v222 = vld [vmem:[#allocation5 + $0x4a0] sm:$0xff]
    %v223 = vld [vmem:[#allocation5 + $0x4a8] sm:$0xff]
    %v224 = vld [vmem:[#allocation5 + $0x4b0] sm:$0xff]
    %v225 = vld [vmem:[#allocation5 + $0x4b8] sm:$0xff]
    %v226 = vld [vmem:[#allocation5 + $0x4c0] sm:$0xff]
    %v227 = vld [vmem:[#allocation5 + $0x4c8] sm:$0xff]
    %v228 = vld [vmem:[#allocation5 + $0x4d0] sm:$0xff]
    %v229 = vld [vmem:[#allocation5 + $0x4d8] sm:$0xff]
    %v230 = vld [vmem:[#allocation5 + $0x4e0] sm:$0xff]
    %v231 = vld [vmem:[#allocation5 + $0x4e8] sm:$0xff]
    %v232 = vld [vmem:[#allocation5 + $0x4f0] sm:$0xff]
    %v233 = vld [vmem:[#allocation5 + $0x4f8] sm:$0xff]
    %v234 = vld [vmem:[#allocation5 + $0x500] sm:$0xff]
    %v235 = vld [vmem:[#allocation5 + $0x508] sm:$0xff]
    %v236 = vld [vmem:[#allocation5 + $0x510] sm:$0xff]
    %v237 = vld [vmem:[#allocation5 + $0x518] sm:$0xff]
    %v238 = vld [vmem:[#allocation5 + $0x520] sm:$0xff]
    %v239 = vld [vmem:[#allocation5 + $0x528] sm:$0xff]
    %v240 = vld [vmem:[#allocation5 + $0x530] sm:$0xff]
    %v241 = vld [vmem:[#allocation5 + $0x538] sm:$0xff]
    %v242 = vld [vmem:[#allocation5 + $0x540] sm:$0xff]
    %v243 = vld [vmem:[#allocation5 + $0x548] sm:$0xff]
    %v244 = vld [vmem:[#allocation5 + $0x550] sm:$0xff]
    %v245 = vld [vmem:[#allocation5 + $0x558] sm:$0xff]
    %v246 = vld [vmem:[#allocation5 + $0x560] sm:$0xff]
    %v247 = vld [vmem:[#allocation5 + $0x568] sm:$0xff]
    %v248 = vld [vmem:[#allocation5 + $0x570] sm:$0xff]
    %v249 = vld [vmem:[#allocation5 + $0x578] sm:$0xff]
    %v250 = vld [vmem:[#allocation5 + $0x580] sm:$0xff]
    %v251 = vld [vmem:[#allocation5 + $0x588] sm:$0xff]
    %v252 = vld [vmem:[#allocation5 + $0x590] sm:$0xff]
    %v253 = vld [vmem:[#allocation5 + $0x598] sm:$0xff]
    %v254 = vld [vmem:[#allocation5 + $0x5a0] sm:$0xff]
    %v255 = vld [vmem:[#allocation5 + $0x5a8] sm:$0xff]
    %v256 = vld [vmem:[#allocation5 + $0x5b0] sm:$0xff]
    %v257 = vld [vmem:[#allocation5 + $0x5b8] sm:$0xff]
    %v258 = vld [vmem:[#allocation5 + $0x5c0] sm:$0xff]
    %v259 = vld [vmem:[#allocation5 + $0x5c8] sm:$0xff]
    %v260 = vld [vmem:[#allocation5 + $0x5d0] sm:$0xff]
    %v261 = vld [vmem:[#allocation5 + $0x5d8] sm:$0xff]
    %v262 = vld [vmem:[#allocation5 + $0x5e0] sm:$0xff]
    %v263 = vld [vmem:[#allocation5 + $0x5e8] sm:$0xff]
    %v264 = vld [vmem:[#allocation5 + $0x5f0] sm:$0xff]
    %v265 = vld [vmem:[#allocation5 + $0x5f8] sm:$0xff]
    %v266 = vld [vmem:[#allocation5 + $0x600] sm:$0xff]
    %v267 = vld [vmem:[#allocation5 + $0x608] sm:$0xff]
    %v268 = vld [vmem:[#allocation5 + $0x610] sm:$0xff]
    %v269 = vld [vmem:[#allocation5 + $0x618] sm:$0xff]
    %v270 = vld [vmem:[#allocation5 + $0x620] sm:$0xff]
    %v271 = vld [vmem:[#allocation5 + $0x628] sm:$0xff]
    %v272 = vld [vmem:[#allocation5 + $0x630] sm:$0xff]
    %v273 = vld [vmem:[#allocation5 + $0x638] sm:$0xff]
    %v274 = vld [vmem:[#allocation5 + $0x640] sm:$0xff]
    %v275 = vld [vmem:[#allocation5 + $0x648] sm:$0xff]
    %v276 = vld [vmem:[#allocation5 + $0x650] sm:$0xff]
    %v277 = vld [vmem:[#allocation5 + $0x658] sm:$0xff]
    %v278 = vld [vmem:[#allocation5 + $0x660] sm:$0xff]
    %v279 = vld [vmem:[#allocation5 + $0x668] sm:$0xff]
    %v280 = vld [vmem:[#allocation5 + $0x670] sm:$0xff]
    %v281 = vld [vmem:[#allocation5 + $0x678] sm:$0xff]
    %v282 = vld [vmem:[#allocation5 + $0x680] sm:$0xff]
    %v283 = vld [vmem:[#allocation5 + $0x688] sm:$0xff]
    %v284 = vld [vmem:[#allocation5 + $0x690] sm:$0xff]
    %v285 = vld [vmem:[#allocation5 + $0x698] sm:$0xff]
    %v286 = vld [vmem:[#allocation5 + $0x6a0] sm:$0xff]
    %v287 = vld [vmem:[#allocation5 + $0x6a8] sm:$0xff]
    %v288 = vld [vmem:[#allocation5 + $0x6b0] sm:$0xff]
    %v289 = vld [vmem:[#allocation5 + $0x6b8] sm:$0xff]
    %v290 = vld [vmem:[#allocation5 + $0x6c0] sm:$0xff]
    %v291 = vld [vmem:[#allocation5 + $0x6c8] sm:$0xff]
    %v292 = vld [vmem:[#allocation5 + $0x6d0] sm:$0xff]
    %v293 = vld [vmem:[#allocation5 + $0x6d8] sm:$0xff]
    %v294 = vld [vmem:[#allocation5 + $0x6e0] sm:$0xff]
    %v295 = vld [vmem:[#allocation5 + $0x6e8] sm:$0xff]
    %v296 = vld [vmem:[#allocation5 + $0x6f0] sm:$0xff]
    %v297 = vld [vmem:[#allocation5 + $0x6f8] sm:$0xff]
    %v298 = vld [vmem:[#allocation5 + $0x700] sm:$0xff]
    %v299 = vld [vmem:[#allocation5 + $0x708] sm:$0xff]
    %v300 = vld [vmem:[#allocation5 + $0x710] sm:$0xff]
    %v301 = vld [vmem:[#allocation5 + $0x718] sm:$0xff]
    %v302 = vld [vmem:[#allocation5 + $0x720] sm:$0xff]
    %v303 = vld [vmem:[#allocation5 + $0x728] sm:$0xff]
    %v304 = vld [vmem:[#allocation5 + $0x730] sm:$0xff]
    %v305 = vld [vmem:[#allocation5 + $0x738] sm:$0xff]
    %v306 = vld [vmem:[#allocation5 + $0x740] sm:$0xff]
    %v307 = vld [vmem:[#allocation5 + $0x748] sm:$0xff]
    %v308 = vld [vmem:[#allocation5 + $0x750] sm:$0xff]
    %v309 = vld [vmem:[#allocation5 + $0x758] sm:$0xff]
    %v310 = vld [vmem:[#allocation5 + $0x760] sm:$0xff]
    %v311 = vld [vmem:[#allocation5 + $0x768] sm:$0xff]
    %v312 = vld [vmem:[#allocation5 + $0x770] sm:$0xff]
    %v313 = vld [vmem:[#allocation5 + $0x778] sm:$0xff]
    %v314 = vld [vmem:[#allocation5 + $0x780] sm:$0xff]
    %v315 = vld [vmem:[#allocation5 + $0x788] sm:$0xff]
    %v316 = vld [vmem:[#allocation5 + $0x790] sm:$0xff]
    %v317 = vld [vmem:[#allocation5 + $0x798] sm:$0xff]
    %v318 = vld [vmem:[#allocation5 + $0x7a0] sm:$0xff]
    %v319 = vld [vmem:[#allocation5 + $0x7a8] sm:$0xff]
    %v320 = vld [vmem:[#allocation5 + $0x7b0] sm:$0xff]
    %v321 = vld [vmem:[#allocation5 + $0x7b8] sm:$0xff]
    %v322 = vld [vmem:[#allocation5 + $0x7c0] sm:$0xff]
    %v323 = vld [vmem:[#allocation5 + $0x7c8] sm:$0xff]
    %v324 = vld [vmem:[#allocation5 + $0x7d0] sm:$0xff]
    %v325 = vld [vmem:[#allocation5 + $0x7d8] sm:$0xff]
    %v326 = vld [vmem:[#allocation5 + $0x7e0] sm:$0xff]
    %v327 = vld [vmem:[#allocation5 + $0x7e8] sm:$0xff]
    %v328 = vld [vmem:[#allocation5 + $0x7f0] sm:$0xff]
    %v329 = vld [vmem:[#allocation5 + $0x7f8] sm:$0xff]
    %v330 = vld [vmem:[#allocation7] sm:$0xf]
    %v332 = vlaneseq
    %v333 = vshrl.u32 %v332, 7
    %v334 = vsub.s32 0, %v333
    %v335 = vrot.slane %v330, %v334
    %v336 = vlaneseq
    %v337 = vshrl.u32 %v336, 7
    %v338 = vsub.s32 1, %v337
    %v339 = vrot.slane %v330, %v338
    %v340 = vlaneseq
    %v341 = vshrl.u32 %v340, 7
    %v342 = vsub.s32 2, %v341
    %v343 = vrot.slane %v330, %v342
    %v344 = vlaneseq
    %v345 = vshrl.u32 %v344, 7
    %v346 = vsub.s32 3, %v345
    %v347 = vrot.slane %v330, %v346
    %v352 = vld [vmem:[#allocation2] sm:$0xff]
    %v353 = vld [vmem:[#allocation2 + $0x8] sm:$0xff]
    %v354 = vld [vmem:[#allocation2 + $0x10] sm:$0xff]
    %v355 = vld [vmem:[#allocation2 + $0x18] sm:$0xff]
    %v356 = vld [vmem:[#allocation2 + $0x20] sm:$0xff]
    %v357 = vld [vmem:[#allocation2 + $0x28] sm:$0xff]
    %v358 = vld [vmem:[#allocation2 + $0x30] sm:$0xff]
    %v359 = vld [vmem:[#allocation2 + $0x38] sm:$0xff]
    %v360 = vld [vmem:[#allocation2 + $0x40] sm:$0xff]
    %v361 = vld [vmem:[#allocation2 + $0x48] sm:$0xff]
    %v362 = vld [vmem:[#allocation2 + $0x50] sm:$0xff]
    %v363 = vld [vmem:[#allocation2 + $0x58] sm:$0xff]
    %v364 = vld [vmem:[#allocation2 + $0x60] sm:$0xff]
    %v365 = vld [vmem:[#allocation2 + $0x68] sm:$0xff]
    %v366 = vld [vmem:[#allocation2 + $0x70] sm:$0xff]
    %v367 = vld [vmem:[#allocation2 + $0x78] sm:$0xff]
    %v368 = vld [vmem:[#allocation2 + $0x80] sm:$0xff]
    %v369 = vld [vmem:[#allocation2 + $0x88] sm:$0xff]
    %v370 = vld [vmem:[#allocation2 + $0x90] sm:$0xff]
    %v371 = vld [vmem:[#allocation2 + $0x98] sm:$0xff]
    %v372 = vld [vmem:[#allocation2 + $0xa0] sm:$0xff]
    %v373 = vld [vmem:[#allocation2 + $0xa8] sm:$0xff]
    %v374 = vld [vmem:[#allocation2 + $0xb0] sm:$0xff]
    %v375 = vld [vmem:[#allocation2 + $0xb8] sm:$0xff]
    %v376 = vld [vmem:[#allocation2 + $0xc0] sm:$0xff]
    %v377 = vld [vmem:[#allocation2 + $0xc8] sm:$0xff]
    %v378 = vld [vmem:[#allocation2 + $0xd0] sm:$0xff]
    %v379 = vld [vmem:[#allocation2 + $0xd8] sm:$0xff]
    %v380 = vld [vmem:[#allocation2 + $0xe0] sm:$0xff]
    %v381 = vld [vmem:[#allocation2 + $0xe8] sm:$0xff]
    %v382 = vld [vmem:[#allocation2 + $0xf0] sm:$0xff]
    %v383 = vld [vmem:[#allocation2 + $0xf8] sm:$0xff]
    %v384 = vxor.u32 %v352, 2147483648
    %v385 = vxor.u32 %v353, 2147483648
    %v386 = vmul.f32 %v384, 1.442695
    %v387 = vpow.pop %v386
    %v388 = vmul.f32 %v385, 1.442695
    %v389 = vpow.pop %v388
    %v390 = vadd.f32 %v387, 1.0
    %v391 = vadd.f32 %v389, 1.0
    %v392 = vrcp.pop %v390
    %v393 = vmul.f32 1.0, %v392
    %v394 = vrcp.pop %v391
    %v395 = vmul.f32 1.0, %v394
    %v396 = vtanh.pop %v354
    %v397 = vxor.u32 %v355, 2147483648
    %v398 = vmul.f32 %v397, 1.442695
    %v399 = vpow.pop %v398
    %v400 = vadd.f32 %v399, 1.0
    %v401 = vrcp.pop %v400
    %v402 = vmul.f32 1.0, %v401
    %v403 = vmul.f32 %v395, 0.0
    %v404 = vmul.f32 %v393, %v396
    %v405 = vadd.f32 %v403, %v404
    %v406 = vtanh.pop %v405
    %v407 = vmul.f32 %v402, %v406
    %408 = vmatprep.subr.mxu0 %v195
    %409 = vmatpush1.msra.mxu0 %v194
    %410 = vmatprep.subr.mxu0 %v187
    %411 = vmatpush1.msra.mxu0 %v186
    %412 = vmatprep.subr.mxu0 %v179
    %413 = vmatpush1.msra.mxu0 %v178
    %414 = vmatprep.subr.mxu0 %v171
    %415 = vmatpush1.msra.mxu0 %v170
    %416 = vmatprep.subr.mxu0 %v163
    %417 = vmatpush1.msra.mxu0 %v162
    %418 = vmatprep.subr.mxu0 %v155
    %419 = vmatpush1.msra.mxu0 %v154
    %420 = vmatprep.subr.mxu0 %v147
    %421 = vmatpush1.msra.mxu0 %v146
    %422 = vmatprep.subr.mxu0 %v139
    %423 = vmatpush1.msra.mxu0 %v138
    %424 = vmatprep.subr.mxu0 %v131
    %425 = vmatpush1.msra.mxu0 %v130
    %426 = vmatprep.subr.mxu0 %v123
    %427 = vmatpush1.msra.mxu0 %v122
    %428 = vmatprep.subr.mxu0 %v115
    %429 = vmatpush1.msra.mxu0 %v114
    %430 = vmatprep.subr.mxu0 %v107
    %431 = vmatpush1.msra.mxu0 %v106
    %432 = vmatprep.subr.mxu0 %v99
    %433 = vmatpush1.msra.mxu0 %v98
    %434 = vmatprep.subr.mxu0 %v91
    %435 = vmatpush1.msra.mxu0 %v90
    %436 = vmatprep.subr.mxu0 %v83
    %437 = vmatpush1.msra.mxu0 %v82
    %438 = vmatprep.subr.mxu0 %v75
    %439 = vmatpush1.msra.mxu0 %v74
    %440 = vmatprep.subr.mxu0 %v323
    %441 = vmatpush2.msra.mxu0 %v322
    %442 = vmatprep.subr.mxu0 %v315
    %443 = vmatpush2.msra.mxu0 %v314
    %444 = vmatprep.subr.mxu0 %v307
    %445 = vmatpush2.msra.mxu0 %v306
    %446 = vmatprep.subr.mxu0 %v299
    %447 = vmatpush2.msra.mxu0 %v298
    %448 = vmatprep.subr.mxu0 %v291
    %449 = vmatpush2.msra.mxu0 %v290
    %450 = vmatprep.subr.mxu0 %v283
    %451 = vmatpush2.msra.mxu0 %v282
    %452 = vmatprep.subr.mxu0 %v275
    %453 = vmatpush2.msra.mxu0 %v274
    %454 = vmatprep.subr.mxu0 %v267
    %455 = vmatpush2.msra.mxu0 %v266
    %456 = vmatprep.subr.mxu0 %v259
    %457 = vmatpush2.msra.mxu0 %v258
    %458 = vmatprep.subr.mxu0 %v251
    %459 = vmatpush2.msra.mxu0 %v250
    %460 = vmatprep.subr.mxu0 %v243
    %461 = vmatpush2.msra.mxu0 %v242
    %462 = vmatprep.subr.mxu0 %v235
    %463 = vmatpush2.msra.mxu0 %v234
    %464 = vmatprep.subr.mxu0 %v227
    %465 = vmatpush2.msra.mxu0 %v226
    %466 = vmatprep.subr.mxu0 %v219
    %467 = vmatpush2.msra.mxu0 %v218
    %468 = vmatprep.subr.mxu0 %v211
    %469 = vmatpush2.msra.mxu0 %v210
    %470 = vmatprep.subr.mxu0 %v203
    %471 = vmatpush2.msra.mxu0 %v202
    %472 = vmatprep.mubr.f32.mxu0 0.0
    %473 = vmatmul.mubr.f32.gmra.mxu0 %v407
    %v474 = vpop.f32.mrf.mxu0
    %v475 = vadd.f32 0.0, %v474
    %v476 = vpop.f32.mrf.mxu0
    %v477 = vadd.f32 0.0, %v476
    %478 = vdwg.mxu0
    %479 = vmatprep.subr.mxu0 %v197
    %480 = vmatpush1.msra.mxu0 %v196
    %481 = vmatprep.subr.mxu0 %v189
    %482 = vmatpush1.msra.mxu0 %v188
    %483 = vmatprep.subr.mxu0 %v181
    %484 = vmatpush1.msra.mxu0 %v180
    %485 = vmatprep.subr.mxu0 %v173
    %486 = vmatpush1.msra.mxu0 %v172
    %487 = vmatprep.subr.mxu0 %v165
    %488 = vmatpush1.msra.mxu0 %v164
    %489 = vmatprep.subr.mxu0 %v157
    %490 = vmatpush1.msra.mxu0 %v156
    %491 = vmatprep.subr.mxu0 %v149
    %492 = vmatpush1.msra.mxu0 %v148
    %493 = vmatprep.subr.mxu0 %v141
    %494 = vmatpush1.msra.mxu0 %v140
    %495 = vmatprep.subr.mxu0 %v133
    %496 = vmatpush1.msra.mxu0 %v132
    %497 = vmatprep.subr.mxu0 %v125
    %498 = vmatpush1.msra.mxu0 %v124
    %499 = vmatprep.subr.mxu0 %v117
    %500 = vmatpush1.msra.mxu0 %v116
    %501 = vmatprep.subr.mxu0 %v109
    %502 = vmatpush1.msra.mxu0 %v108
    %503 = vmatprep.subr.mxu0 %v101
    %504 = vmatpush1.msra.mxu0 %v100
    %505 = vmatprep.subr.mxu0 %v93
    %506 = vmatpush1.msra.mxu0 %v92
    %507 = vmatprep.subr.mxu0 %v85
    %508 = vmatpush1.msra.mxu0 %v84
    %509 = vmatprep.subr.mxu0 %v77
    %510 = vmatpush1.msra.mxu0 %v76
    %511 = vmatprep.subr.mxu0 %v325
    %512 = vmatpush2.msra.mxu0 %v324
    %513 = vmatprep.subr.mxu0 %v317
    %514 = vmatpush2.msra.mxu0 %v316
    %515 = vmatprep.subr.mxu0 %v309
    %516 = vmatpush2.msra.mxu0 %v308
    %517 = vmatprep.subr.mxu0 %v301
    %518 = vmatpush2.msra.mxu0 %v300
    %519 = vmatprep.subr.mxu0 %v293
    %520 = vmatpush2.msra.mxu0 %v292
    %521 = vmatprep.subr.mxu0 %v285
    %522 = vmatpush2.msra.mxu0 %v284
    %523 = vmatprep.subr.mxu0 %v277
    %524 = vmatpush2.msra.mxu0 %v276
    %525 = vmatprep.subr.mxu0 %v269
    %526 = vmatpush2.msra.mxu0 %v268
    %527 = vmatprep.subr.mxu0 %v261
    %528 = vmatpush2.msra.mxu0 %v260
    %529 = vmatprep.subr.mxu0 %v253
    %530 = vmatpush2.msra.mxu0 %v252
    %531 = vmatprep.subr.mxu0 %v245
    %532 = vmatpush2.msra.mxu0 %v244
    %533 = vmatprep.subr.mxu0 %v237
    %534 = vmatpush2.msra.mxu0 %v236
    %535 = vmatprep.subr.mxu0 %v229
    %536 = vmatpush2.msra.mxu0 %v228
    %537 = vmatprep.subr.mxu0 %v221
    %538 = vmatpush2.msra.mxu0 %v220
    %539 = vmatprep.subr.mxu0 %v213
    %540 = vmatpush2.msra.mxu0 %v212
    %541 = vmatprep.subr.mxu0 %v205
    %542 = vmatpush2.msra.mxu0 %v204
    %543 = vmatprep.mubr.f32.mxu0 0.0
    %544 = vmatmul.mubr.f32.gmra.mxu0 %v407
    %v545 = vpop.f32.mrf.mxu0
    %v546 = vadd.f32 0.0, %v545
    %v547 = vpop.f32.mrf.mxu0
    %v548 = vadd.f32 0.0, %v547
    %549 = vdwg.mxu0
    %550 = vmatprep.subr.mxu0 %v199
    %551 = vmatpush1.msra.mxu0 %v198
    %552 = vmatprep.subr.mxu0 %v191
    %553 = vmatpush1.msra.mxu0 %v190
    %554 = vmatprep.subr.mxu0 %v183
    %555 = vmatpush1.msra.mxu0 %v182
    %556 = vmatprep.subr.mxu0 %v175
    %557 = vmatpush1.msra.mxu0 %v174
    %558 = vmatprep.subr.mxu0 %v167
    %559 = vmatpush1.msra.mxu0 %v166
    %560 = vmatprep.subr.mxu0 %v159
    %561 = vmatpush1.msra.mxu0 %v158
    %562 = vmatprep.subr.mxu0 %v151
    %563 = vmatpush1.msra.mxu0 %v150
    %564 = vmatprep.subr.mxu0 %v143
    %565 = vmatpush1.msra.mxu0 %v142
    %566 = vmatprep.subr.mxu0 %v135
    %567 = vmatpush1.msra.mxu0 %v134
    %568 = vmatprep.subr.mxu0 %v127
    %569 = vmatpush1.msra.mxu0 %v126
    %570 = vmatprep.subr.mxu0 %v119
    %571 = vmatpush1.msra.mxu0 %v118
    %572 = vmatprep.subr.mxu0 %v111
    %573 = vmatpush1.msra.mxu0 %v110
    %574 = vmatprep.subr.mxu0 %v103
    %575 = vmatpush1.msra.mxu0 %v102
    %576 = vmatprep.subr.mxu0 %v95
    %577 = vmatpush1.msra.mxu0 %v94
    %578 = vmatprep.subr.mxu0 %v87
    %579 = vmatpush1.msra.mxu0 %v86
    %580 = vmatprep.subr.mxu0 %v79
    %581 = vmatpush1.msra.mxu0 %v78
    %582 = vmatprep.subr.mxu0 %v327
    %583 = vmatpush2.msra.mxu0 %v326
    %584 = vmatprep.subr.mxu0 %v319
    %585 = vmatpush2.msra.mxu0 %v318
    %586 = vmatprep.subr.mxu0 %v311
    %587 = vmatpush2.msra.mxu0 %v310
    %588 = vmatprep.subr.mxu0 %v303
    %589 = vmatpush2.msra.mxu0 %v302
    %590 = vmatprep.subr.mxu0 %v295
    %591 = vmatpush2.msra.mxu0 %v294
    %592 = vmatprep.subr.mxu0 %v287
    %593 = vmatpush2.msra.mxu0 %v286
    %594 = vmatprep.subr.mxu0 %v279
    %595 = vmatpush2.msra.mxu0 %v278
    %596 = vmatprep.subr.mxu0 %v271
    %597 = vmatpush2.msra.mxu0 %v270
    %598 = vmatprep.subr.mxu0 %v263
    %599 = vmatpush2.msra.mxu0 %v262
    %600 = vmatprep.subr.mxu0 %v255
    %601 = vmatpush2.msra.mxu0 %v254
    %602 = vmatprep.subr.mxu0 %v247
    %603 = vmatpush2.msra.mxu0 %v246
    %604 = vmatprep.subr.mxu0 %v239
    %605 = vmatpush2.msra.mxu0 %v238
    %606 = vmatprep.subr.mxu0 %v231
    %607 = vmatpush2.msra.mxu0 %v230
    %608 = vmatprep.subr.mxu0 %v223
    %609 = vmatpush2.msra.mxu0 %v222
    %610 = vmatprep.subr.mxu0 %v215
    %611 = vmatpush2.msra.mxu0 %v214
    %612 = vmatprep.subr.mxu0 %v207
    %613 = vmatpush2.msra.mxu0 %v206
    %614 = vmatprep.mubr.f32.mxu0 0.0
    %615 = vmatmul.mubr.f32.gmra.mxu0 %v407
    %v616 = vpop.f32.mrf.mxu0
    %v617 = vadd.f32 0.0, %v616
    %v618 = vpop.f32.mrf.mxu0
    %v619 = vadd.f32 0.0, %v618
    %620 = vdwg.mxu0
    %621 = vmatprep.subr.mxu0 %v201
    %622 = vmatpush1.msra.mxu0 %v200
    %623 = vmatprep.subr.mxu0 %v193
    %624 = vmatpush1.msra.mxu0 %v192
    %625 = vmatprep.subr.mxu0 %v185
    %626 = vmatpush1.msra.mxu0 %v184
    %627 = vmatprep.subr.mxu0 %v177
    %628 = vmatpush1.msra.mxu0 %v176
    %629 = vmatprep.subr.mxu0 %v169
    %630 = vmatpush1.msra.mxu0 %v168
    %631 = vmatprep.subr.mxu0 %v161
    %632 = vmatpush1.msra.mxu0 %v160
    %633 = vmatprep.subr.mxu0 %v153
    %634 = vmatpush1.msra.mxu0 %v152
    %635 = vmatprep.subr.mxu0 %v145
    %636 = vmatpush1.msra.mxu0 %v144
    %637 = vmatprep.subr.mxu0 %v137
    %638 = vmatpush1.msra.mxu0 %v136
    %639 = vmatprep.subr.mxu0 %v129
    %640 = vmatpush1.msra.mxu0 %v128
    %641 = vmatprep.subr.mxu0 %v121
    %642 = vmatpush1.msra.mxu0 %v120
    %643 = vmatprep.subr.mxu0 %v113
    %644 = vmatpush1.msra.mxu0 %v112
    %645 = vmatprep.subr.mxu0 %v105
    %646 = vmatpush1.msra.mxu0 %v104
    %647 = vmatprep.subr.mxu0 %v97
    %648 = vmatpush1.msra.mxu0 %v96
    %649 = vmatprep.subr.mxu0 %v89
    %650 = vmatpush1.msra.mxu0 %v88
    %651 = vmatprep.subr.mxu0 %v81
    %652 = vmatpush1.msra.mxu0 %v80
    %653 = vmatprep.subr.mxu0 %v329
    %654 = vmatpush2.msra.mxu0 %v328
    %655 = vmatprep.subr.mxu0 %v321
    %656 = vmatpush2.msra.mxu0 %v320
    %657 = vmatprep.subr.mxu0 %v313
    %658 = vmatpush2.msra.mxu0 %v312
    %659 = vmatprep.subr.mxu0 %v305
    %660 = vmatpush2.msra.mxu0 %v304
    %661 = vmatprep.subr.mxu0 %v297
    %662 = vmatpush2.msra.mxu0 %v296
    %663 = vmatprep.subr.mxu0 %v289
    %664 = vmatpush2.msra.mxu0 %v288
    %665 = vmatprep.subr.mxu0 %v281
    %666 = vmatpush2.msra.mxu0 %v280
    %667 = vmatprep.subr.mxu0 %v273
    %668 = vmatpush2.msra.mxu0 %v272
    %669 = vmatprep.subr.mxu0 %v265
    %670 = vmatpush2.msra.mxu0 %v264
    %671 = vmatprep.subr.mxu0 %v257
    %672 = vmatpush2.msra.mxu0 %v256
    %673 = vmatprep.subr.mxu0 %v249
    %674 = vmatpush2.msra.mxu0 %v248
    %675 = vmatprep.subr.mxu0 %v241
    %676 = vmatpush2.msra.mxu0 %v240
    %677 = vmatprep.subr.mxu0 %v233
    %678 = vmatpush2.msra.mxu0 %v232
    %679 = vmatprep.subr.mxu0 %v225
    %680 = vmatpush2.msra.mxu0 %v224
    %681 = vmatprep.subr.mxu0 %v217
    %682 = vmatpush2.msra.mxu0 %v216
    %683 = vmatprep.subr.mxu0 %v209
    %684 = vmatpush2.msra.mxu0 %v208
    %685 = vmatprep.mubr.f32.mxu0 0.0
    %686 = vmatmul.mubr.f32.gmra.mxu0 %v407
    %v687 = vpop.f32.mrf.mxu0
    %v688 = vadd.f32 0.0, %v687
    %v689 = vpop.f32.mrf.mxu0
    %v690 = vadd.f32 0.0, %v689
    %691 = vdwg.mxu0
    %v692 = vadd.f32 %v356, %v475
    %v693 = vadd.f32 %v357, %v477
    %v694 = vadd.f32 %v358, %v546
    %v695 = vadd.f32 %v359, %v548
    %v696 = vadd.f32 %v617, %v335
    %v697 = vadd.f32 %v619, %v339
    %v698 = vadd.f32 %v688, %v343
    %v699 = vadd.f32 %v690, %v347
    %v700 = vxor.u32 %v692, 2147483648
    %v701 = vxor.u32 %v693, 2147483648
    %v702 = vmul.f32 %v700, 1.442695
    %v703 = vpow.pop %v702
    %v704 = vmul.f32 %v701, 1.442695
    %v705 = vpow.pop %v704
    %v706 = vadd.f32 %v703, 1.0
    %v707 = vadd.f32 %v705, 1.0
    %v708 = vrcp.pop %v706
    %v709 = vmul.f32 1.0, %v708
    %v710 = vrcp.pop %v707
    %v711 = vmul.f32 1.0, %v710
    %v712 = vtanh.pop %v694
    %v713 = vxor.u32 %v695, 2147483648
    %v714 = vmul.f32 %v713, 1.442695
    %v715 = vpow.pop %v714
    %v716 = vadd.f32 %v715, 1.0
    %v717 = vrcp.pop %v716
    %v718 = vmul.f32 1.0, %v717
    %v719 = vmul.f32 %v711, %v405
    %v720 = vmul.f32 %v709, %v712
    %v721 = vadd.f32 %v719, %v720
    %v722 = vtanh.pop %v721
    %v723 = vmul.f32 %v718, %v722
    %v724 = vxor.u32 %v696, 2147483648
    %v725 = vxor.u32 %v697, 2147483648
    %v726 = vmul.f32 %v724, 1.442695
    %v727 = vpow.pop %v726
    %v728 = vmul.f32 %v725, 1.442695
    %v729 = vpow.pop %v728
    %v730 = vadd.f32 %v727, 1.0
    %v731 = vadd.f32 %v729, 1.0
    %v732 = vrcp.pop %v730
    %v733 = vmul.f32 1.0, %v732
    %v734 = vrcp.pop %v731
    %v735 = vmul.f32 1.0, %v734
    %v736 = vtanh.pop %v698
    %v737 = vxor.u32 %v699, 2147483648
    %v738 = vmul.f32 %v737, 1.442695
    %v739 = vpow.pop %v738
    %v740 = vadd.f32 %v739, 1.0
    %v741 = vrcp.pop %v740
    %v742 = vmul.f32 1.0, %v741
    %v743 = vmul.f32 %v735, 0.0
    %v744 = vmul.f32 %v733, %v736
    %v745 = vadd.f32 %v743, %v744
    %v746 = vtanh.pop %v745
    %v747 = vmul.f32 %v742, %v746
    %748 = vmatprep.subr.mxu0 %v195
    %749 = vmatpush1.msra.mxu0 %v194
    %750 = vmatprep.subr.mxu0 %v187
    %751 = vmatpush1.msra.mxu0 %v186
    %752 = vmatprep.subr.mxu0 %v179
    %753 = vmatpush1.msra.mxu0 %v178
    %754 = vmatprep.subr.mxu0 %v171
    %755 = vmatpush1.msra.mxu0 %v170
    %756 = vmatprep.subr.mxu0 %v163
    %757 = vmatpush1.msra.mxu0 %v162
    %758 = vmatprep.subr.mxu0 %v155
    %759 = vmatpush1.msra.mxu0 %v154
    %760 = vmatprep.subr.mxu0 %v147
    %761 = vmatpush1.msra.mxu0 %v146
    %762 = vmatprep.subr.mxu0 %v139
    %763 = vmatpush1.msra.mxu0 %v138
    %764 = vmatprep.subr.mxu0 %v131
    %765 = vmatpush1.msra.mxu0 %v130
    %766 = vmatprep.subr.mxu0 %v123
    %767 = vmatpush1.msra.mxu0 %v122
    %768 = vmatprep.subr.mxu0 %v115
    %769 = vmatpush1.msra.mxu0 %v114
    %770 = vmatprep.subr.mxu0 %v107
    %771 = vmatpush1.msra.mxu0 %v106
    %772 = vmatprep.subr.mxu0 %v99
    %773 = vmatpush1.msra.mxu0 %v98
    %774 = vmatprep.subr.mxu0 %v91
    %775 = vmatpush1.msra.mxu0 %v90
    %776 = vmatprep.subr.mxu0 %v83
    %777 = vmatpush1.msra.mxu0 %v82
    %778 = vmatprep.subr.mxu0 %v75
    %779 = vmatpush1.msra.mxu0 %v74
    %780 = vmatprep.subr.mxu0 %v323
    %781 = vmatpush2.msra.mxu0 %v322
    %782 = vmatprep.subr.mxu0 %v315
    %783 = vmatpush2.msra.mxu0 %v314
    %784 = vmatprep.subr.mxu0 %v307
    %785 = vmatpush2.msra.mxu0 %v306
    %786 = vmatprep.subr.mxu0 %v299
    %787 = vmatpush2.msra.mxu0 %v298
    %788 = vmatprep.subr.mxu0 %v291
    %789 = vmatpush2.msra.mxu0 %v290
    %790 = vmatprep.subr.mxu0 %v283
    %791 = vmatpush2.msra.mxu0 %v282
    %792 = vmatprep.subr.mxu0 %v275
    %793 = vmatpush2.msra.mxu0 %v274
    %794 = vmatprep.subr.mxu0 %v267
    %795 = vmatpush2.msra.mxu0 %v266
    %796 = vmatprep.subr.mxu0 %v259
    %797 = vmatpush2.msra.mxu0 %v258
    %798 = vmatprep.subr.mxu0 %v251
    %799 = vmatpush2.msra.mxu0 %v250
    %800 = vmatprep.subr.mxu0 %v243
    %801 = vmatpush2.msra.mxu0 %v242
    %802 = vmatprep.subr.mxu0 %v235
    %803 = vmatpush2.msra.mxu0 %v234
    %804 = vmatprep.subr.mxu0 %v227
    %805 = vmatpush2.msra.mxu0 %v226
    %806 = vmatprep.subr.mxu0 %v219
    %807 = vmatpush2.msra.mxu0 %v218
    %808 = vmatprep.subr.mxu0 %v211
    %809 = vmatpush2.msra.mxu0 %v210
    %810 = vmatprep.subr.mxu0 %v203
    %811 = vmatpush2.msra.mxu0 %v202
    %812 = vmatprep.mubr.f32.mxu0 %v747
    %813 = vmatmul.mubr.f32.gmra.mxu0 %v723
    %v814 = vpop.f32.mrf.mxu0
    %v815 = vadd.f32 0.0, %v814
    %v816 = vpop.f32.mrf.mxu0
    %v817 = vadd.f32 0.0, %v816
    %818 = vdwg.mxu0
    %819 = vmatprep.subr.mxu0 %v197
    %820 = vmatpush1.msra.mxu0 %v196
    %821 = vmatprep.subr.mxu0 %v189
    %822 = vmatpush1.msra.mxu0 %v188
    %823 = vmatprep.subr.mxu0 %v181
    %824 = vmatpush1.msra.mxu0 %v180
    %825 = vmatprep.subr.mxu0 %v173
    %826 = vmatpush1.msra.mxu0 %v172
    %827 = vmatprep.subr.mxu0 %v165
    %828 = vmatpush1.msra.mxu0 %v164
    %829 = vmatprep.subr.mxu0 %v157
    %830 = vmatpush1.msra.mxu0 %v156
    %831 = vmatprep.subr.mxu0 %v149
    %832 = vmatpush1.msra.mxu0 %v148
    %833 = vmatprep.subr.mxu0 %v141
    %834 = vmatpush1.msra.mxu0 %v140
    %835 = vmatprep.subr.mxu0 %v133
    %836 = vmatpush1.msra.mxu0 %v132
    %837 = vmatprep.subr.mxu0 %v125
    %838 = vmatpush1.msra.mxu0 %v124
    %839 = vmatprep.subr.mxu0 %v117
    %840 = vmatpush1.msra.mxu0 %v116
    %841 = vmatprep.subr.mxu0 %v109
    %842 = vmatpush1.msra.mxu0 %v108
    %843 = vmatprep.subr.mxu0 %v101
    %844 = vmatpush1.msra.mxu0 %v100
    %845 = vmatprep.subr.mxu0 %v93
    %846 = vmatpush1.msra.mxu0 %v92
    %847 = vmatprep.subr.mxu0 %v85
    %848 = vmatpush1.msra.mxu0 %v84
    %849 = vmatprep.subr.mxu0 %v77
    %850 = vmatpush1.msra.mxu0 %v76
    %851 = vmatprep.subr.mxu0 %v325
    %852 = vmatpush2.msra.mxu0 %v324
    %853 = vmatprep.subr.mxu0 %v317
    %854 = vmatpush2.msra.mxu0 %v316
    %855 = vmatprep.subr.mxu0 %v309
    %856 = vmatpush2.msra.mxu0 %v308
    %857 = vmatprep.subr.mxu0 %v301
    %858 = vmatpush2.msra.mxu0 %v300
    %859 = vmatprep.subr.mxu0 %v293
    %860 = vmatpush2.msra.mxu0 %v292
    %861 = vmatprep.subr.mxu0 %v285
    %862 = vmatpush2.msra.mxu0 %v284
    %863 = vmatprep.subr.mxu0 %v277
    %864 = vmatpush2.msra.mxu0 %v276
    %865 = vmatprep.subr.mxu0 %v269
    %866 = vmatpush2.msra.mxu0 %v268
    %867 = vmatprep.subr.mxu0 %v261
    %868 = vmatpush2.msra.mxu0 %v260
    %869 = vmatprep.subr.mxu0 %v253
    %870 = vmatpush2.msra.mxu0 %v252
    %871 = vmatprep.subr.mxu0 %v245
    %872 = vmatpush2.msra.mxu0 %v244
    %873 = vmatprep.subr.mxu0 %v237
    %874 = vmatpush2.msra.mxu0 %v236
    %875 = vmatprep.subr.mxu0 %v229
    %876 = vmatpush2.msra.mxu0 %v228
    %877 = vmatprep.subr.mxu0 %v221
    %878 = vmatpush2.msra.mxu0 %v220
    %879 = vmatprep.subr.mxu0 %v213
    %880 = vmatpush2.msra.mxu0 %v212
    %881 = vmatprep.subr.mxu0 %v205
    %882 = vmatpush2.msra.mxu0 %v204
    %883 = vmatprep.mubr.f32.mxu0 %v747
    %884 = vmatmul.mubr.f32.gmra.mxu0 %v723
    %v885 = vpop.f32.mrf.mxu0
    %v886 = vadd.f32 0.0, %v885
    %v887 = vpop.f32.mrf.mxu0
    %v888 = vadd.f32 0.0, %v887
    %889 = vdwg.mxu0
    %890 = vmatprep.subr.mxu0 %v199
    %891 = vmatpush1.msra.mxu0 %v198
    %892 = vmatprep.subr.mxu0 %v191
    %893 = vmatpush1.msra.mxu0 %v190
    %894 = vmatprep.subr.mxu0 %v183
    %895 = vmatpush1.msra.mxu0 %v182
    %896 = vmatprep.subr.mxu0 %v175
    %897 = vmatpush1.msra.mxu0 %v174
    %898 = vmatprep.subr.mxu0 %v167
    %899 = vmatpush1.msra.mxu0 %v166
    %900 = vmatprep.subr.mxu0 %v159
    %901 = vmatpush1.msra.mxu0 %v158
    %902 = vmatprep.subr.mxu0 %v151
    %903 = vmatpush1.msra.mxu0 %v150
    %904 = vmatprep.subr.mxu0 %v143
    %905 = vmatpush1.msra.mxu0 %v142
    %906 = vmatprep.subr.mxu0 %v135
    %907 = vmatpush1.msra.mxu0 %v134
    %908 = vmatprep.subr.mxu0 %v127
    %909 = vmatpush1.msra.mxu0 %v126
    %910 = vmatprep.subr.mxu0 %v119
    %911 = vmatpush1.msra.mxu0 %v118
    %912 = vmatprep.subr.mxu0 %v111
    %913 = vmatpush1.msra.mxu0 %v110
    %914 = vmatprep.subr.mxu0 %v103
    %915 = vmatpush1.msra.mxu0 %v102
    %916 = vmatprep.subr.mxu0 %v95
    %917 = vmatpush1.msra.mxu0 %v94
    %918 = vmatprep.subr.mxu0 %v87
    %919 = vmatpush1.msra.mxu0 %v86
    %920 = vmatprep.subr.mxu0 %v79
    %921 = vmatpush1.msra.mxu0 %v78
    %922 = vmatprep.subr.mxu0 %v327
    %923 = vmatpush2.msra.mxu0 %v326
    %924 = vmatprep.subr.mxu0 %v319
    %925 = vmatpush2.msra.mxu0 %v318
    %926 = vmatprep.subr.mxu0 %v311
    %927 = vmatpush2.msra.mxu0 %v310
    %928 = vmatprep.subr.mxu0 %v303
    %929 = vmatpush2.msra.mxu0 %v302
    %930 = vmatprep.subr.mxu0 %v295
    %931 = vmatpush2.msra.mxu0 %v294
    %932 = vmatprep.subr.mxu0 %v287
    %933 = vmatpush2.msra.mxu0 %v286
    %934 = vmatprep.subr.mxu0 %v279
    %935 = vmatpush2.msra.mxu0 %v278
    %936 = vmatprep.subr.mxu0 %v271
    %937 = vmatpush2.msra.mxu0 %v270
    %938 = vmatprep.subr.mxu0 %v263
    %939 = vmatpush2.msra.mxu0 %v262
    %940 = vmatprep.subr.mxu0 %v255
    %941 = vmatpush2.msra.mxu0 %v254
    %942 = vmatprep.subr.mxu0 %v247
    %943 = vmatpush2.msra.mxu0 %v246
    %944 = vmatprep.subr.mxu0 %v239
    %945 = vmatpush2.msra.mxu0 %v238
    %946 = vmatprep.subr.mxu0 %v231
    %947 = vmatpush2.msra.mxu0 %v230
    %948 = vmatprep.subr.mxu0 %v223
    %949 = vmatpush2.msra.mxu0 %v222
    %950 = vmatprep.subr.mxu0 %v215
    %951 = vmatpush2.msra.mxu0 %v214
    %952 = vmatprep.subr.mxu0 %v207
    %953 = vmatpush2.msra.mxu0 %v206
    %954 = vmatprep.mubr.f32.mxu0 %v747
    %955 = vmatmul.mubr.f32.gmra.mxu0 %v723
    %v956 = vpop.f32.mrf.mxu0
    %v957 = vadd.f32 0.0, %v956
    %v958 = vpop.f32.mrf.mxu0
    %v959 = vadd.f32 0.0, %v958
    %960 = vdwg.mxu0
    %961 = vmatprep.subr.mxu0 %v201
    %962 = vmatpush1.msra.mxu0 %v200
    %963 = vmatprep.subr.mxu0 %v193
    %964 = vmatpush1.msra.mxu0 %v192
    %965 = vmatprep.subr.mxu0 %v185
    %966 = vmatpush1.msra.mxu0 %v184
    %967 = vmatprep.subr.mxu0 %v177
    %968 = vmatpush1.msra.mxu0 %v176
    %969 = vmatprep.subr.mxu0 %v169
    %970 = vmatpush1.msra.mxu0 %v168
    %971 = vmatprep.subr.mxu0 %v161
    %972 = vmatpush1.msra.mxu0 %v160
    %973 = vmatprep.subr.mxu0 %v153
    %974 = vmatpush1.msra.mxu0 %v152
    %975 = vmatprep.subr.mxu0 %v145
    %976 = vmatpush1.msra.mxu0 %v144
    %977 = vmatprep.subr.mxu0 %v137
    %978 = vmatpush1.msra.mxu0 %v136
    %979 = vmatprep.subr.mxu0 %v129
    %980 = vmatpush1.msra.mxu0 %v128
    %981 = vmatprep.subr.mxu0 %v121
    %982 = vmatpush1.msra.mxu0 %v120
    %983 = vmatprep.subr.mxu0 %v113
    %984 = vmatpush1.msra.mxu0 %v112
    %985 = vmatprep.subr.mxu0 %v105
    %986 = vmatpush1.msra.mxu0 %v104
    %987 = vmatprep.subr.mxu0 %v97
    %988 = vmatpush1.msra.mxu0 %v96
    %989 = vmatprep.subr.mxu0 %v89
    %990 = vmatpush1.msra.mxu0 %v88
    %991 = vmatprep.subr.mxu0 %v81
    %992 = vmatpush1.msra.mxu0 %v80
    %993 = vmatprep.subr.mxu0 %v329
    %994 = vmatpush2.msra.mxu0 %v328
    %995 = vmatprep.subr.mxu0 %v321
    %996 = vmatpush2.msra.mxu0 %v320
    %997 = vmatprep.subr.mxu0 %v313
    %998 = vmatpush2.msra.mxu0 %v312
    %999 = vmatprep.subr.mxu0 %v305
    %1000 = vmatpush2.msra.mxu0 %v304
    %1001 = vmatprep.subr.mxu0 %v297
    %1002 = vmatpush2.msra.mxu0 %v296
    %1003 = vmatprep.subr.mxu0 %v289
    %1004 = vmatpush2.msra.mxu0 %v288
    %1005 = vmatprep.subr.mxu0 %v281
    %1006 = vmatpush2.msra.mxu0 %v280
    %1007 = vmatprep.subr.mxu0 %v273
    %1008 = vmatpush2.msra.mxu0 %v272
    %1009 = vmatprep.subr.mxu0 %v265
    %1010 = vmatpush2.msra.mxu0 %v264
    %1011 = vmatprep.subr.mxu0 %v257
    %1012 = vmatpush2.msra.mxu0 %v256
    %1013 = vmatprep.subr.mxu0 %v249
    %1014 = vmatpush2.msra.mxu0 %v248
    %1015 = vmatprep.subr.mxu0 %v241
    %1016 = vmatpush2.msra.mxu0 %v240
    %1017 = vmatprep.subr.mxu0 %v233
    %1018 = vmatpush2.msra.mxu0 %v232
    %1019 = vmatprep.subr.mxu0 %v225
    %1020 = vmatpush2.msra.mxu0 %v224
    %1021 = vmatprep.subr.mxu0 %v217
    %1022 = vmatpush2.msra.mxu0 %v216
    %1023 = vmatprep.subr.mxu0 %v209
    %1024 = vmatpush2.msra.mxu0 %v208
    %1025 = vmatprep.mubr.f32.mxu0 %v747
    %1026 = vmatmul.mubr.f32.gmra.mxu0 %v723
    %v1027 = vpop.f32.mrf.mxu0
    %v1028 = vadd.f32 0.0, %v1027
    %v1029 = vpop.f32.mrf.mxu0
    %v1030 = vadd.f32 0.0, %v1029
    %1031 = vdwg.mxu0
    %v1032 = vadd.f32 %v360, %v815
    %v1033 = vadd.f32 %v361, %v817
    %v1034 = vadd.f32 %v362, %v886
    %v1035 = vadd.f32 %v363, %v888
    %v1036 = vadd.f32 %v957, %v335
    %v1037 = vadd.f32 %v959, %v339
    %v1038 = vadd.f32 %v1028, %v343
    %v1039 = vadd.f32 %v1030, %v347
    %v1040 = vxor.u32 %v1032, 2147483648
    %v1041 = vxor.u32 %v1033, 2147483648
    %v1042 = vmul.f32 %v1040, 1.442695
    %v1043 = vpow.pop %v1042
    %v1044 = vmul.f32 %v1041, 1.442695
    %v1045 = vpow.pop %v1044
    %v1046 = vadd.f32 %v1043, 1.0
    %v1047 = vadd.f32 %v1045, 1.0
    %v1048 = vrcp.pop %v1046
    %v1049 = vmul.f32 1.0, %v1048
    %v1050 = vrcp.pop %v1047
    %v1051 = vmul.f32 1.0, %v1050
    %v1052 = vtanh.pop %v1034
    %v1053 = vxor.u32 %v1035, 2147483648
    %v1054 = vmul.f32 %v1053, 1.442695
    %v1055 = vpow.pop %v1054
    %v1056 = vadd.f32 %v1055, 1.0
    %v1057 = vrcp.pop %v1056
    %v1058 = vmul.f32 1.0, %v1057
    %v1059 = vmul.f32 %v1051, %v721
    %v1060 = vmul.f32 %v1049, %v1052
    %v1061 = vadd.f32 %v1059, %v1060
    %v1062 = vtanh.pop %v1061
    %v1063 = vmul.f32 %v1058, %v1062
    %v1064 = vxor.u32 %v1036, 2147483648
    %v1065 = vxor.u32 %v1037, 2147483648
    %v1066 = vmul.f32 %v1064, 1.442695
    %v1067 = vpow.pop %v1066
    %v1068 = vmul.f32 %v1065, 1.442695
    %v1069 = vpow.pop %v1068
    %v1070 = vadd.f32 %v1067, 1.0
    %v1071 = vadd.f32 %v1069, 1.0
    %v1072 = vrcp.pop %v1070
    %v1073 = vmul.f32 1.0, %v1072
    %v1074 = vrcp.pop %v1071
    %v1075 = vmul.f32 1.0, %v1074
    %v1076 = vtanh.pop %v1038
    %v1077 = vxor.u32 %v1039, 2147483648
    %v1078 = vmul.f32 %v1077, 1.442695
    %v1079 = vpow.pop %v1078
    %v1080 = vadd.f32 %v1079, 1.0
    %v1081 = vrcp.pop %v1080
    %v1082 = vmul.f32 1.0, %v1081
    %v1083 = vmul.f32 %v1075, %v745
    %v1084 = vmul.f32 %v1073, %v1076
    %v1085 = vadd.f32 %v1083, %v1084
    %v1086 = vtanh.pop %v1085
    %v1087 = vmul.f32 %v1082, %v1086
    %1088 = vmatprep.subr.mxu0 %v195
    %1089 = vmatpush1.msra.mxu0 %v194
    %1090 = vmatprep.subr.mxu0 %v187
    %1091 = vmatpush1.msra.mxu0 %v186
    %1092 = vmatprep.subr.mxu0 %v179
    %1093 = vmatpush1.msra.mxu0 %v178
    %1094 = vmatprep.subr.mxu0 %v171
    %1095 = vmatpush1.msra.mxu0 %v170
    %1096 = vmatprep.subr.mxu0 %v163
    %1097 = vmatpush1.msra.mxu0 %v162
    %1098 = vmatprep.subr.mxu0 %v155
    %1099 = vmatpush1.msra.mxu0 %v154
    %1100 = vmatprep.subr.mxu0 %v147
    %1101 = vmatpush1.msra.mxu0 %v146
    %1102 = vmatprep.subr.mxu0 %v139
    %1103 = vmatpush1.msra.mxu0 %v138
    %1104 = vmatprep.subr.mxu0 %v131
    %1105 = vmatpush1.msra.mxu0 %v130
    %1106 = vmatprep.subr.mxu0 %v123
    %1107 = vmatpush1.msra.mxu0 %v122
    %1108 = vmatprep.subr.mxu0 %v115
    %1109 = vmatpush1.msra.mxu0 %v114
    %1110 = vmatprep.subr.mxu0 %v107
    %1111 = vmatpush1.msra.mxu0 %v106
    %1112 = vmatprep.subr.mxu0 %v99
    %1113 = vmatpush1.msra.mxu0 %v98
    %1114 = vmatprep.subr.mxu0 %v91
    %1115 = vmatpush1.msra.mxu0 %v90
    %1116 = vmatprep.subr.mxu0 %v83
    %1117 = vmatpush1.msra.mxu0 %v82
    %1118 = vmatprep.subr.mxu0 %v75
    %1119 = vmatpush1.msra.mxu0 %v74
    %1120 = vmatprep.subr.mxu0 %v323
    %1121 = vmatpush2.msra.mxu0 %v322
    %1122 = vmatprep.subr.mxu0 %v315
    %1123 = vmatpush2.msra.mxu0 %v314
    %1124 = vmatprep.subr.mxu0 %v307
    %1125 = vmatpush2.msra.mxu0 %v306
    %1126 = vmatprep.subr.mxu0 %v299
    %1127 = vmatpush2.msra.mxu0 %v298
    %1128 = vmatprep.subr.mxu0 %v291
    %1129 = vmatpush2.msra.mxu0 %v290
    %1130 = vmatprep.subr.mxu0 %v283
    %1131 = vmatpush2.msra.mxu0 %v282
    %1132 = vmatprep.subr.mxu0 %v275
    %1133 = vmatpush2.msra.mxu0 %v274
    %1134 = vmatprep.subr.mxu0 %v267
    %1135 = vmatpush2.msra.mxu0 %v266
    %1136 = vmatprep.subr.mxu0 %v259
    %1137 = vmatpush2.msra.mxu0 %v258
    %1138 = vmatprep.subr.mxu0 %v251
    %1139 = vmatpush2.msra.mxu0 %v250
    %1140 = vmatprep.subr.mxu0 %v243
    %1141 = vmatpush2.msra.mxu0 %v242
    %1142 = vmatprep.subr.mxu0 %v235
    %1143 = vmatpush2.msra.mxu0 %v234
    %1144 = vmatprep.subr.mxu0 %v227
    %1145 = vmatpush2.msra.mxu0 %v226
    %1146 = vmatprep.subr.mxu0 %v219
    %1147 = vmatpush2.msra.mxu0 %v218
    %1148 = vmatprep.subr.mxu0 %v211
    %1149 = vmatpush2.msra.mxu0 %v210
    %1150 = vmatprep.subr.mxu0 %v203
    %1151 = vmatpush2.msra.mxu0 %v202
    %1152 = vmatprep.mubr.f32.mxu0 %v1087
    %1153 = vmatmul.mubr.f32.gmra.mxu0 %v1063
    %v1154 = vpop.f32.mrf.mxu0
    %v1155 = vadd.f32 0.0, %v1154
    %v1156 = vpop.f32.mrf.mxu0
    %v1157 = vadd.f32 0.0, %v1156
    %1158 = vdwg.mxu0
    %1159 = vmatprep.subr.mxu0 %v197
    %1160 = vmatpush1.msra.mxu0 %v196
    %1161 = vmatprep.subr.mxu0 %v189
    %1162 = vmatpush1.msra.mxu0 %v188
    %1163 = vmatprep.subr.mxu0 %v181
    %1164 = vmatpush1.msra.mxu0 %v180
    %1165 = vmatprep.subr.mxu0 %v173
    %1166 = vmatpush1.msra.mxu0 %v172
    %1167 = vmatprep.subr.mxu0 %v165
    %1168 = vmatpush1.msra.mxu0 %v164
    %1169 = vmatprep.subr.mxu0 %v157
    %1170 = vmatpush1.msra.mxu0 %v156
    %1171 = vmatprep.subr.mxu0 %v149
    %1172 = vmatpush1.msra.mxu0 %v148
    %1173 = vmatprep.subr.mxu0 %v141
    %1174 = vmatpush1.msra.mxu0 %v140
    %1175 = vmatprep.subr.mxu0 %v133
    %1176 = vmatpush1.msra.mxu0 %v132
    %1177 = vmatprep.subr.mxu0 %v125
    %1178 = vmatpush1.msra.mxu0 %v124
    %1179 = vmatprep.subr.mxu0 %v117
    %1180 = vmatpush1.msra.mxu0 %v116
    %1181 = vmatprep.subr.mxu0 %v109
    %1182 = vmatpush1.msra.mxu0 %v108
    %1183 = vmatprep.subr.mxu0 %v101
    %1184 = vmatpush1.msra.mxu0 %v100
    %1185 = vmatprep.subr.mxu0 %v93
    %1186 = vmatpush1.msra.mxu0 %v92
    %1187 = vmatprep.subr.mxu0 %v85
    %1188 = vmatpush1.msra.mxu0 %v84
    %1189 = vmatprep.subr.mxu0 %v77
    %1190 = vmatpush1.msra.mxu0 %v76
    %1191 = vmatprep.subr.mxu0 %v325
    %1192 = vmatpush2.msra.mxu0 %v324
    %1193 = vmatprep.subr.mxu0 %v317
    %1194 = vmatpush2.msra.mxu0 %v316
    %1195 = vmatprep.subr.mxu0 %v309
    %1196 = vmatpush2.msra.mxu0 %v308
    %1197 = vmatprep.subr.mxu0 %v301
    %1198 = vmatpush2.msra.mxu0 %v300
    %1199 = vmatprep.subr.mxu0 %v293
    %1200 = vmatpush2.msra.mxu0 %v292
    %1201 = vmatprep.subr.mxu0 %v285
    %1202 = vmatpush2.msra.mxu0 %v284
    %1203 = vmatprep.subr.mxu0 %v277
    %1204 = vmatpush2.msra.mxu0 %v276
    %1205 = vmatprep.subr.mxu0 %v269
    %1206 = vmatpush2.msra.mxu0 %v268
    %1207 = vmatprep.subr.mxu0 %v261
    %1208 = vmatpush2.msra.mxu0 %v260
    %1209 = vmatprep.subr.mxu0 %v253
    %1210 = vmatpush2.msra.mxu0 %v252
    %1211 = vmatprep.subr.mxu0 %v245
    %1212 = vmatpush2.msra.mxu0 %v244
    %1213 = vmatprep.subr.mxu0 %v237
    %1214 = vmatpush2.msra.mxu0 %v236
    %1215 = vmatprep.subr.mxu0 %v229
    %1216 = vmatpush2.msra.mxu0 %v228
    %1217 = vmatprep.subr.mxu0 %v221
    %1218 = vmatpush2.msra.mxu0 %v220
    %1219 = vmatprep.subr.mxu0 %v213
    %1220 = vmatpush2.msra.mxu0 %v212
    %1221 = vmatprep.subr.mxu0 %v205
    %1222 = vmatpush2.msra.mxu0 %v204
    %1223 = vmatprep.mubr.f32.mxu0 %v1087
    %1224 = vmatmul.mubr.f32.gmra.mxu0 %v1063
    %v1225 = vpop.f32.mrf.mxu0
    %v1226 = vadd.f32 0.0, %v1225
    %v1227 = vpop.f32.mrf.mxu0
    %v1228 = vadd.f32 0.0, %v1227
    %1229 = vdwg.mxu0
    %1230 = vmatprep.subr.mxu0 %v199
    %1231 = vmatpush1.msra.mxu0 %v198
    %1232 = vmatprep.subr.mxu0 %v191
    %1233 = vmatpush1.msra.mxu0 %v190
    %1234 = vmatprep.subr.mxu0 %v183
    %1235 = vmatpush1.msra.mxu0 %v182
    %1236 = vmatprep.subr.mxu0 %v175
    %1237 = vmatpush1.msra.mxu0 %v174
    %1238 = vmatprep.subr.mxu0 %v167
    %1239 = vmatpush1.msra.mxu0 %v166
    %1240 = vmatprep.subr.mxu0 %v159
    %1241 = vmatpush1.msra.mxu0 %v158
    %1242 = vmatprep.subr.mxu0 %v151
    %1243 = vmatpush1.msra.mxu0 %v150
    %1244 = vmatprep.subr.mxu0 %v143
    %1245 = vmatpush1.msra.mxu0 %v142
    %1246 = vmatprep.subr.mxu0 %v135
    %1247 = vmatpush1.msra.mxu0 %v134
    %1248 = vmatprep.subr.mxu0 %v127
    %1249 = vmatpush1.msra.mxu0 %v126
    %1250 = vmatprep.subr.mxu0 %v119
    %1251 = vmatpush1.msra.mxu0 %v118
    %1252 = vmatprep.subr.mxu0 %v111
    %1253 = vmatpush1.msra.mxu0 %v110
    %1254 = vmatprep.subr.mxu0 %v103
    %1255 = vmatpush1.msra.mxu0 %v102
    %1256 = vmatprep.subr.mxu0 %v95
    %1257 = vmatpush1.msra.mxu0 %v94
    %1258 = vmatprep.subr.mxu0 %v87
    %1259 = vmatpush1.msra.mxu0 %v86
    %1260 = vmatprep.subr.mxu0 %v79
    %1261 = vmatpush1.msra.mxu0 %v78
    %1262 = vmatprep.subr.mxu0 %v327
    %1263 = vmatpush2.msra.mxu0 %v326
    %1264 = vmatprep.subr.mxu0 %v319
    %1265 = vmatpush2.msra.mxu0 %v318
    %1266 = vmatprep.subr.mxu0 %v311
    %1267 = vmatpush2.msra.mxu0 %v310
    %1268 = vmatprep.subr.mxu0 %v303
    %1269 = vmatpush2.msra.mxu0 %v302
    %1270 = vmatprep.subr.mxu0 %v295
    %1271 = vmatpush2.msra.mxu0 %v294
    %1272 = vmatprep.subr.mxu0 %v287
    %1273 = vmatpush2.msra.mxu0 %v286
    %1274 = vmatprep.subr.mxu0 %v279
    %1275 = vmatpush2.msra.mxu0 %v278
    %1276 = vmatprep.subr.mxu0 %v271
    %1277 = vmatpush2.msra.mxu0 %v270
    %1278 = vmatprep.subr.mxu0 %v263
    %1279 = vmatpush2.msra.mxu0 %v262
    %1280 = vmatprep.subr.mxu0 %v255
    %1281 = vmatpush2.msra.mxu0 %v254
    %1282 = vmatprep.subr.mxu0 %v247
    %1283 = vmatpush2.msra.mxu0 %v246
    %1284 = vmatprep.subr.mxu0 %v239
    %1285 = vmatpush2.msra.mxu0 %v238
    %1286 = vmatprep.subr.mxu0 %v231
    %1287 = vmatpush2.msra.mxu0 %v230
    %1288 = vmatprep.subr.mxu0 %v223
    %1289 = vmatpush2.msra.mxu0 %v222
    %1290 = vmatprep.subr.mxu0 %v215
    %1291 = vmatpush2.msra.mxu0 %v214
    %1292 = vmatprep.subr.mxu0 %v207
    %1293 = vmatpush2.msra.mxu0 %v206
    %1294 = vmatprep.mubr.f32.mxu0 %v1087
    %1295 = vmatmul.mubr.f32.gmra.mxu0 %v1063
    %v1296 = vpop.f32.mrf.mxu0
    %v1297 = vadd.f32 0.0, %v1296
    %v1298 = vpop.f32.mrf.mxu0
    %v1299 = vadd.f32 0.0, %v1298
    %1300 = vdwg.mxu0
    %1301 = vmatprep.subr.mxu0 %v201
    %1302 = vmatpush1.msra.mxu0 %v200
    %1303 = vmatprep.subr.mxu0 %v193
    %1304 = vmatpush1.msra.mxu0 %v192
    %1305 = vmatprep.subr.mxu0 %v185
    %1306 = vmatpush1.msra.mxu0 %v184
    %1307 = vmatprep.subr.mxu0 %v177
    %1308 = vmatpush1.msra.mxu0 %v176
    %1309 = vmatprep.subr.mxu0 %v169
    %1310 = vmatpush1.msra.mxu0 %v168
    %1311 = vmatprep.subr.mxu0 %v161
    %1312 = vmatpush1.msra.mxu0 %v160
    %1313 = vmatprep.subr.mxu0 %v153
    %1314 = vmatpush1.msra.mxu0 %v152
    %1315 = vmatprep.subr.mxu0 %v145
    %1316 = vmatpush1.msra.mxu0 %v144
    %1317 = vmatprep.subr.mxu0 %v137
    %1318 = vmatpush1.msra.mxu0 %v136
    %1319 = vmatprep.subr.mxu0 %v129
    %1320 = vmatpush1.msra.mxu0 %v128
    %1321 = vmatprep.subr.mxu0 %v121
    %1322 = vmatpush1.msra.mxu0 %v120
    %1323 = vmatprep.subr.mxu0 %v113
    %1324 = vmatpush1.msra.mxu0 %v112
    %1325 = vmatprep.subr.mxu0 %v105
    %1326 = vmatpush1.msra.mxu0 %v104
    %1327 = vmatprep.subr.mxu0 %v97
    %1328 = vmatpush1.msra.mxu0 %v96
    %1329 = vmatprep.subr.mxu0 %v89
    %1330 = vmatpush1.msra.mxu0 %v88
    %1331 = vmatprep.subr.mxu0 %v81
    %1332 = vmatpush1.msra.mxu0 %v80
    %1333 = vmatprep.subr.mxu0 %v329
    %1334 = vmatpush2.msra.mxu0 %v328
    %1335 = vmatprep.subr.mxu0 %v321
    %1336 = vmatpush2.msra.mxu0 %v320
    %1337 = vmatprep.subr.mxu0 %v313
    %1338 = vmatpush2.msra.mxu0 %v312
    %1339 = vmatprep.subr.mxu0 %v305
    %1340 = vmatpush2.msra.mxu0 %v304
    %1341 = vmatprep.subr.mxu0 %v297
    %1342 = vmatpush2.msra.mxu0 %v296
    %1343 = vmatprep.subr.mxu0 %v289
    %1344 = vmatpush2.msra.mxu0 %v288
    %1345 = vmatprep.subr.mxu0 %v281
    %1346 = vmatpush2.msra.mxu0 %v280
    %1347 = vmatprep.subr.mxu0 %v273
    %1348 = vmatpush2.msra.mxu0 %v272
    %1349 = vmatprep.subr.mxu0 %v265
    %1350 = vmatpush2.msra.mxu0 %v264
    %1351 = vmatprep.subr.mxu0 %v257
    %1352 = vmatpush2.msra.mxu0 %v256
    %1353 = vmatprep.subr.mxu0 %v249
    %1354 = vmatpush2.msra.mxu0 %v248
    %1355 = vmatprep.subr.mxu0 %v241
    %1356 = vmatpush2.msra.mxu0 %v240
    %1357 = vmatprep.subr.mxu0 %v233
    %1358 = vmatpush2.msra.mxu0 %v232
    %1359 = vmatprep.subr.mxu0 %v225
    %1360 = vmatpush2.msra.mxu0 %v224
    %1361 = vmatprep.subr.mxu0 %v217
    %1362 = vmatpush2.msra.mxu0 %v216
    %1363 = vmatprep.subr.mxu0 %v209
    %1364 = vmatpush2.msra.mxu0 %v208
    %1365 = vmatprep.mubr.f32.mxu0 %v1087
    %1366 = vmatmul.mubr.f32.gmra.mxu0 %v1063
    %v1367 = vpop.f32.mrf.mxu0
    %v1368 = vadd.f32 0.0, %v1367
    %v1369 = vpop.f32.mrf.mxu0
    %v1370 = vadd.f32 0.0, %v1369
    %1371 = vdwg.mxu0
    %v1372 = vadd.f32 %v364, %v1155
    %v1373 = vadd.f32 %v365, %v1157
    %v1374 = vadd.f32 %v366, %v1226
    %v1375 = vadd.f32 %v367, %v1228
    %v1376 = vadd.f32 %v1297, %v335
    %v1377 = vadd.f32 %v1299, %v339
    %v1378 = vadd.f32 %v1368, %v343
    %v1379 = vadd.f32 %v1370, %v347
    %v1380 = vxor.u32 %v1372, 2147483648
    %v1381 = vxor.u32 %v1373, 2147483648
    %v1382 = vmul.f32 %v1380, 1.442695
    %v1383 = vpow.pop %v1382
    %v1384 = vmul.f32 %v1381, 1.442695
    %v1385 = vpow.pop %v1384
    %v1386 = vadd.f32 %v1383, 1.0
    %v1387 = vadd.f32 %v1385, 1.0
    %v1388 = vrcp.pop %v1386
    %v1389 = vmul.f32 1.0, %v1388
    %v1390 = vrcp.pop %v1387
    %v1391 = vmul.f32 1.0, %v1390
    %v1392 = vtanh.pop %v1374
    %v1393 = vxor.u32 %v1375, 2147483648
    %v1394 = vmul.f32 %v1393, 1.442695
    %v1395 = vpow.pop %v1394
    %v1396 = vadd.f32 %v1395, 1.0
    %v1397 = vrcp.pop %v1396
    %v1398 = vmul.f32 1.0, %v1397
    %v1399 = vmul.f32 %v1391, %v1061
    %v1400 = vmul.f32 %v1389, %v1392
    %v1401 = vadd.f32 %v1399, %v1400
    %v1402 = vtanh.pop %v1401
    %v1403 = vmul.f32 %v1398, %v1402
    %v1404 = vxor.u32 %v1376, 2147483648
    %v1405 = vxor.u32 %v1377, 2147483648
    %v1406 = vmul.f32 %v1404, 1.442695
    %v1407 = vpow.pop %v1406
    %v1408 = vmul.f32 %v1405, 1.442695
    %v1409 = vpow.pop %v1408
    %v1410 = vadd.f32 %v1407, 1.0
    %v1411 = vadd.f32 %v1409, 1.0
    %v1412 = vrcp.pop %v1410
    %v1413 = vmul.f32 1.0, %v1412
    %v1414 = vrcp.pop %v1411
    %v1415 = vmul.f32 1.0, %v1414
    %v1416 = vtanh.pop %v1378
    %v1417 = vxor.u32 %v1379, 2147483648
    %v1418 = vmul.f32 %v1417, 1.442695
    %v1419 = vpow.pop %v1418
    %v1420 = vadd.f32 %v1419, 1.0
    %v1421 = vrcp.pop %v1420
    %v1422 = vmul.f32 1.0, %v1421
    %v1423 = vmul.f32 %v1415, %v1085
    %v1424 = vmul.f32 %v1413, %v1416
    %v1425 = vadd.f32 %v1423, %v1424
    %v1426 = vtanh.pop %v1425
    %v1427 = vmul.f32 %v1422, %v1426
    %1428 = vmatprep.subr.mxu0 %v195
    %1429 = vmatpush1.msra.mxu0 %v194
    %1430 = vmatprep.subr.mxu0 %v187
    %1431 = vmatpush1.msra.mxu0 %v186
    %1432 = vmatprep.subr.mxu0 %v179
    %1433 = vmatpush1.msra.mxu0 %v178
    %1434 = vmatprep.subr.mxu0 %v171
    %1435 = vmatpush1.msra.mxu0 %v170
    %1436 = vmatprep.subr.mxu0 %v163
    %1437 = vmatpush1.msra.mxu0 %v162
    %1438 = vmatprep.subr.mxu0 %v155
    %1439 = vmatpush1.msra.mxu0 %v154
    %1440 = vmatprep.subr.mxu0 %v147
    %1441 = vmatpush1.msra.mxu0 %v146
    %1442 = vmatprep.subr.mxu0 %v139
    %1443 = vmatpush1.msra.mxu0 %v138
    %1444 = vmatprep.subr.mxu0 %v131
    %1445 = vmatpush1.msra.mxu0 %v130
    %1446 = vmatprep.subr.mxu0 %v123
    %1447 = vmatpush1.msra.mxu0 %v122
    %1448 = vmatprep.subr.mxu0 %v115
    %1449 = vmatpush1.msra.mxu0 %v114
    %1450 = vmatprep.subr.mxu0 %v107
    %1451 = vmatpush1.msra.mxu0 %v106
    %1452 = vmatprep.subr.mxu0 %v99
    %1453 = vmatpush1.msra.mxu0 %v98
    %1454 = vmatprep.subr.mxu0 %v91
    %1455 = vmatpush1.msra.mxu0 %v90
    %1456 = vmatprep.subr.mxu0 %v83
    %1457 = vmatpush1.msra.mxu0 %v82
    %1458 = vmatprep.subr.mxu0 %v75
    %1459 = vmatpush1.msra.mxu0 %v74
    %1460 = vmatprep.subr.mxu0 %v323
    %1461 = vmatpush2.msra.mxu0 %v322
    %1462 = vmatprep.subr.mxu0 %v315
    %1463 = vmatpush2.msra.mxu0 %v314
    %1464 = vmatprep.subr.mxu0 %v307
    %1465 = vmatpush2.msra.mxu0 %v306
    %1466 = vmatprep.subr.mxu0 %v299
    %1467 = vmatpush2.msra.mxu0 %v298
    %1468 = vmatprep.subr.mxu0 %v291
    %1469 = vmatpush2.msra.mxu0 %v290
    %1470 = vmatprep.subr.mxu0 %v283
    %1471 = vmatpush2.msra.mxu0 %v282
    %1472 = vmatprep.subr.mxu0 %v275
    %1473 = vmatpush2.msra.mxu0 %v274
    %1474 = vmatprep.subr.mxu0 %v267
    %1475 = vmatpush2.msra.mxu0 %v266
    %1476 = vmatprep.subr.mxu0 %v259
    %1477 = vmatpush2.msra.mxu0 %v258
    %1478 = vmatprep.subr.mxu0 %v251
    %1479 = vmatpush2.msra.mxu0 %v250
    %1480 = vmatprep.subr.mxu0 %v243
    %1481 = vmatpush2.msra.mxu0 %v242
    %1482 = vmatprep.subr.mxu0 %v235
    %1483 = vmatpush2.msra.mxu0 %v234
    %1484 = vmatprep.subr.mxu0 %v227
    %1485 = vmatpush2.msra.mxu0 %v226
    %1486 = vmatprep.subr.mxu0 %v219
    %1487 = vmatpush2.msra.mxu0 %v218
    %1488 = vmatprep.subr.mxu0 %v211
    %1489 = vmatpush2.msra.mxu0 %v210
    %1490 = vmatprep.subr.mxu0 %v203
    %1491 = vmatpush2.msra.mxu0 %v202
    %1492 = vmatprep.mubr.f32.mxu0 %v1427
    %1493 = vmatmul.mubr.f32.gmra.mxu0 %v1403
    %v1494 = vpop.f32.mrf.mxu0
    %v1495 = vadd.f32 0.0, %v1494
    %v1496 = vpop.f32.mrf.mxu0
    %v1497 = vadd.f32 0.0, %v1496
    %1498 = vdwg.mxu0
    %1499 = vmatprep.subr.mxu0 %v197
    %1500 = vmatpush1.msra.mxu0 %v196
    %1501 = vmatprep.subr.mxu0 %v189
    %1502 = vmatpush1.msra.mxu0 %v188
    %1503 = vmatprep.subr.mxu0 %v181
    %1504 = vmatpush1.msra.mxu0 %v180
    %1505 = vmatprep.subr.mxu0 %v173
    %1506 = vmatpush1.msra.mxu0 %v172
    %1507 = vmatprep.subr.mxu0 %v165
    %1508 = vmatpush1.msra.mxu0 %v164
    %1509 = vmatprep.subr.mxu0 %v157
    %1510 = vmatpush1.msra.mxu0 %v156
    %1511 = vmatprep.subr.mxu0 %v149
    %1512 = vmatpush1.msra.mxu0 %v148
    %1513 = vmatprep.subr.mxu0 %v141
    %1514 = vmatpush1.msra.mxu0 %v140
    %1515 = vmatprep.subr.mxu0 %v133
    %1516 = vmatpush1.msra.mxu0 %v132
    %1517 = vmatprep.subr.mxu0 %v125
    %1518 = vmatpush1.msra.mxu0 %v124
    %1519 = vmatprep.subr.mxu0 %v117
    %1520 = vmatpush1.msra.mxu0 %v116
    %1521 = vmatprep.subr.mxu0 %v109
    %1522 = vmatpush1.msra.mxu0 %v108
    %1523 = vmatprep.subr.mxu0 %v101
    %1524 = vmatpush1.msra.mxu0 %v100
    %1525 = vmatprep.subr.mxu0 %v93
    %1526 = vmatpush1.msra.mxu0 %v92
    %1527 = vmatprep.subr.mxu0 %v85
    %1528 = vmatpush1.msra.mxu0 %v84
    %1529 = vmatprep.subr.mxu0 %v77
    %1530 = vmatpush1.msra.mxu0 %v76
    %1531 = vmatprep.subr.mxu0 %v325
    %1532 = vmatpush2.msra.mxu0 %v324
    %1533 = vmatprep.subr.mxu0 %v317
    %1534 = vmatpush2.msra.mxu0 %v316
    %1535 = vmatprep.subr.mxu0 %v309
    %1536 = vmatpush2.msra.mxu0 %v308
    %1537 = vmatprep.subr.mxu0 %v301
    %1538 = vmatpush2.msra.mxu0 %v300
    %1539 = vmatprep.subr.mxu0 %v293
    %1540 = vmatpush2.msra.mxu0 %v292
    %1541 = vmatprep.subr.mxu0 %v285
    %1542 = vmatpush2.msra.mxu0 %v284
    %1543 = vmatprep.subr.mxu0 %v277
    %1544 = vmatpush2.msra.mxu0 %v276
    %1545 = vmatprep.subr.mxu0 %v269
    %1546 = vmatpush2.msra.mxu0 %v268
    %1547 = vmatprep.subr.mxu0 %v261
    %1548 = vmatpush2.msra.mxu0 %v260
    %1549 = vmatprep.subr.mxu0 %v253
    %1550 = vmatpush2.msra.mxu0 %v252
    %1551 = vmatprep.subr.mxu0 %v245
    %1552 = vmatpush2.msra.mxu0 %v244
    %1553 = vmatprep.subr.mxu0 %v237
    %1554 = vmatpush2.msra.mxu0 %v236
    %1555 = vmatprep.subr.mxu0 %v229
    %1556 = vmatpush2.msra.mxu0 %v228
    %1557 = vmatprep.subr.mxu0 %v221
    %1558 = vmatpush2.msra.mxu0 %v220
    %1559 = vmatprep.subr.mxu0 %v213
    %1560 = vmatpush2.msra.mxu0 %v212
    %1561 = vmatprep.subr.mxu0 %v205
    %1562 = vmatpush2.msra.mxu0 %v204
    %1563 = vmatprep.mubr.f32.mxu0 %v1427
    %1564 = vmatmul.mubr.f32.gmra.mxu0 %v1403
    %v1565 = vpop.f32.mrf.mxu0
    %v1566 = vadd.f32 0.0, %v1565
    %v1567 = vpop.f32.mrf.mxu0
    %v1568 = vadd.f32 0.0, %v1567
    %1569 = vdwg.mxu0
    %1570 = vmatprep.subr.mxu0 %v199
    %1571 = vmatpush1.msra.mxu0 %v198
    %1572 = vmatprep.subr.mxu0 %v191
    %1573 = vmatpush1.msra.mxu0 %v190
    %1574 = vmatprep.subr.mxu0 %v183
    %1575 = vmatpush1.msra.mxu0 %v182
    %1576 = vmatprep.subr.mxu0 %v175
    %1577 = vmatpush1.msra.mxu0 %v174
    %1578 = vmatprep.subr.mxu0 %v167
    %1579 = vmatpush1.msra.mxu0 %v166
    %1580 = vmatprep.subr.mxu0 %v159
    %1581 = vmatpush1.msra.mxu0 %v158
    %1582 = vmatprep.subr.mxu0 %v151
    %1583 = vmatpush1.msra.mxu0 %v150
    %1584 = vmatprep.subr.mxu0 %v143
    %1585 = vmatpush1.msra.mxu0 %v142
    %1586 = vmatprep.subr.mxu0 %v135
    %1587 = vmatpush1.msra.mxu0 %v134
    %1588 = vmatprep.subr.mxu0 %v127
    %1589 = vmatpush1.msra.mxu0 %v126
    %1590 = vmatprep.subr.mxu0 %v119
    %1591 = vmatpush1.msra.mxu0 %v118
    %1592 = vmatprep.subr.mxu0 %v111
    %1593 = vmatpush1.msra.mxu0 %v110
    %1594 = vmatprep.subr.mxu0 %v103
    %1595 = vmatpush1.msra.mxu0 %v102
    %1596 = vmatprep.subr.mxu0 %v95
    %1597 = vmatpush1.msra.mxu0 %v94
    %1598 = vmatprep.subr.mxu0 %v87
    %1599 = vmatpush1.msra.mxu0 %v86
    %1600 = vmatprep.subr.mxu0 %v79
    %1601 = vmatpush1.msra.mxu0 %v78
    %1602 = vmatprep.subr.mxu0 %v327
    %1603 = vmatpush2.msra.mxu0 %v326
    %1604 = vmatprep.subr.mxu0 %v319
    %1605 = vmatpush2.msra.mxu0 %v318
    %1606 = vmatprep.subr.mxu0 %v311
    %1607 = vmatpush2.msra.mxu0 %v310
    %1608 = vmatprep.subr.mxu0 %v303
    %1609 = vmatpush2.msra.mxu0 %v302
    %1610 = vmatprep.subr.mxu0 %v295
    %1611 = vmatpush2.msra.mxu0 %v294
    %1612 = vmatprep.subr.mxu0 %v287
    %1613 = vmatpush2.msra.mxu0 %v286
    %1614 = vmatprep.subr.mxu0 %v279
    %1615 = vmatpush2.msra.mxu0 %v278
    %1616 = vmatprep.subr.mxu0 %v271
    %1617 = vmatpush2.msra.mxu0 %v270
    %1618 = vmatprep.subr.mxu0 %v263
    %1619 = vmatpush2.msra.mxu0 %v262
    %1620 = vmatprep.subr.mxu0 %v255
    %1621 = vmatpush2.msra.mxu0 %v254
    %1622 = vmatprep.subr.mxu0 %v247
    %1623 = vmatpush2.msra.mxu0 %v246
    %1624 = vmatprep.subr.mxu0 %v239
    %1625 = vmatpush2.msra.mxu0 %v238
    %1626 = vmatprep.subr.mxu0 %v231
    %1627 = vmatpush2.msra.mxu0 %v230
    %1628 = vmatprep.subr.mxu0 %v223
    %1629 = vmatpush2.msra.mxu0 %v222
    %1630 = vmatprep.subr.mxu0 %v215
    %1631 = vmatpush2.msra.mxu0 %v214
    %1632 = vmatprep.subr.mxu0 %v207
    %1633 = vmatpush2.msra.mxu0 %v206
    %1634 = vmatprep.mubr.f32.mxu0 %v1427
    %1635 = vmatmul.mubr.f32.gmra.mxu0 %v1403
    %v1636 = vpop.f32.mrf.mxu0
    %v1637 = vadd.f32 0.0, %v1636
    %v1638 = vpop.f32.mrf.mxu0
    %v1639 = vadd.f32 0.0, %v1638
    %1640 = vdwg.mxu0
    %1641 = vmatprep.subr.mxu0 %v201
    %1642 = vmatpush1.msra.mxu0 %v200
    %1643 = vmatprep.subr.mxu0 %v193
    %1644 = vmatpush1.msra.mxu0 %v192
    %1645 = vmatprep.subr.mxu0 %v185
    %1646 = vmatpush1.msra.mxu0 %v184
    %1647 = vmatprep.subr.mxu0 %v177
    %1648 = vmatpush1.msra.mxu0 %v176
    %1649 = vmatprep.subr.mxu0 %v169
    %1650 = vmatpush1.msra.mxu0 %v168
    %1651 = vmatprep.subr.mxu0 %v161
    %1652 = vmatpush1.msra.mxu0 %v160
    %1653 = vmatprep.subr.mxu0 %v153
    %1654 = vmatpush1.msra.mxu0 %v152
    %1655 = vmatprep.subr.mxu0 %v145
    %1656 = vmatpush1.msra.mxu0 %v144
    %1657 = vmatprep.subr.mxu0 %v137
    %1658 = vmatpush1.msra.mxu0 %v136
    %1659 = vmatprep.subr.mxu0 %v129
    %1660 = vmatpush1.msra.mxu0 %v128
    %1661 = vmatprep.subr.mxu0 %v121
    %1662 = vmatpush1.msra.mxu0 %v120
    %1663 = vmatprep.subr.mxu0 %v113
    %1664 = vmatpush1.msra.mxu0 %v112
    %1665 = vmatprep.subr.mxu0 %v105
    %1666 = vmatpush1.msra.mxu0 %v104
    %1667 = vmatprep.subr.mxu0 %v97
    %1668 = vmatpush1.msra.mxu0 %v96
    %1669 = vmatprep.subr.mxu0 %v89
    %1670 = vmatpush1.msra.mxu0 %v88
    %1671 = vmatprep.subr.mxu0 %v81
    %1672 = vmatpush1.msra.mxu0 %v80
    %1673 = vmatprep.subr.mxu0 %v329
    %1674 = vmatpush2.msra.mxu0 %v328
    %1675 = vmatprep.subr.mxu0 %v321
    %1676 = vmatpush2.msra.mxu0 %v320
    %1677 = vmatprep.subr.mxu0 %v313
    %1678 = vmatpush2.msra.mxu0 %v312
    %1679 = vmatprep.subr.mxu0 %v305
    %1680 = vmatpush2.msra.mxu0 %v304
    %1681 = vmatprep.subr.mxu0 %v297
    %1682 = vmatpush2.msra.mxu0 %v296
    %1683 = vmatprep.subr.mxu0 %v289
    %1684 = vmatpush2.msra.mxu0 %v288
    %1685 = vmatprep.subr.mxu0 %v281
    %1686 = vmatpush2.msra.mxu0 %v280
    %1687 = vmatprep.subr.mxu0 %v273
    %1688 = vmatpush2.msra.mxu0 %v272
    %1689 = vmatprep.subr.mxu0 %v265
    %1690 = vmatpush2.msra.mxu0 %v264
    %1691 = vmatprep.subr.mxu0 %v257
    %1692 = vmatpush2.msra.mxu0 %v256
    %1693 = vmatprep.subr.mxu0 %v249
    %1694 = vmatpush2.msra.mxu0 %v248
    %1695 = vmatprep.subr.mxu0 %v241
    %1696 = vmatpush2.msra.mxu0 %v240
    %1697 = vmatprep.subr.mxu0 %v233
    %1698 = vmatpush2.msra.mxu0 %v232
    %1699 = vmatprep.subr.mxu0 %v225
    %1700 = vmatpush2.msra.mxu0 %v224
    %1701 = vmatprep.subr.mxu0 %v217
    %1702 = vmatpush2.msra.mxu0 %v216
    %1703 = vmatprep.subr.mxu0 %v209
    %1704 = vmatpush2.msra.mxu0 %v208
    %1705 = vmatprep.mubr.f32.mxu0 %v1427
    %1706 = vmatmul.mubr.f32.gmra.mxu0 %v1403
    %v1707 = vpop.f32.mrf.mxu0
    %v1708 = vadd.f32 0.0, %v1707
    %v1709 = vpop.f32.mrf.mxu0
    %v1710 = vadd.f32 0.0, %v1709
    %1711 = vdwg.mxu0
    %v1712 = vadd.f32 %v368, %v1495
    %v1713 = vadd.f32 %v369, %v1497
    %v1714 = vadd.f32 %v370, %v1566
    %v1715 = vadd.f32 %v371, %v1568
    %v1716 = vadd.f32 %v1637, %v335
    %v1717 = vadd.f32 %v1639, %v339
    %v1718 = vadd.f32 %v1708, %v343
    %v1719 = vadd.f32 %v1710, %v347
    %v1720 = vxor.u32 %v1712, 2147483648
    %v1721 = vxor.u32 %v1713, 2147483648
    %v1722 = vmul.f32 %v1720, 1.442695
    %v1723 = vpow.pop %v1722
    %v1724 = vmul.f32 %v1721, 1.442695
    %v1725 = vpow.pop %v1724
    %v1726 = vadd.f32 %v1723, 1.0
    %v1727 = vadd.f32 %v1725, 1.0
    %v1728 = vrcp.pop %v1726
    %v1729 = vmul.f32 1.0, %v1728
    %v1730 = vrcp.pop %v1727
    %v1731 = vmul.f32 1.0, %v1730
    %v1732 = vtanh.pop %v1714
    %v1733 = vxor.u32 %v1715, 2147483648
    %v1734 = vmul.f32 %v1733, 1.442695
    %v1735 = vpow.pop %v1734
    %v1736 = vadd.f32 %v1735, 1.0
    %v1737 = vrcp.pop %v1736
    %v1738 = vmul.f32 1.0, %v1737
    %v1739 = vmul.f32 %v1731, %v1401
    %v1740 = vmul.f32 %v1729, %v1732
    %v1741 = vadd.f32 %v1739, %v1740
    %v1742 = vtanh.pop %v1741
    %v1743 = vmul.f32 %v1738, %v1742
    %v1744 = vxor.u32 %v1716, 2147483648
    %v1745 = vxor.u32 %v1717, 2147483648
    %v1746 = vmul.f32 %v1744, 1.442695
    %v1747 = vpow.pop %v1746
    %v1748 = vmul.f32 %v1745, 1.442695
    %v1749 = vpow.pop %v1748
    %v1750 = vadd.f32 %v1747, 1.0
    %v1751 = vadd.f32 %v1749, 1.0
    %v1752 = vrcp.pop %v1750
    %v1753 = vmul.f32 1.0, %v1752
    %v1754 = vrcp.pop %v1751
    %v1755 = vmul.f32 1.0, %v1754
    %v1756 = vtanh.pop %v1718
    %v1757 = vxor.u32 %v1719, 2147483648
    %v1758 = vmul.f32 %v1757, 1.442695
    %v1759 = vpow.pop %v1758
    %v1760 = vadd.f32 %v1759, 1.0
    %v1761 = vrcp.pop %v1760
    %v1762 = vmul.f32 1.0, %v1761
    %v1763 = vmul.f32 %v1755, %v1425
    %v1764 = vmul.f32 %v1753, %v1756
    %v1765 = vadd.f32 %v1763, %v1764
    %v1766 = vtanh.pop %v1765
    %v1767 = vmul.f32 %v1762, %v1766
    %1768 = vmatprep.subr.mxu0 %v195
    %1769 = vmatpush1.msra.mxu0 %v194
    %1770 = vmatprep.subr.mxu0 %v187
    %1771 = vmatpush1.msra.mxu0 %v186
    %1772 = vmatprep.subr.mxu0 %v179
    %1773 = vmatpush1.msra.mxu0 %v178
    %1774 = vmatprep.subr.mxu0 %v171
    %1775 = vmatpush1.msra.mxu0 %v170
    %1776 = vmatprep.subr.mxu0 %v163
    %1777 = vmatpush1.msra.mxu0 %v162
    %1778 = vmatprep.subr.mxu0 %v155
    %1779 = vmatpush1.msra.mxu0 %v154
    %1780 = vmatprep.subr.mxu0 %v147
    %1781 = vmatpush1.msra.mxu0 %v146
    %1782 = vmatprep.subr.mxu0 %v139
    %1783 = vmatpush1.msra.mxu0 %v138
    %1784 = vmatprep.subr.mxu0 %v131
    %1785 = vmatpush1.msra.mxu0 %v130
    %1786 = vmatprep.subr.mxu0 %v123
    %1787 = vmatpush1.msra.mxu0 %v122
    %1788 = vmatprep.subr.mxu0 %v115
    %1789 = vmatpush1.msra.mxu0 %v114
    %1790 = vmatprep.subr.mxu0 %v107
    %1791 = vmatpush1.msra.mxu0 %v106
    %1792 = vmatprep.subr.mxu0 %v99
    %1793 = vmatpush1.msra.mxu0 %v98
    %1794 = vmatprep.subr.mxu0 %v91
    %1795 = vmatpush1.msra.mxu0 %v90
    %1796 = vmatprep.subr.mxu0 %v83
    %1797 = vmatpush1.msra.mxu0 %v82
    %1798 = vmatprep.subr.mxu0 %v75
    %1799 = vmatpush1.msra.mxu0 %v74
    %1800 = vmatprep.subr.mxu0 %v323
    %1801 = vmatpush2.msra.mxu0 %v322
    %1802 = vmatprep.subr.mxu0 %v315
    %1803 = vmatpush2.msra.mxu0 %v314
    %1804 = vmatprep.subr.mxu0 %v307
    %1805 = vmatpush2.msra.mxu0 %v306
    %1806 = vmatprep.subr.mxu0 %v299
    %1807 = vmatpush2.msra.mxu0 %v298
    %1808 = vmatprep.subr.mxu0 %v291
    %1809 = vmatpush2.msra.mxu0 %v290
    %1810 = vmatprep.subr.mxu0 %v283
    %1811 = vmatpush2.msra.mxu0 %v282
    %1812 = vmatprep.subr.mxu0 %v275
    %1813 = vmatpush2.msra.mxu0 %v274
    %1814 = vmatprep.subr.mxu0 %v267
    %1815 = vmatpush2.msra.mxu0 %v266
    %1816 = vmatprep.subr.mxu0 %v259
    %1817 = vmatpush2.msra.mxu0 %v258
    %1818 = vmatprep.subr.mxu0 %v251
    %1819 = vmatpush2.msra.mxu0 %v250
    %1820 = vmatprep.subr.mxu0 %v243
    %1821 = vmatpush2.msra.mxu0 %v242
    %1822 = vmatprep.subr.mxu0 %v235
    %1823 = vmatpush2.msra.mxu0 %v234
    %1824 = vmatprep.subr.mxu0 %v227
    %1825 = vmatpush2.msra.mxu0 %v226
    %1826 = vmatprep.subr.mxu0 %v219
    %1827 = vmatpush2.msra.mxu0 %v218
    %1828 = vmatprep.subr.mxu0 %v211
    %1829 = vmatpush2.msra.mxu0 %v210
    %1830 = vmatprep.subr.mxu0 %v203
    %1831 = vmatpush2.msra.mxu0 %v202
    %1832 = vmatprep.mubr.f32.mxu0 %v1767
    %1833 = vmatmul.mubr.f32.gmra.mxu0 %v1743
    %v1834 = vpop.f32.mrf.mxu0
    %v1835 = vadd.f32 0.0, %v1834
    %v1836 = vpop.f32.mrf.mxu0
    %v1837 = vadd.f32 0.0, %v1836
    %1838 = vdwg.mxu0
    %1839 = vmatprep.subr.mxu0 %v197
    %1840 = vmatpush1.msra.mxu0 %v196
    %1841 = vmatprep.subr.mxu0 %v189
    %1842 = vmatpush1.msra.mxu0 %v188
    %1843 = vmatprep.subr.mxu0 %v181
    %1844 = vmatpush1.msra.mxu0 %v180
    %1845 = vmatprep.subr.mxu0 %v173
    %1846 = vmatpush1.msra.mxu0 %v172
    %1847 = vmatprep.subr.mxu0 %v165
    %1848 = vmatpush1.msra.mxu0 %v164
    %1849 = vmatprep.subr.mxu0 %v157
    %1850 = vmatpush1.msra.mxu0 %v156
    %1851 = vmatprep.subr.mxu0 %v149
    %1852 = vmatpush1.msra.mxu0 %v148
    %1853 = vmatprep.subr.mxu0 %v141
    %1854 = vmatpush1.msra.mxu0 %v140
    %1855 = vmatprep.subr.mxu0 %v133
    %1856 = vmatpush1.msra.mxu0 %v132
    %1857 = vmatprep.subr.mxu0 %v125
    %1858 = vmatpush1.msra.mxu0 %v124
    %1859 = vmatprep.subr.mxu0 %v117
    %1860 = vmatpush1.msra.mxu0 %v116
    %1861 = vmatprep.subr.mxu0 %v109
    %1862 = vmatpush1.msra.mxu0 %v108
    %1863 = vmatprep.subr.mxu0 %v101
    %1864 = vmatpush1.msra.mxu0 %v100
    %1865 = vmatprep.subr.mxu0 %v93
    %1866 = vmatpush1.msra.mxu0 %v92
    %1867 = vmatprep.subr.mxu0 %v85
    %1868 = vmatpush1.msra.mxu0 %v84
    %1869 = vmatprep.subr.mxu0 %v77
    %1870 = vmatpush1.msra.mxu0 %v76
    %1871 = vmatprep.subr.mxu0 %v325
    %1872 = vmatpush2.msra.mxu0 %v324
    %1873 = vmatprep.subr.mxu0 %v317
    %1874 = vmatpush2.msra.mxu0 %v316
    %1875 = vmatprep.subr.mxu0 %v309
    %1876 = vmatpush2.msra.mxu0 %v308
    %1877 = vmatprep.subr.mxu0 %v301
    %1878 = vmatpush2.msra.mxu0 %v300
    %1879 = vmatprep.subr.mxu0 %v293
    %1880 = vmatpush2.msra.mxu0 %v292
    %1881 = vmatprep.subr.mxu0 %v285
    %1882 = vmatpush2.msra.mxu0 %v284
    %1883 = vmatprep.subr.mxu0 %v277
    %1884 = vmatpush2.msra.mxu0 %v276
    %1885 = vmatprep.subr.mxu0 %v269
    %1886 = vmatpush2.msra.mxu0 %v268
    %1887 = vmatprep.subr.mxu0 %v261
    %1888 = vmatpush2.msra.mxu0 %v260
    %1889 = vmatprep.subr.mxu0 %v253
    %1890 = vmatpush2.msra.mxu0 %v252
    %1891 = vmatprep.subr.mxu0 %v245
    %1892 = vmatpush2.msra.mxu0 %v244
    %1893 = vmatprep.subr.mxu0 %v237
    %1894 = vmatpush2.msra.mxu0 %v236
    %1895 = vmatprep.subr.mxu0 %v229
    %1896 = vmatpush2.msra.mxu0 %v228
    %1897 = vmatprep.subr.mxu0 %v221
    %1898 = vmatpush2.msra.mxu0 %v220
    %1899 = vmatprep.subr.mxu0 %v213
    %1900 = vmatpush2.msra.mxu0 %v212
    %1901 = vmatprep.subr.mxu0 %v205
    %1902 = vmatpush2.msra.mxu0 %v204
    %1903 = vmatprep.mubr.f32.mxu0 %v1767
    %1904 = vmatmul.mubr.f32.gmra.mxu0 %v1743
    %v1905 = vpop.f32.mrf.mxu0
    %v1906 = vadd.f32 0.0, %v1905
    %v1907 = vpop.f32.mrf.mxu0
    %v1908 = vadd.f32 0.0, %v1907
    %1909 = vdwg.mxu0
    %1910 = vmatprep.subr.mxu0 %v199
    %1911 = vmatpush1.msra.mxu0 %v198
    %1912 = vmatprep.subr.mxu0 %v191
    %1913 = vmatpush1.msra.mxu0 %v190
    %1914 = vmatprep.subr.mxu0 %v183
    %1915 = vmatpush1.msra.mxu0 %v182
    %1916 = vmatprep.subr.mxu0 %v175
    %1917 = vmatpush1.msra.mxu0 %v174
    %1918 = vmatprep.subr.mxu0 %v167
    %1919 = vmatpush1.msra.mxu0 %v166
    %1920 = vmatprep.subr.mxu0 %v159
    %1921 = vmatpush1.msra.mxu0 %v158
    %1922 = vmatprep.subr.mxu0 %v151
    %1923 = vmatpush1.msra.mxu0 %v150
    %1924 = vmatprep.subr.mxu0 %v143
    %1925 = vmatpush1.msra.mxu0 %v142
    %1926 = vmatprep.subr.mxu0 %v135
    %1927 = vmatpush1.msra.mxu0 %v134
    %1928 = vmatprep.subr.mxu0 %v127
    %1929 = vmatpush1.msra.mxu0 %v126
    %1930 = vmatprep.subr.mxu0 %v119
    %1931 = vmatpush1.msra.mxu0 %v118
    %1932 = vmatprep.subr.mxu0 %v111
    %1933 = vmatpush1.msra.mxu0 %v110
    %1934 = vmatprep.subr.mxu0 %v103
    %1935 = vmatpush1.msra.mxu0 %v102
    %1936 = vmatprep.subr.mxu0 %v95
    %1937 = vmatpush1.msra.mxu0 %v94
    %1938 = vmatprep.subr.mxu0 %v87
    %1939 = vmatpush1.msra.mxu0 %v86
    %1940 = vmatprep.subr.mxu0 %v79
    %1941 = vmatpush1.msra.mxu0 %v78
    %1942 = vmatprep.subr.mxu0 %v327
    %1943 = vmatpush2.msra.mxu0 %v326
    %1944 = vmatprep.subr.mxu0 %v319
    %1945 = vmatpush2.msra.mxu0 %v318
    %1946 = vmatprep.subr.mxu0 %v311
    %1947 = vmatpush2.msra.mxu0 %v310
    %1948 = vmatprep.subr.mxu0 %v303
    %1949 = vmatpush2.msra.mxu0 %v302
    %1950 = vmatprep.subr.mxu0 %v295
    %1951 = vmatpush2.msra.mxu0 %v294
    %1952 = vmatprep.subr.mxu0 %v287
    %1953 = vmatpush2.msra.mxu0 %v286
    %1954 = vmatprep.subr.mxu0 %v279
    %1955 = vmatpush2.msra.mxu0 %v278
    %1956 = vmatprep.subr.mxu0 %v271
    %1957 = vmatpush2.msra.mxu0 %v270
    %1958 = vmatprep.subr.mxu0 %v263
    %1959 = vmatpush2.msra.mxu0 %v262
    %1960 = vmatprep.subr.mxu0 %v255
    %1961 = vmatpush2.msra.mxu0 %v254
    %1962 = vmatprep.subr.mxu0 %v247
    %1963 = vmatpush2.msra.mxu0 %v246
    %1964 = vmatprep.subr.mxu0 %v239
    %1965 = vmatpush2.msra.mxu0 %v238
    %1966 = vmatprep.subr.mxu0 %v231
    %1967 = vmatpush2.msra.mxu0 %v230
    %1968 = vmatprep.subr.mxu0 %v223
    %1969 = vmatpush2.msra.mxu0 %v222
    %1970 = vmatprep.subr.mxu0 %v215
    %1971 = vmatpush2.msra.mxu0 %v214
    %1972 = vmatprep.subr.mxu0 %v207
    %1973 = vmatpush2.msra.mxu0 %v206
    %1974 = vmatprep.mubr.f32.mxu0 %v1767
    %1975 = vmatmul.mubr.f32.gmra.mxu0 %v1743
    %v1976 = vpop.f32.mrf.mxu0
    %v1977 = vadd.f32 0.0, %v1976
    %v1978 = vpop.f32.mrf.mxu0
    %v1979 = vadd.f32 0.0, %v1978
    %1980 = vdwg.mxu0
    %1981 = vmatprep.subr.mxu0 %v201
    %1982 = vmatpush1.msra.mxu0 %v200
    %1983 = vmatprep.subr.mxu0 %v193
    %1984 = vmatpush1.msra.mxu0 %v192
    %1985 = vmatprep.subr.mxu0 %v185
    %1986 = vmatpush1.msra.mxu0 %v184
    %1987 = vmatprep.subr.mxu0 %v177
    %1988 = vmatpush1.msra.mxu0 %v176
    %1989 = vmatprep.subr.mxu0 %v169
    %1990 = vmatpush1.msra.mxu0 %v168
    %1991 = vmatprep.subr.mxu0 %v161
    %1992 = vmatpush1.msra.mxu0 %v160
    %1993 = vmatprep.subr.mxu0 %v153
    %1994 = vmatpush1.msra.mxu0 %v152
    %1995 = vmatprep.subr.mxu0 %v145
    %1996 = vmatpush1.msra.mxu0 %v144
    %1997 = vmatprep.subr.mxu0 %v137
    %1998 = vmatpush1.msra.mxu0 %v136
    %1999 = vmatprep.subr.mxu0 %v129
    %2000 = vmatpush1.msra.mxu0 %v128
    %2001 = vmatprep.subr.mxu0 %v121
    %2002 = vmatpush1.msra.mxu0 %v120
    %2003 = vmatprep.subr.mxu0 %v113
    %2004 = vmatpush1.msra.mxu0 %v112
    %2005 = vmatprep.subr.mxu0 %v105
    %2006 = vmatpush1.msra.mxu0 %v104
    %2007 = vmatprep.subr.mxu0 %v97
    %2008 = vmatpush1.msra.mxu0 %v96
    %2009 = vmatprep.subr.mxu0 %v89
    %2010 = vmatpush1.msra.mxu0 %v88
    %2011 = vmatprep.subr.mxu0 %v81
    %2012 = vmatpush1.msra.mxu0 %v80
    %2013 = vmatprep.subr.mxu0 %v329
    %2014 = vmatpush2.msra.mxu0 %v328
    %2015 = vmatprep.subr.mxu0 %v321
    %2016 = vmatpush2.msra.mxu0 %v320
    %2017 = vmatprep.subr.mxu0 %v313
    %2018 = vmatpush2.msra.mxu0 %v312
    %2019 = vmatprep.subr.mxu0 %v305
    %2020 = vmatpush2.msra.mxu0 %v304
    %2021 = vmatprep.subr.mxu0 %v297
    %2022 = vmatpush2.msra.mxu0 %v296
    %2023 = vmatprep.subr.mxu0 %v289
    %2024 = vmatpush2.msra.mxu0 %v288
    %2025 = vmatprep.subr.mxu0 %v281
    %2026 = vmatpush2.msra.mxu0 %v280
    %2027 = vmatprep.subr.mxu0 %v273
    %2028 = vmatpush2.msra.mxu0 %v272
    %2029 = vmatprep.subr.mxu0 %v265
    %2030 = vmatpush2.msra.mxu0 %v264
    %2031 = vmatprep.subr.mxu0 %v257
    %2032 = vmatpush2.msra.mxu0 %v256
    %2033 = vmatprep.subr.mxu0 %v249
    %2034 = vmatpush2.msra.mxu0 %v248
    %2035 = vmatprep.subr.mxu0 %v241
    %2036 = vmatpush2.msra.mxu0 %v240
    %2037 = vmatprep.subr.mxu0 %v233
    %2038 = vmatpush2.msra.mxu0 %v232
    %2039 = vmatprep.subr.mxu0 %v225
    %2040 = vmatpush2.msra.mxu0 %v224
    %2041 = vmatprep.subr.mxu0 %v217
    %2042 = vmatpush2.msra.mxu0 %v216
    %2043 = vmatprep.subr.mxu0 %v209
    %2044 = vmatpush2.msra.mxu0 %v208
    %2045 = vmatprep.mubr.f32.mxu0 %v1767
    %2046 = vmatmul.mubr.f32.gmra.mxu0 %v1743
    %v2047 = vpop.f32.mrf.mxu0
    %v2048 = vadd.f32 0.0, %v2047
    %v2049 = vpop.f32.mrf.mxu0
    %v2050 = vadd.f32 0.0, %v2049
    %2051 = vdwg.mxu0
    %v2052 = vadd.f32 %v372, %v1835
    %v2053 = vadd.f32 %v373, %v1837
    %v2054 = vadd.f32 %v374, %v1906
    %v2055 = vadd.f32 %v375, %v1908
    %v2056 = vadd.f32 %v1977, %v335
    %v2057 = vadd.f32 %v1979, %v339
    %v2058 = vadd.f32 %v2048, %v343
    %v2059 = vadd.f32 %v2050, %v347
    %v2060 = vxor.u32 %v2052, 2147483648
    %v2061 = vxor.u32 %v2053, 2147483648
    %v2062 = vmul.f32 %v2060, 1.442695
    %v2063 = vpow.pop %v2062
    %v2064 = vmul.f32 %v2061, 1.442695
    %v2065 = vpow.pop %v2064
    %v2066 = vadd.f32 %v2063, 1.0
    %v2067 = vadd.f32 %v2065, 1.0
    %v2068 = vrcp.pop %v2066
    %v2069 = vmul.f32 1.0, %v2068
    %v2070 = vrcp.pop %v2067
    %v2071 = vmul.f32 1.0, %v2070
    %v2072 = vtanh.pop %v2054
    %v2073 = vxor.u32 %v2055, 2147483648
    %v2074 = vmul.f32 %v2073, 1.442695
    %v2075 = vpow.pop %v2074
    %v2076 = vadd.f32 %v2075, 1.0
    %v2077 = vrcp.pop %v2076
    %v2078 = vmul.f32 1.0, %v2077
    %v2079 = vmul.f32 %v2071, %v1741
    %v2080 = vmul.f32 %v2069, %v2072
    %v2081 = vadd.f32 %v2079, %v2080
    %v2082 = vtanh.pop %v2081
    %v2083 = vmul.f32 %v2078, %v2082
    %v2084 = vxor.u32 %v2056, 2147483648
    %v2085 = vxor.u32 %v2057, 2147483648
    %v2086 = vmul.f32 %v2084, 1.442695
    %v2087 = vpow.pop %v2086
    %v2088 = vmul.f32 %v2085, 1.442695
    %v2089 = vpow.pop %v2088
    %v2090 = vadd.f32 %v2087, 1.0
    %v2091 = vadd.f32 %v2089, 1.0
    %v2092 = vrcp.pop %v2090
    %v2093 = vmul.f32 1.0, %v2092
    %v2094 = vrcp.pop %v2091
    %v2095 = vmul.f32 1.0, %v2094
    %v2096 = vtanh.pop %v2058
    %v2097 = vxor.u32 %v2059, 2147483648
    %v2098 = vmul.f32 %v2097, 1.442695
    %v2099 = vpow.pop %v2098
    %v2100 = vadd.f32 %v2099, 1.0
    %v2101 = vrcp.pop %v2100
    %v2102 = vmul.f32 1.0, %v2101
    %v2103 = vmul.f32 %v2095, %v1765
    %v2104 = vmul.f32 %v2093, %v2096
    %v2105 = vadd.f32 %v2103, %v2104
    %v2106 = vtanh.pop %v2105
    %v2107 = vmul.f32 %v2102, %v2106
    %2108 = vmatprep.subr.mxu0 %v195
    %2109 = vmatpush1.msra.mxu0 %v194
    %2110 = vmatprep.subr.mxu0 %v187
    %2111 = vmatpush1.msra.mxu0 %v186
    %2112 = vmatprep.subr.mxu0 %v179
    %2113 = vmatpush1.msra.mxu0 %v178
    %2114 = vmatprep.subr.mxu0 %v171
    %2115 = vmatpush1.msra.mxu0 %v170
    %2116 = vmatprep.subr.mxu0 %v163
    %2117 = vmatpush1.msra.mxu0 %v162
    %2118 = vmatprep.subr.mxu0 %v155
    %2119 = vmatpush1.msra.mxu0 %v154
    %2120 = vmatprep.subr.mxu0 %v147
    %2121 = vmatpush1.msra.mxu0 %v146
    %2122 = vmatprep.subr.mxu0 %v139
    %2123 = vmatpush1.msra.mxu0 %v138
    %2124 = vmatprep.subr.mxu0 %v131
    %2125 = vmatpush1.msra.mxu0 %v130
    %2126 = vmatprep.subr.mxu0 %v123
    %2127 = vmatpush1.msra.mxu0 %v122
    %2128 = vmatprep.subr.mxu0 %v115
    %2129 = vmatpush1.msra.mxu0 %v114
    %2130 = vmatprep.subr.mxu0 %v107
    %2131 = vmatpush1.msra.mxu0 %v106
    %2132 = vmatprep.subr.mxu0 %v99
    %2133 = vmatpush1.msra.mxu0 %v98
    %2134 = vmatprep.subr.mxu0 %v91
    %2135 = vmatpush1.msra.mxu0 %v90
    %2136 = vmatprep.subr.mxu0 %v83
    %2137 = vmatpush1.msra.mxu0 %v82
    %2138 = vmatprep.subr.mxu0 %v75
    %2139 = vmatpush1.msra.mxu0 %v74
    %2140 = vmatprep.subr.mxu0 %v323
    %2141 = vmatpush2.msra.mxu0 %v322
    %2142 = vmatprep.subr.mxu0 %v315
    %2143 = vmatpush2.msra.mxu0 %v314
    %2144 = vmatprep.subr.mxu0 %v307
    %2145 = vmatpush2.msra.mxu0 %v306
    %2146 = vmatprep.subr.mxu0 %v299
    %2147 = vmatpush2.msra.mxu0 %v298
    %2148 = vmatprep.subr.mxu0 %v291
    %2149 = vmatpush2.msra.mxu0 %v290
    %2150 = vmatprep.subr.mxu0 %v283
    %2151 = vmatpush2.msra.mxu0 %v282
    %2152 = vmatprep.subr.mxu0 %v275
    %2153 = vmatpush2.msra.mxu0 %v274
    %2154 = vmatprep.subr.mxu0 %v267
    %2155 = vmatpush2.msra.mxu0 %v266
    %2156 = vmatprep.subr.mxu0 %v259
    %2157 = vmatpush2.msra.mxu0 %v258
    %2158 = vmatprep.subr.mxu0 %v251
    %2159 = vmatpush2.msra.mxu0 %v250
    %2160 = vmatprep.subr.mxu0 %v243
    %2161 = vmatpush2.msra.mxu0 %v242
    %2162 = vmatprep.subr.mxu0 %v235
    %2163 = vmatpush2.msra.mxu0 %v234
    %2164 = vmatprep.subr.mxu0 %v227
    %2165 = vmatpush2.msra.mxu0 %v226
    %2166 = vmatprep.subr.mxu0 %v219
    %2167 = vmatpush2.msra.mxu0 %v218
    %2168 = vmatprep.subr.mxu0 %v211
    %2169 = vmatpush2.msra.mxu0 %v210
    %2170 = vmatprep.subr.mxu0 %v203
    %2171 = vmatpush2.msra.mxu0 %v202
    %2172 = vmatprep.mubr.f32.mxu0 %v2107
    %2173 = vmatmul.mubr.f32.gmra.mxu0 %v2083
    %v2174 = vpop.f32.mrf.mxu0
    %v2175 = vadd.f32 0.0, %v2174
    %v2176 = vpop.f32.mrf.mxu0
    %v2177 = vadd.f32 0.0, %v2176
    %2178 = vdwg.mxu0
    %2179 = vmatprep.subr.mxu0 %v197
    %2180 = vmatpush1.msra.mxu0 %v196
    %2181 = vmatprep.subr.mxu0 %v189
    %2182 = vmatpush1.msra.mxu0 %v188
    %2183 = vmatprep.subr.mxu0 %v181
    %2184 = vmatpush1.msra.mxu0 %v180
    %2185 = vmatprep.subr.mxu0 %v173
    %2186 = vmatpush1.msra.mxu0 %v172
    %2187 = vmatprep.subr.mxu0 %v165
    %2188 = vmatpush1.msra.mxu0 %v164
    %2189 = vmatprep.subr.mxu0 %v157
    %2190 = vmatpush1.msra.mxu0 %v156
    %2191 = vmatprep.subr.mxu0 %v149
    %2192 = vmatpush1.msra.mxu0 %v148
    %2193 = vmatprep.subr.mxu0 %v141
    %2194 = vmatpush1.msra.mxu0 %v140
    %2195 = vmatprep.subr.mxu0 %v133
    %2196 = vmatpush1.msra.mxu0 %v132
    %2197 = vmatprep.subr.mxu0 %v125
    %2198 = vmatpush1.msra.mxu0 %v124
    %2199 = vmatprep.subr.mxu0 %v117
    %2200 = vmatpush1.msra.mxu0 %v116
    %2201 = vmatprep.subr.mxu0 %v109
    %2202 = vmatpush1.msra.mxu0 %v108
    %2203 = vmatprep.subr.mxu0 %v101
    %2204 = vmatpush1.msra.mxu0 %v100
    %2205 = vmatprep.subr.mxu0 %v93
    %2206 = vmatpush1.msra.mxu0 %v92
    %2207 = vmatprep.subr.mxu0 %v85
    %2208 = vmatpush1.msra.mxu0 %v84
    %2209 = vmatprep.subr.mxu0 %v77
    %2210 = vmatpush1.msra.mxu0 %v76
    %2211 = vmatprep.subr.mxu0 %v325
    %2212 = vmatpush2.msra.mxu0 %v324
    %2213 = vmatprep.subr.mxu0 %v317
    %2214 = vmatpush2.msra.mxu0 %v316
    %2215 = vmatprep.subr.mxu0 %v309
    %2216 = vmatpush2.msra.mxu0 %v308
    %2217 = vmatprep.subr.mxu0 %v301
    %2218 = vmatpush2.msra.mxu0 %v300
    %2219 = vmatprep.subr.mxu0 %v293
    %2220 = vmatpush2.msra.mxu0 %v292
    %2221 = vmatprep.subr.mxu0 %v285
    %2222 = vmatpush2.msra.mxu0 %v284
    %2223 = vmatprep.subr.mxu0 %v277
    %2224 = vmatpush2.msra.mxu0 %v276
    %2225 = vmatprep.subr.mxu0 %v269
    %2226 = vmatpush2.msra.mxu0 %v268
    %2227 = vmatprep.subr.mxu0 %v261
    %2228 = vmatpush2.msra.mxu0 %v260
    %2229 = vmatprep.subr.mxu0 %v253
    %2230 = vmatpush2.msra.mxu0 %v252
    %2231 = vmatprep.subr.mxu0 %v245
    %2232 = vmatpush2.msra.mxu0 %v244
    %2233 = vmatprep.subr.mxu0 %v237
    %2234 = vmatpush2.msra.mxu0 %v236
    %2235 = vmatprep.subr.mxu0 %v229
    %2236 = vmatpush2.msra.mxu0 %v228
    %2237 = vmatprep.subr.mxu0 %v221
    %2238 = vmatpush2.msra.mxu0 %v220
    %2239 = vmatprep.subr.mxu0 %v213
    %2240 = vmatpush2.msra.mxu0 %v212
    %2241 = vmatprep.subr.mxu0 %v205
    %2242 = vmatpush2.msra.mxu0 %v204
    %2243 = vmatprep.mubr.f32.mxu0 %v2107
    %2244 = vmatmul.mubr.f32.gmra.mxu0 %v2083
    %v2245 = vpop.f32.mrf.mxu0
    %v2246 = vadd.f32 0.0, %v2245
    %v2247 = vpop.f32.mrf.mxu0
    %v2248 = vadd.f32 0.0, %v2247
    %2249 = vdwg.mxu0
    %2250 = vmatprep.subr.mxu0 %v199
    %2251 = vmatpush1.msra.mxu0 %v198
    %2252 = vmatprep.subr.mxu0 %v191
    %2253 = vmatpush1.msra.mxu0 %v190
    %2254 = vmatprep.subr.mxu0 %v183
    %2255 = vmatpush1.msra.mxu0 %v182
    %2256 = vmatprep.subr.mxu0 %v175
    %2257 = vmatpush1.msra.mxu0 %v174
    %2258 = vmatprep.subr.mxu0 %v167
    %2259 = vmatpush1.msra.mxu0 %v166
    %2260 = vmatprep.subr.mxu0 %v159
    %2261 = vmatpush1.msra.mxu0 %v158
    %2262 = vmatprep.subr.mxu0 %v151
    %2263 = vmatpush1.msra.mxu0 %v150
    %2264 = vmatprep.subr.mxu0 %v143
    %2265 = vmatpush1.msra.mxu0 %v142
    %2266 = vmatprep.subr.mxu0 %v135
    %2267 = vmatpush1.msra.mxu0 %v134
    %2268 = vmatprep.subr.mxu0 %v127
    %2269 = vmatpush1.msra.mxu0 %v126
    %2270 = vmatprep.subr.mxu0 %v119
    %2271 = vmatpush1.msra.mxu0 %v118
    %2272 = vmatprep.subr.mxu0 %v111
    %2273 = vmatpush1.msra.mxu0 %v110
    %2274 = vmatprep.subr.mxu0 %v103
    %2275 = vmatpush1.msra.mxu0 %v102
    %2276 = vmatprep.subr.mxu0 %v95
    %2277 = vmatpush1.msra.mxu0 %v94
    %2278 = vmatprep.subr.mxu0 %v87
    %2279 = vmatpush1.msra.mxu0 %v86
    %2280 = vmatprep.subr.mxu0 %v79
    %2281 = vmatpush1.msra.mxu0 %v78
    %2282 = vmatprep.subr.mxu0 %v327
    %2283 = vmatpush2.msra.mxu0 %v326
    %2284 = vmatprep.subr.mxu0 %v319
    %2285 = vmatpush2.msra.mxu0 %v318
    %2286 = vmatprep.subr.mxu0 %v311
    %2287 = vmatpush2.msra.mxu0 %v310
    %2288 = vmatprep.subr.mxu0 %v303
    %2289 = vmatpush2.msra.mxu0 %v302
    %2290 = vmatprep.subr.mxu0 %v295
    %2291 = vmatpush2.msra.mxu0 %v294
    %2292 = vmatprep.subr.mxu0 %v287
    %2293 = vmatpush2.msra.mxu0 %v286
    %2294 = vmatprep.subr.mxu0 %v279
    %2295 = vmatpush2.msra.mxu0 %v278
    %2296 = vmatprep.subr.mxu0 %v271
    %2297 = vmatpush2.msra.mxu0 %v270
    %2298 = vmatprep.subr.mxu0 %v263
    %2299 = vmatpush2.msra.mxu0 %v262
    %2300 = vmatprep.subr.mxu0 %v255
    %2301 = vmatpush2.msra.mxu0 %v254
    %2302 = vmatprep.subr.mxu0 %v247
    %2303 = vmatpush2.msra.mxu0 %v246
    %2304 = vmatprep.subr.mxu0 %v239
    %2305 = vmatpush2.msra.mxu0 %v238
    %2306 = vmatprep.subr.mxu0 %v231
    %2307 = vmatpush2.msra.mxu0 %v230
    %2308 = vmatprep.subr.mxu0 %v223
    %2309 = vmatpush2.msra.mxu0 %v222
    %2310 = vmatprep.subr.mxu0 %v215
    %2311 = vmatpush2.msra.mxu0 %v214
    %2312 = vmatprep.subr.mxu0 %v207
    %2313 = vmatpush2.msra.mxu0 %v206
    %2314 = vmatprep.mubr.f32.mxu0 %v2107
    %2315 = vmatmul.mubr.f32.gmra.mxu0 %v2083
    %v2316 = vpop.f32.mrf.mxu0
    %v2317 = vadd.f32 0.0, %v2316
    %v2318 = vpop.f32.mrf.mxu0
    %v2319 = vadd.f32 0.0, %v2318
    %2320 = vdwg.mxu0
    %2321 = vmatprep.subr.mxu0 %v201
    %2322 = vmatpush1.msra.mxu0 %v200
    %2323 = vmatprep.subr.mxu0 %v193
    %2324 = vmatpush1.msra.mxu0 %v192
    %2325 = vmatprep.subr.mxu0 %v185
    %2326 = vmatpush1.msra.mxu0 %v184
    %2327 = vmatprep.subr.mxu0 %v177
    %2328 = vmatpush1.msra.mxu0 %v176
    %2329 = vmatprep.subr.mxu0 %v169
    %2330 = vmatpush1.msra.mxu0 %v168
    %2331 = vmatprep.subr.mxu0 %v161
    %2332 = vmatpush1.msra.mxu0 %v160
    %2333 = vmatprep.subr.mxu0 %v153
    %2334 = vmatpush1.msra.mxu0 %v152
    %2335 = vmatprep.subr.mxu0 %v145
    %2336 = vmatpush1.msra.mxu0 %v144
    %2337 = vmatprep.subr.mxu0 %v137
    %2338 = vmatpush1.msra.mxu0 %v136
    %2339 = vmatprep.subr.mxu0 %v129
    %2340 = vmatpush1.msra.mxu0 %v128
    %2341 = vmatprep.subr.mxu0 %v121
    %2342 = vmatpush1.msra.mxu0 %v120
    %2343 = vmatprep.subr.mxu0 %v113
    %2344 = vmatpush1.msra.mxu0 %v112
    %2345 = vmatprep.subr.mxu0 %v105
    %2346 = vmatpush1.msra.mxu0 %v104
    %2347 = vmatprep.subr.mxu0 %v97
    %2348 = vmatpush1.msra.mxu0 %v96
    %2349 = vmatprep.subr.mxu0 %v89
    %2350 = vmatpush1.msra.mxu0 %v88
    %2351 = vmatprep.subr.mxu0 %v81
    %2352 = vmatpush1.msra.mxu0 %v80
    %2353 = vmatprep.subr.mxu0 %v329
    %2354 = vmatpush2.msra.mxu0 %v328
    %2355 = vmatprep.subr.mxu0 %v321
    %2356 = vmatpush2.msra.mxu0 %v320
    %2357 = vmatprep.subr.mxu0 %v313
    %2358 = vmatpush2.msra.mxu0 %v312
    %2359 = vmatprep.subr.mxu0 %v305
    %2360 = vmatpush2.msra.mxu0 %v304
    %2361 = vmatprep.subr.mxu0 %v297
    %2362 = vmatpush2.msra.mxu0 %v296
    %2363 = vmatprep.subr.mxu0 %v289
    %2364 = vmatpush2.msra.mxu0 %v288
    %2365 = vmatprep.subr.mxu0 %v281
    %2366 = vmatpush2.msra.mxu0 %v280
    %2367 = vmatprep.subr.mxu0 %v273
    %2368 = vmatpush2.msra.mxu0 %v272
    %2369 = vmatprep.subr.mxu0 %v265
    %2370 = vmatpush2.msra.mxu0 %v264
    %2371 = vmatprep.subr.mxu0 %v257
    %2372 = vmatpush2.msra.mxu0 %v256
    %2373 = vmatprep.subr.mxu0 %v249
    %2374 = vmatpush2.msra.mxu0 %v248
    %2375 = vmatprep.subr.mxu0 %v241
    %2376 = vmatpush2.msra.mxu0 %v240
    %2377 = vmatprep.subr.mxu0 %v233
    %2378 = vmatpush2.msra.mxu0 %v232
    %2379 = vmatprep.subr.mxu0 %v225
    %2380 = vmatpush2.msra.mxu0 %v224
    %2381 = vmatprep.subr.mxu0 %v217
    %2382 = vmatpush2.msra.mxu0 %v216
    %2383 = vmatprep.subr.mxu0 %v209
    %2384 = vmatpush2.msra.mxu0 %v208
    %2385 = vmatprep.mubr.f32.mxu0 %v2107
    %2386 = vmatmul.mubr.f32.gmra.mxu0 %v2083
    %v2387 = vpop.f32.mrf.mxu0
    %v2388 = vadd.f32 0.0, %v2387
    %v2389 = vpop.f32.mrf.mxu0
    %v2390 = vadd.f32 0.0, %v2389
    %2391 = vdwg.mxu0
    %v2392 = vadd.f32 %v376, %v2175
    %v2393 = vadd.f32 %v377, %v2177
    %v2394 = vadd.f32 %v378, %v2246
    %v2395 = vadd.f32 %v379, %v2248
    %v2396 = vadd.f32 %v2317, %v335
    %v2397 = vadd.f32 %v2319, %v339
    %v2398 = vadd.f32 %v2388, %v343
    %v2399 = vadd.f32 %v2390, %v347
    %v2400 = vxor.u32 %v2392, 2147483648
    %v2401 = vxor.u32 %v2393, 2147483648
    %v2402 = vmul.f32 %v2400, 1.442695
    %v2403 = vpow.pop %v2402
    %v2404 = vmul.f32 %v2401, 1.442695
    %v2405 = vpow.pop %v2404
    %v2406 = vadd.f32 %v2403, 1.0
    %v2407 = vadd.f32 %v2405, 1.0
    %v2408 = vrcp.pop %v2406
    %v2409 = vmul.f32 1.0, %v2408
    %v2410 = vrcp.pop %v2407
    %v2411 = vmul.f32 1.0, %v2410
    %v2412 = vtanh.pop %v2394
    %v2413 = vxor.u32 %v2395, 2147483648
    %v2414 = vmul.f32 %v2413, 1.442695
    %v2415 = vpow.pop %v2414
    %v2416 = vadd.f32 %v2415, 1.0
    %v2417 = vrcp.pop %v2416
    %v2418 = vmul.f32 1.0, %v2417
    %v2419 = vmul.f32 %v2411, %v2081
    %v2420 = vmul.f32 %v2409, %v2412
    %v2421 = vadd.f32 %v2419, %v2420
    %v2422 = vtanh.pop %v2421
    %v2423 = vmul.f32 %v2418, %v2422
    %v2424 = vxor.u32 %v2396, 2147483648
    %v2425 = vxor.u32 %v2397, 2147483648
    %v2426 = vmul.f32 %v2424, 1.442695
    %v2427 = vpow.pop %v2426
    %v2428 = vmul.f32 %v2425, 1.442695
    %v2429 = vpow.pop %v2428
    %v2430 = vadd.f32 %v2427, 1.0
    %v2431 = vadd.f32 %v2429, 1.0
    %v2432 = vrcp.pop %v2430
    %v2433 = vmul.f32 1.0, %v2432
    %v2434 = vrcp.pop %v2431
    %v2435 = vmul.f32 1.0, %v2434
    %v2436 = vtanh.pop %v2398
    %v2437 = vxor.u32 %v2399, 2147483648
    %v2438 = vmul.f32 %v2437, 1.442695
    %v2439 = vpow.pop %v2438
    %v2440 = vadd.f32 %v2439, 1.0
    %v2441 = vrcp.pop %v2440
    %v2442 = vmul.f32 1.0, %v2441
    %v2443 = vmul.f32 %v2435, %v2105
    %v2444 = vmul.f32 %v2433, %v2436
    %v2445 = vadd.f32 %v2443, %v2444
    %v2446 = vtanh.pop %v2445
    %v2447 = vmul.f32 %v2442, %v2446
    %2448 = vmatprep.subr.mxu0 %v195
    %2449 = vmatpush1.msra.mxu0 %v194
    %2450 = vmatprep.subr.mxu0 %v187
    %2451 = vmatpush1.msra.mxu0 %v186
    %2452 = vmatprep.subr.mxu0 %v179
    %2453 = vmatpush1.msra.mxu0 %v178
    %2454 = vmatprep.subr.mxu0 %v171
    %2455 = vmatpush1.msra.mxu0 %v170
    %2456 = vmatprep.subr.mxu0 %v163
    %2457 = vmatpush1.msra.mxu0 %v162
    %2458 = vmatprep.subr.mxu0 %v155
    %2459 = vmatpush1.msra.mxu0 %v154
    %2460 = vmatprep.subr.mxu0 %v147
    %2461 = vmatpush1.msra.mxu0 %v146
    %2462 = vmatprep.subr.mxu0 %v139
    %2463 = vmatpush1.msra.mxu0 %v138
    %2464 = vmatprep.subr.mxu0 %v131
    %2465 = vmatpush1.msra.mxu0 %v130
    %2466 = vmatprep.subr.mxu0 %v123
    %2467 = vmatpush1.msra.mxu0 %v122
    %2468 = vmatprep.subr.mxu0 %v115
    %2469 = vmatpush1.msra.mxu0 %v114
    %2470 = vmatprep.subr.mxu0 %v107
    %2471 = vmatpush1.msra.mxu0 %v106
    %2472 = vmatprep.subr.mxu0 %v99
    %2473 = vmatpush1.msra.mxu0 %v98
    %2474 = vmatprep.subr.mxu0 %v91
    %2475 = vmatpush1.msra.mxu0 %v90
    %2476 = vmatprep.subr.mxu0 %v83
    %2477 = vmatpush1.msra.mxu0 %v82
    %2478 = vmatprep.subr.mxu0 %v75
    %2479 = vmatpush1.msra.mxu0 %v74
    %2480 = vmatprep.subr.mxu0 %v323
    %2481 = vmatpush2.msra.mxu0 %v322
    %2482 = vmatprep.subr.mxu0 %v315
    %2483 = vmatpush2.msra.mxu0 %v314
    %2484 = vmatprep.subr.mxu0 %v307
    %2485 = vmatpush2.msra.mxu0 %v306
    %2486 = vmatprep.subr.mxu0 %v299
    %2487 = vmatpush2.msra.mxu0 %v298
    %2488 = vmatprep.subr.mxu0 %v291
    %2489 = vmatpush2.msra.mxu0 %v290
    %2490 = vmatprep.subr.mxu0 %v283
    %2491 = vmatpush2.msra.mxu0 %v282
    %2492 = vmatprep.subr.mxu0 %v275
    %2493 = vmatpush2.msra.mxu0 %v274
    %2494 = vmatprep.subr.mxu0 %v267
    %2495 = vmatpush2.msra.mxu0 %v266
    %2496 = vmatprep.subr.mxu0 %v259
    %2497 = vmatpush2.msra.mxu0 %v258
    %2498 = vmatprep.subr.mxu0 %v251
    %2499 = vmatpush2.msra.mxu0 %v250
    %2500 = vmatprep.subr.mxu0 %v243
    %2501 = vmatpush2.msra.mxu0 %v242
    %2502 = vmatprep.subr.mxu0 %v235
    %2503 = vmatpush2.msra.mxu0 %v234
    %2504 = vmatprep.subr.mxu0 %v227
    %2505 = vmatpush2.msra.mxu0 %v226
    %2506 = vmatprep.subr.mxu0 %v219
    %2507 = vmatpush2.msra.mxu0 %v218
    %2508 = vmatprep.subr.mxu0 %v211
    %2509 = vmatpush2.msra.mxu0 %v210
    %2510 = vmatprep.subr.mxu0 %v203
    %2511 = vmatpush2.msra.mxu0 %v202
    %2512 = vmatprep.mubr.f32.mxu0 %v2447
    %2513 = vmatmul.mubr.f32.gmra.mxu0 %v2423
    %v2514 = vpop.f32.mrf.mxu0
    %v2515 = vadd.f32 0.0, %v2514
    %v2516 = vpop.f32.mrf.mxu0
    %v2517 = vadd.f32 0.0, %v2516
    %2518 = vdwg.mxu0
    %2519 = vmatprep.subr.mxu0 %v197
    %2520 = vmatpush1.msra.mxu0 %v196
    %2521 = vmatprep.subr.mxu0 %v189
    %2522 = vmatpush1.msra.mxu0 %v188
    %2523 = vmatprep.subr.mxu0 %v181
    %2524 = vmatpush1.msra.mxu0 %v180
    %2525 = vmatprep.subr.mxu0 %v173
    %2526 = vmatpush1.msra.mxu0 %v172
    %2527 = vmatprep.subr.mxu0 %v165
    %2528 = vmatpush1.msra.mxu0 %v164
    %2529 = vmatprep.subr.mxu0 %v157
    %2530 = vmatpush1.msra.mxu0 %v156
    %2531 = vmatprep.subr.mxu0 %v149
    %2532 = vmatpush1.msra.mxu0 %v148
    %2533 = vmatprep.subr.mxu0 %v141
    %2534 = vmatpush1.msra.mxu0 %v140
    %2535 = vmatprep.subr.mxu0 %v133
    %2536 = vmatpush1.msra.mxu0 %v132
    %2537 = vmatprep.subr.mxu0 %v125
    %2538 = vmatpush1.msra.mxu0 %v124
    %2539 = vmatprep.subr.mxu0 %v117
    %2540 = vmatpush1.msra.mxu0 %v116
    %2541 = vmatprep.subr.mxu0 %v109
    %2542 = vmatpush1.msra.mxu0 %v108
    %2543 = vmatprep.subr.mxu0 %v101
    %2544 = vmatpush1.msra.mxu0 %v100
    %2545 = vmatprep.subr.mxu0 %v93
    %2546 = vmatpush1.msra.mxu0 %v92
    %2547 = vmatprep.subr.mxu0 %v85
    %2548 = vmatpush1.msra.mxu0 %v84
    %2549 = vmatprep.subr.mxu0 %v77
    %2550 = vmatpush1.msra.mxu0 %v76
    %2551 = vmatprep.subr.mxu0 %v325
    %2552 = vmatpush2.msra.mxu0 %v324
    %2553 = vmatprep.subr.mxu0 %v317
    %2554 = vmatpush2.msra.mxu0 %v316
    %2555 = vmatprep.subr.mxu0 %v309
    %2556 = vmatpush2.msra.mxu0 %v308
    %2557 = vmatprep.subr.mxu0 %v301
    %2558 = vmatpush2.msra.mxu0 %v300
    %2559 = vmatprep.subr.mxu0 %v293
    %2560 = vmatpush2.msra.mxu0 %v292
    %2561 = vmatprep.subr.mxu0 %v285
    %2562 = vmatpush2.msra.mxu0 %v284
    %2563 = vmatprep.subr.mxu0 %v277
    %2564 = vmatpush2.msra.mxu0 %v276
    %2565 = vmatprep.subr.mxu0 %v269
    %2566 = vmatpush2.msra.mxu0 %v268
    %2567 = vmatprep.subr.mxu0 %v261
    %2568 = vmatpush2.msra.mxu0 %v260
    %2569 = vmatprep.subr.mxu0 %v253
    %2570 = vmatpush2.msra.mxu0 %v252
    %2571 = vmatprep.subr.mxu0 %v245
    %2572 = vmatpush2.msra.mxu0 %v244
    %2573 = vmatprep.subr.mxu0 %v237
    %2574 = vmatpush2.msra.mxu0 %v236
    %2575 = vmatprep.subr.mxu0 %v229
    %2576 = vmatpush2.msra.mxu0 %v228
    %2577 = vmatprep.subr.mxu0 %v221
    %2578 = vmatpush2.msra.mxu0 %v220
    %2579 = vmatprep.subr.mxu0 %v213
    %2580 = vmatpush2.msra.mxu0 %v212
    %2581 = vmatprep.subr.mxu0 %v205
    %2582 = vmatpush2.msra.mxu0 %v204
    %2583 = vmatprep.mubr.f32.mxu0 %v2447
    %2584 = vmatmul.mubr.f32.gmra.mxu0 %v2423
    %v2585 = vpop.f32.mrf.mxu0
    %v2586 = vadd.f32 0.0, %v2585
    %v2587 = vpop.f32.mrf.mxu0
    %v2588 = vadd.f32 0.0, %v2587
    %2589 = vdwg.mxu0
    %2590 = vmatprep.subr.mxu0 %v199
    %2591 = vmatpush1.msra.mxu0 %v198
    %2592 = vmatprep.subr.mxu0 %v191
    %2593 = vmatpush1.msra.mxu0 %v190
    %2594 = vmatprep.subr.mxu0 %v183
    %2595 = vmatpush1.msra.mxu0 %v182
    %2596 = vmatprep.subr.mxu0 %v175
    %2597 = vmatpush1.msra.mxu0 %v174
    %2598 = vmatprep.subr.mxu0 %v167
    %2599 = vmatpush1.msra.mxu0 %v166
    %2600 = vmatprep.subr.mxu0 %v159
    %2601 = vmatpush1.msra.mxu0 %v158
    %2602 = vmatprep.subr.mxu0 %v151
    %2603 = vmatpush1.msra.mxu0 %v150
    %2604 = vmatprep.subr.mxu0 %v143
    %2605 = vmatpush1.msra.mxu0 %v142
    %2606 = vmatprep.subr.mxu0 %v135
    %2607 = vmatpush1.msra.mxu0 %v134
    %2608 = vmatprep.subr.mxu0 %v127
    %2609 = vmatpush1.msra.mxu0 %v126
    %2610 = vmatprep.subr.mxu0 %v119
    %2611 = vmatpush1.msra.mxu0 %v118
    %2612 = vmatprep.subr.mxu0 %v111
    %2613 = vmatpush1.msra.mxu0 %v110
    %2614 = vmatprep.subr.mxu0 %v103
    %2615 = vmatpush1.msra.mxu0 %v102
    %2616 = vmatprep.subr.mxu0 %v95
    %2617 = vmatpush1.msra.mxu0 %v94
    %2618 = vmatprep.subr.mxu0 %v87
    %2619 = vmatpush1.msra.mxu0 %v86
    %2620 = vmatprep.subr.mxu0 %v79
    %2621 = vmatpush1.msra.mxu0 %v78
    %2622 = vmatprep.subr.mxu0 %v327
    %2623 = vmatpush2.msra.mxu0 %v326
    %2624 = vmatprep.subr.mxu0 %v319
    %2625 = vmatpush2.msra.mxu0 %v318
    %2626 = vmatprep.subr.mxu0 %v311
    %2627 = vmatpush2.msra.mxu0 %v310
    %2628 = vmatprep.subr.mxu0 %v303
    %2629 = vmatpush2.msra.mxu0 %v302
    %2630 = vmatprep.subr.mxu0 %v295
    %2631 = vmatpush2.msra.mxu0 %v294
    %2632 = vmatprep.subr.mxu0 %v287
    %2633 = vmatpush2.msra.mxu0 %v286
    %2634 = vmatprep.subr.mxu0 %v279
    %2635 = vmatpush2.msra.mxu0 %v278
    %2636 = vmatprep.subr.mxu0 %v271
    %2637 = vmatpush2.msra.mxu0 %v270
    %2638 = vmatprep.subr.mxu0 %v263
    %2639 = vmatpush2.msra.mxu0 %v262
    %2640 = vmatprep.subr.mxu0 %v255
    %2641 = vmatpush2.msra.mxu0 %v254
    %2642 = vmatprep.subr.mxu0 %v247
    %2643 = vmatpush2.msra.mxu0 %v246
    %2644 = vmatprep.subr.mxu0 %v239
    %2645 = vmatpush2.msra.mxu0 %v238
    %2646 = vmatprep.subr.mxu0 %v231
    %2647 = vmatpush2.msra.mxu0 %v230
    %2648 = vmatprep.subr.mxu0 %v223
    %2649 = vmatpush2.msra.mxu0 %v222
    %2650 = vmatprep.subr.mxu0 %v215
    %2651 = vmatpush2.msra.mxu0 %v214
    %2652 = vmatprep.subr.mxu0 %v207
    %2653 = vmatpush2.msra.mxu0 %v206
    %2654 = vmatprep.mubr.f32.mxu0 %v2447
    %2655 = vmatmul.mubr.f32.gmra.mxu0 %v2423
    %v2656 = vpop.f32.mrf.mxu0
    %v2657 = vadd.f32 0.0, %v2656
    %v2658 = vpop.f32.mrf.mxu0
    %v2659 = vadd.f32 0.0, %v2658
    %2660 = vdwg.mxu0
    %2661 = vmatprep.subr.mxu0 %v201
    %2662 = vmatpush1.msra.mxu0 %v200
    %2663 = vmatprep.subr.mxu0 %v193
    %2664 = vmatpush1.msra.mxu0 %v192
    %2665 = vmatprep.subr.mxu0 %v185
    %2666 = vmatpush1.msra.mxu0 %v184
    %2667 = vmatprep.subr.mxu0 %v177
    %2668 = vmatpush1.msra.mxu0 %v176
    %2669 = vmatprep.subr.mxu0 %v169
    %2670 = vmatpush1.msra.mxu0 %v168
    %2671 = vmatprep.subr.mxu0 %v161
    %2672 = vmatpush1.msra.mxu0 %v160
    %2673 = vmatprep.subr.mxu0 %v153
    %2674 = vmatpush1.msra.mxu0 %v152
    %2675 = vmatprep.subr.mxu0 %v145
    %2676 = vmatpush1.msra.mxu0 %v144
    %2677 = vmatprep.subr.mxu0 %v137
    %2678 = vmatpush1.msra.mxu0 %v136
    %2679 = vmatprep.subr.mxu0 %v129
    %2680 = vmatpush1.msra.mxu0 %v128
    %2681 = vmatprep.subr.mxu0 %v121
    %2682 = vmatpush1.msra.mxu0 %v120
    %2683 = vmatprep.subr.mxu0 %v113
    %2684 = vmatpush1.msra.mxu0 %v112
    %2685 = vmatprep.subr.mxu0 %v105
    %2686 = vmatpush1.msra.mxu0 %v104
    %2687 = vmatprep.subr.mxu0 %v97
    %2688 = vmatpush1.msra.mxu0 %v96
    %2689 = vmatprep.subr.mxu0 %v89
    %2690 = vmatpush1.msra.mxu0 %v88
    %2691 = vmatprep.subr.mxu0 %v81
    %2692 = vmatpush1.msra.mxu0 %v80
    %2693 = vmatprep.subr.mxu0 %v329
    %2694 = vmatpush2.msra.mxu0 %v328
    %2695 = vmatprep.subr.mxu0 %v321
    %2696 = vmatpush2.msra.mxu0 %v320
    %2697 = vmatprep.subr.mxu0 %v313
    %2698 = vmatpush2.msra.mxu0 %v312
    %2699 = vmatprep.subr.mxu0 %v305
    %2700 = vmatpush2.msra.mxu0 %v304
    %2701 = vmatprep.subr.mxu0 %v297
    %2702 = vmatpush2.msra.mxu0 %v296
    %2703 = vmatprep.subr.mxu0 %v289
    %2704 = vmatpush2.msra.mxu0 %v288
    %2705 = vmatprep.subr.mxu0 %v281
    %2706 = vmatpush2.msra.mxu0 %v280
    %2707 = vmatprep.subr.mxu0 %v273
    %2708 = vmatpush2.msra.mxu0 %v272
    %2709 = vmatprep.subr.mxu0 %v265
    %2710 = vmatpush2.msra.mxu0 %v264
    %2711 = vmatprep.subr.mxu0 %v257
    %2712 = vmatpush2.msra.mxu0 %v256
    %2713 = vmatprep.subr.mxu0 %v249
    %2714 = vmatpush2.msra.mxu0 %v248
    %2715 = vmatprep.subr.mxu0 %v241
    %2716 = vmatpush2.msra.mxu0 %v240
    %2717 = vmatprep.subr.mxu0 %v233
    %2718 = vmatpush2.msra.mxu0 %v232
    %2719 = vmatprep.subr.mxu0 %v225
    %2720 = vmatpush2.msra.mxu0 %v224
    %2721 = vmatprep.subr.mxu0 %v217
    %2722 = vmatpush2.msra.mxu0 %v216
    %2723 = vmatprep.subr.mxu0 %v209
    %2724 = vmatpush2.msra.mxu0 %v208
    %2725 = vmatprep.mubr.f32.mxu0 %v2447
    %2726 = vmatmul.mubr.f32.gmra.mxu0 %v2423
    %v2727 = vpop.f32.mrf.mxu0
    %v2728 = vadd.f32 0.0, %v2727
    %v2729 = vpop.f32.mrf.mxu0
    %v2730 = vadd.f32 0.0, %v2729
    %2731 = vdwg.mxu0
    %v2732 = vadd.f32 %v380, %v2515
    %v2733 = vadd.f32 %v381, %v2517
    %v2734 = vadd.f32 %v382, %v2586
    %v2735 = vadd.f32 %v383, %v2588
    %v2736 = vadd.f32 %v2657, %v335
    %v2737 = vadd.f32 %v2659, %v339
    %v2738 = vadd.f32 %v2728, %v343
    %v2739 = vadd.f32 %v2730, %v347
    %v2740 = vxor.u32 %v2732, 2147483648
    %v2741 = vxor.u32 %v2733, 2147483648
    %v2742 = vmul.f32 %v2740, 1.442695
    %v2743 = vpow.pop %v2742
    %v2744 = vmul.f32 %v2741, 1.442695
    %v2745 = vpow.pop %v2744
    %v2746 = vadd.f32 %v2743, 1.0
    %v2747 = vadd.f32 %v2745, 1.0
    %v2748 = vrcp.pop %v2746
    %v2749 = vmul.f32 1.0, %v2748
    %v2750 = vrcp.pop %v2747
    %v2751 = vmul.f32 1.0, %v2750
    %v2752 = vtanh.pop %v2734
    %v2753 = vxor.u32 %v2735, 2147483648
    %v2754 = vmul.f32 %v2753, 1.442695
    %v2755 = vpow.pop %v2754
    %v2756 = vadd.f32 %v2755, 1.0
    %v2757 = vrcp.pop %v2756
    %v2758 = vmul.f32 1.0, %v2757
    %v2759 = vmul.f32 %v2751, %v2421
    %v2760 = vmul.f32 %v2749, %v2752
    %v2761 = vadd.f32 %v2759, %v2760
    %v2762 = vtanh.pop %v2761
    %v2763 = vmul.f32 %v2758, %v2762
    %v2764 = vxor.u32 %v2736, 2147483648
    %v2765 = vxor.u32 %v2737, 2147483648
    %v2766 = vmul.f32 %v2764, 1.442695
    %v2767 = vpow.pop %v2766
    %v2768 = vmul.f32 %v2765, 1.442695
    %v2769 = vpow.pop %v2768
    %v2770 = vadd.f32 %v2767, 1.0
    %v2771 = vadd.f32 %v2769, 1.0
    %v2772 = vrcp.pop %v2770
    %v2773 = vmul.f32 1.0, %v2772
    %v2774 = vrcp.pop %v2771
    %v2775 = vmul.f32 1.0, %v2774
    %v2776 = vtanh.pop %v2738
    %v2777 = vxor.u32 %v2739, 2147483648
    %v2778 = vmul.f32 %v2777, 1.442695
    %v2779 = vpow.pop %v2778
    %v2780 = vadd.f32 %v2779, 1.0
    %v2781 = vrcp.pop %v2780
    %v2782 = vmul.f32 1.0, %v2781
    %v2783 = vmul.f32 %v2775, %v2445
    %v2784 = vmul.f32 %v2773, %v2776
    %v2785 = vadd.f32 %v2783, %v2784
    %v2786 = vtanh.pop %v2785
    %v2787 = vmul.f32 %v2782, %v2786
    %2788 = vmatprep.subr.mxu0 %v199
    %2789 = vmatpush1.msra.mxu0 %v198
    %2790 = vmatprep.subr.mxu0 %v191
    %2791 = vmatpush1.msra.mxu0 %v190
    %2792 = vmatprep.subr.mxu0 %v183
    %2793 = vmatpush1.msra.mxu0 %v182
    %2794 = vmatprep.subr.mxu0 %v175
    %2795 = vmatpush1.msra.mxu0 %v174
    %2796 = vmatprep.subr.mxu0 %v167
    %2797 = vmatpush1.msra.mxu0 %v166
    %2798 = vmatprep.subr.mxu0 %v159
    %2799 = vmatpush1.msra.mxu0 %v158
    %2800 = vmatprep.subr.mxu0 %v151
    %2801 = vmatpush1.msra.mxu0 %v150
    %2802 = vmatprep.subr.mxu0 %v143
    %2803 = vmatpush1.msra.mxu0 %v142
    %2804 = vmatprep.subr.mxu0 %v135
    %2805 = vmatpush1.msra.mxu0 %v134
    %2806 = vmatprep.subr.mxu0 %v127
    %2807 = vmatpush1.msra.mxu0 %v126
    %2808 = vmatprep.subr.mxu0 %v119
    %2809 = vmatpush1.msra.mxu0 %v118
    %2810 = vmatprep.subr.mxu0 %v111
    %2811 = vmatpush1.msra.mxu0 %v110
    %2812 = vmatprep.subr.mxu0 %v103
    %2813 = vmatpush1.msra.mxu0 %v102
    %2814 = vmatprep.subr.mxu0 %v95
    %2815 = vmatpush1.msra.mxu0 %v94
    %2816 = vmatprep.subr.mxu0 %v87
    %2817 = vmatpush1.msra.mxu0 %v86
    %2818 = vmatprep.subr.mxu0 %v79
    %2819 = vmatpush1.msra.mxu0 %v78
    %2820 = vmatprep.subr.mxu0 %v327
    %2821 = vmatpush2.msra.mxu0 %v326
    %2822 = vmatprep.subr.mxu0 %v319
    %2823 = vmatpush2.msra.mxu0 %v318
    %2824 = vmatprep.subr.mxu0 %v311
    %2825 = vmatpush2.msra.mxu0 %v310
    %2826 = vmatprep.subr.mxu0 %v303
    %2827 = vmatpush2.msra.mxu0 %v302
    %2828 = vmatprep.subr.mxu0 %v295
    %2829 = vmatpush2.msra.mxu0 %v294
    %2830 = vmatprep.subr.mxu0 %v287
    %2831 = vmatpush2.msra.mxu0 %v286
    %2832 = vmatprep.subr.mxu0 %v279
    %2833 = vmatpush2.msra.mxu0 %v278
    %2834 = vmatprep.subr.mxu0 %v271
    %2835 = vmatpush2.msra.mxu0 %v270
    %2836 = vmatprep.subr.mxu0 %v263
    %2837 = vmatpush2.msra.mxu0 %v262
    %2838 = vmatprep.subr.mxu0 %v255
    %2839 = vmatpush2.msra.mxu0 %v254
    %2840 = vmatprep.subr.mxu0 %v247
    %2841 = vmatpush2.msra.mxu0 %v246
    %2842 = vmatprep.subr.mxu0 %v239
    %2843 = vmatpush2.msra.mxu0 %v238
    %2844 = vmatprep.subr.mxu0 %v231
    %2845 = vmatpush2.msra.mxu0 %v230
    %2846 = vmatprep.subr.mxu0 %v223
    %2847 = vmatpush2.msra.mxu0 %v222
    %2848 = vmatprep.subr.mxu0 %v215
    %2849 = vmatpush2.msra.mxu0 %v214
    %2850 = vmatprep.subr.mxu0 %v207
    %2851 = vmatpush2.msra.mxu0 %v206
    %2852 = vmatprep.mubr.f32.mxu0 %v2787
    %2853 = vmatmul.mubr.f32.gmra.mxu0 %v2763
    %v2854 = vpop.f32.mrf.mxu0
    %v2855 = vadd.f32 %v335, %v2854
    %v2856 = vpop.f32.mrf.mxu0
    %v2857 = vadd.f32 %v339, %v2856
    %2858 = vdwg.mxu0
    %2859 = vmatprep.subr.mxu0 %v201
    %2860 = vmatpush1.msra.mxu0 %v200
    %2861 = vmatprep.subr.mxu0 %v193
    %2862 = vmatpush1.msra.mxu0 %v192
    %2863 = vmatprep.subr.mxu0 %v185
    %2864 = vmatpush1.msra.mxu0 %v184
    %2865 = vmatprep.subr.mxu0 %v177
    %2866 = vmatpush1.msra.mxu0 %v176
    %2867 = vmatprep.subr.mxu0 %v169
    %2868 = vmatpush1.msra.mxu0 %v168
    %2869 = vmatprep.subr.mxu0 %v161
    %2870 = vmatpush1.msra.mxu0 %v160
    %2871 = vmatprep.subr.mxu0 %v153
    %2872 = vmatpush1.msra.mxu0 %v152
    %2873 = vmatprep.subr.mxu0 %v145
    %2874 = vmatpush1.msra.mxu0 %v144
    %2875 = vmatprep.subr.mxu0 %v137
    %2876 = vmatpush1.msra.mxu0 %v136
    %2877 = vmatprep.subr.mxu0 %v129
    %2878 = vmatpush1.msra.mxu0 %v128
    %2879 = vmatprep.subr.mxu0 %v121
    %2880 = vmatpush1.msra.mxu0 %v120
    %2881 = vmatprep.subr.mxu0 %v113
    %2882 = vmatpush1.msra.mxu0 %v112
    %2883 = vmatprep.subr.mxu0 %v105
    %2884 = vmatpush1.msra.mxu0 %v104
    %2885 = vmatprep.subr.mxu0 %v97
    %2886 = vmatpush1.msra.mxu0 %v96
    %2887 = vmatprep.subr.mxu0 %v89
    %2888 = vmatpush1.msra.mxu0 %v88
    %2889 = vmatprep.subr.mxu0 %v81
    %2890 = vmatpush1.msra.mxu0 %v80
    %2891 = vmatprep.subr.mxu0 %v329
    %2892 = vmatpush2.msra.mxu0 %v328
    %2893 = vmatprep.subr.mxu0 %v321
    %2894 = vmatpush2.msra.mxu0 %v320
    %2895 = vmatprep.subr.mxu0 %v313
    %2896 = vmatpush2.msra.mxu0 %v312
    %2897 = vmatprep.subr.mxu0 %v305
    %2898 = vmatpush2.msra.mxu0 %v304
    %2899 = vmatprep.subr.mxu0 %v297
    %2900 = vmatpush2.msra.mxu0 %v296
    %2901 = vmatprep.subr.mxu0 %v289
    %2902 = vmatpush2.msra.mxu0 %v288
    %2903 = vmatprep.subr.mxu0 %v281
    %2904 = vmatpush2.msra.mxu0 %v280
    %2905 = vmatprep.subr.mxu0 %v273
    %2906 = vmatpush2.msra.mxu0 %v272
    %2907 = vmatprep.subr.mxu0 %v265
    %2908 = vmatpush2.msra.mxu0 %v264
    %2909 = vmatprep.subr.mxu0 %v257
    %2910 = vmatpush2.msra.mxu0 %v256
    %2911 = vmatprep.subr.mxu0 %v249
    %2912 = vmatpush2.msra.mxu0 %v248
    %2913 = vmatprep.subr.mxu0 %v241
    %2914 = vmatpush2.msra.mxu0 %v240
    %2915 = vmatprep.subr.mxu0 %v233
    %2916 = vmatpush2.msra.mxu0 %v232
    %2917 = vmatprep.subr.mxu0 %v225
    %2918 = vmatpush2.msra.mxu0 %v224
    %2919 = vmatprep.subr.mxu0 %v217
    %2920 = vmatpush2.msra.mxu0 %v216
    %2921 = vmatprep.subr.mxu0 %v209
    %2922 = vmatpush2.msra.mxu0 %v208
    %2923 = vmatprep.mubr.f32.mxu0 %v2787
    %2924 = vmatmul.mubr.f32.gmra.mxu0 %v2763
    %v2925 = vpop.f32.mrf.mxu0
    %v2926 = vadd.f32 %v343, %v2925
    %v2927 = vpop.f32.mrf.mxu0
    %v2928 = vadd.f32 %v347, %v2927
    %2929 = vdwg.mxu0
    %v2930 = vxor.u32 %v2855, 2147483648
    %v2931 = vxor.u32 %v2857, 2147483648
    %v2932 = vmul.f32 %v2930, 1.442695
    %v2933 = vpow.pop %v2932
    %v2934 = vmul.f32 %v2931, 1.442695
    %v2935 = vpow.pop %v2934
    %v2936 = vadd.f32 %v2933, 1.0
    %v2937 = vadd.f32 %v2935, 1.0
    %v2938 = vrcp.pop %v2936
    %v2939 = vmul.f32 1.0, %v2938
    %v2940 = vrcp.pop %v2937
    %v2941 = vmul.f32 1.0, %v2940
    %v2942 = vtanh.pop %v2926
    %v2943 = vxor.u32 %v2928, 2147483648
    %v2944 = vmul.f32 %v2943, 1.442695
    %v2945 = vpow.pop %v2944
    %v2946 = vadd.f32 %v2945, 1.0
    %v2947 = vrcp.pop %v2946
    %v2948 = vmul.f32 1.0, %v2947
    %v2949 = vmul.f32 %v2941, %v2785
    %v2950 = vmul.f32 %v2939, %v2942
    %v2951 = vadd.f32 %v2949, %v2950
    %v2952 = vtanh.pop %v2951
    %v2953 = vmul.f32 %v2948, %v2952
    %v2954 = vld [vmem:[#allocation8] sm:$0xff]
    %v2955 = vld [vmem:[#allocation8 + $0x8] sm:$0xff]
    %v2956 = vld [vmem:[#allocation8 + $0x10] sm:$0xff]
    %v2957 = vld [vmem:[#allocation8 + $0x18] sm:$0xff]
    %v2958 = vld [vmem:[#allocation8 + $0x20] sm:$0xff]
    %v2959 = vld [vmem:[#allocation8 + $0x28] sm:$0xff]
    %v2960 = vld [vmem:[#allocation8 + $0x30] sm:$0xff]
    %v2961 = vld [vmem:[#allocation8 + $0x38] sm:$0xff]
    %v2962 = vld [vmem:[#allocation8 + $0x40] sm:$0xff]
    %v2963 = vld [vmem:[#allocation8 + $0x48] sm:$0xff]
    %v2964 = vld [vmem:[#allocation8 + $0x50] sm:$0xff]
    %v2965 = vld [vmem:[#allocation8 + $0x58] sm:$0xff]
    %v2966 = vld [vmem:[#allocation8 + $0x60] sm:$0xff]
    %v2967 = vld [vmem:[#allocation8 + $0x68] sm:$0xff]
    %v2968 = vld [vmem:[#allocation8 + $0x70] sm:$0xff]
    %v2969 = vld [vmem:[#allocation8 + $0x78] sm:$0xff]
    %v2970 = vld [vmem:[%s4] sm:$0x1]
    %v2972 = vlaneseq
    %v2973 = vshrl.u32 %v2972, 7
    %v2974 = vsub.s32 0, %v2973
    %v2975 = vrot.slane %v2970, %v2974
    %2977 = vmatprep.subr.mxu0 0.0
    %2978 = vmatpush1.msra.mxu0 %v2969
    %2979 = vmatprep.subr.mxu0 0.0
    %2980 = vmatpush1.msra.mxu0 %v2968
    %2981 = vmatprep.subr.mxu0 0.0
    %2982 = vmatpush1.msra.mxu0 %v2967
    %2983 = vmatprep.subr.mxu0 0.0
    %2984 = vmatpush1.msra.mxu0 %v2966
    %2985 = vmatprep.subr.mxu0 0.0
    %2986 = vmatpush1.msra.mxu0 %v2965
    %2987 = vmatprep.subr.mxu0 0.0
    %2988 = vmatpush1.msra.mxu0 %v2964
    %2989 = vmatprep.subr.mxu0 0.0
    %2990 = vmatpush1.msra.mxu0 %v2963
    %2991 = vmatprep.subr.mxu0 0.0
    %2992 = vmatpush1.msra.mxu0 %v2962
    %2993 = vmatprep.subr.mxu0 0.0
    %2994 = vmatpush1.msra.mxu0 %v2961
    %2995 = vmatprep.subr.mxu0 0.0
    %2996 = vmatpush1.msra.mxu0 %v2960
    %2997 = vmatprep.subr.mxu0 0.0
    %2998 = vmatpush1.msra.mxu0 %v2959
    %2999 = vmatprep.subr.mxu0 0.0
    %3000 = vmatpush1.msra.mxu0 %v2958
    %3001 = vmatprep.subr.mxu0 0.0
    %3002 = vmatpush1.msra.mxu0 %v2957
    %3003 = vmatprep.subr.mxu0 0.0
    %3004 = vmatpush1.msra.mxu0 %v2956
    %3005 = vmatprep.subr.mxu0 0.0
    %3006 = vmatpush1.msra.mxu0 %v2955
    %3007 = vmatprep.subr.mxu0 0.0
    %3008 = vmatpush1.msra.mxu0 %v2954
    %3009 = vmatprep.subr.mxu0 0.0
    %3010 = vmatpush2.msra.mxu0 0.0
    %3011 = vmatprep.subr.mxu0 0.0
    %3012 = vmatpush2.msra.mxu0 0.0
    %3013 = vmatprep.subr.mxu0 0.0
    %3014 = vmatpush2.msra.mxu0 0.0
    %3015 = vmatprep.subr.mxu0 0.0
    %3016 = vmatpush2.msra.mxu0 0.0
    %3017 = vmatprep.subr.mxu0 0.0
    %3018 = vmatpush2.msra.mxu0 0.0
    %3019 = vmatprep.subr.mxu0 0.0
    %3020 = vmatpush2.msra.mxu0 0.0
    %3021 = vmatprep.subr.mxu0 0.0
    %3022 = vmatpush2.msra.mxu0 0.0
    %3023 = vmatprep.subr.mxu0 0.0
    %3024 = vmatpush2.msra.mxu0 0.0
    %3025 = vmatprep.subr.mxu0 0.0
    %3026 = vmatpush2.msra.mxu0 0.0
    %3027 = vmatprep.subr.mxu0 0.0
    %3028 = vmatpush2.msra.mxu0 0.0
    %3029 = vmatprep.subr.mxu0 0.0
    %3030 = vmatpush2.msra.mxu0 0.0
    %3031 = vmatprep.subr.mxu0 0.0
    %3032 = vmatpush2.msra.mxu0 0.0
    %3033 = vmatprep.subr.mxu0 0.0
    %3034 = vmatpush2.msra.mxu0 0.0
    %3035 = vmatprep.subr.mxu0 0.0
    %3036 = vmatpush2.msra.mxu0 0.0
    %3037 = vmatprep.subr.mxu0 0.0
    %3038 = vmatpush2.msra.mxu0 0.0
    %3039 = vmatprep.subr.mxu0 0.0
    %3040 = vmatpush2.msra.mxu0 0.0
    %3041 = vmatprep.mubr.f32.mxu0 0.0
    %3042 = vmatmul.mubr.f32.gmra.mxu0 %v2953
    %v3043 = vpop.f32.mrf.mxu0
    %v3044 = vadd.f32 %v2975, %v3043
    %v3045 = vpop.f32.mrf.mxu0
    %3046 = vdwg.mxu0
    %3047 = vst [vmem:[#allocation10] sm:$0xff] %v3044
    // Predicated region
    $region38: #{tpu_custom_call.1} parent=1 // pred_check
      _
    $region39: #{tpu_custom_call.1} parent=1 // pred_check_branch
      %3049 = sbr.rel (0) target = $region41
    $region40: #{tpu_custom_call.1} parent=1 // pred_region
      %s3051 = ssub.s32 128, 128
      %3052 = vsyncadd [#allocation4], %s3051
      %s3054 = sshll.u32 [#allocation10], 4
      %s3055 = int_to_ptr.vmem [resolvable:$true] %s3054
      %3057 = dma.vmem_to_hbm [thread:$0]  %s3055, 128, %s5, [#allocation4]
    $region41: #{tpu_custom_call.1} parent=1 // pred_fallthru
      _
    // Predicated region
    $region42: #{tpu_custom_call.1} parent=1 // pred_check
      _
    $region43: #{tpu_custom_call.1} parent=1 // pred_check_branch
      %3059 = sbr.rel (0) target = $region45
    $region44: #{tpu_custom_call.1} parent=1 // pred_region
      %3060 = dma.done [#allocation4], 128
    $region45: #{tpu_custom_call.1} parent=1 // pred_fallthru
      _
    %3061 = vsyncpa [#allocation3], 1
    %3062 = vsyncpa [#allocation6], 1
    %3063 = vsyncpa [#allocation9], 1
    %3064 = vsyncpa [#allocation4], 1

</llo_original>
